<compile_context>
chip_gen: v7x
topology: tpu7x:2x2x1
jax: 0.10.0
libtpu: 0.0.40
codegen_flags: <defaults>
</compile_context>

<pallas_src>
import jax
import jax.numpy as jnp
from jax import lax
from jax.experimental import pallas as pl
from jax.experimental.pallas import tpu as pltpu

LANE = 128


def _ceil_to(v, m):
    return ((v + m - 1) // m) * m


# ----------------------------------------------------------------------------
# Host-side parameter construction
# ----------------------------------------------------------------------------
def init_unit_params(key, cin, c1, c2, c3, reduction=16):
    ks = jax.random.split(key, 10)

    def conv_w(k, shape):
        w = 0.1 * jax.random.normal(k, shape, jnp.float32)
        # Snap weights to the bf16 grid so the bf16 kernel and the f32
        # reference use numerically identical parameters.
        return w.astype(jnp.bfloat16).astype(jnp.float32)

    def bn_fold(k, c):
        kg, kb, km, kv = jax.random.split(k, 4)
        gamma = 1.0 + 0.1 * jax.random.normal(kg, (c,), jnp.float32)
        beta = 0.1 * jax.random.normal(kb, (c,), jnp.float32)
        mean = 0.1 * jax.random.normal(km, (c,), jnp.float32)
        var = jnp.abs(jax.random.normal(kv, (c,), jnp.float32)) * 0.1 + 0.5
        scale = gamma / jnp.sqrt(var + 1e-5)
        bias = beta - mean * scale
        return scale.reshape(1, c), bias.reshape(1, c)

    p = {}
    p["w1"] = conv_w(ks[0], (cin, c1))
    p["s1"], p["b1"] = bn_fold(ks[1], c1)
    p["w2_hwio"] = conv_w(ks[2], (3, 3, c1, c2))
    p["s2"], p["b2"] = bn_fold(ks[3], c2)
    p["w3"] = conv_w(ks[4], (c2, c3))
    p["s3"], p["b3"] = bn_fold(ks[5], c3)
    cr = max(c3 // reduction, 1)
    p["wse1"] = conv_w(ks[6], (c3, cr))
    p["wse2"] = conv_w(ks[7], (cr, c3))
    p["wd"] = conv_w(ks[8], (cin, c3))
    p["sd"], p["bd"] = bn_fold(ks[9], c3)
    return p


def _pad2d(a, rows, cols):
    out = jnp.zeros((rows, cols), jnp.float32)
    return out.at[: a.shape[0], : a.shape[1]].set(a)


def make_dev_params(p, c1, c2, c3, cinp, c3p, has_se, has_down):
    """Zero-pad the channel dims that touch the padded lane space; cast matmul
    weights to bf16.  Padded channels stay identically zero through the net."""
    bf = jnp.bfloat16
    dev = [
        _pad2d(p["w1"], cinp, c1).astype(bf),
        p["s1"], p["b1"],
        p["w2_hwio"].reshape(9 * c1, c2).astype(bf),   # tap-major (kh,kw,ci)
        p["s2"], p["b2"],
        _pad2d(p["w3"], c2, c3p).astype(bf),
        _pad2d(p["s3"], 1, c3p),
        _pad2d(p["b3"], 1, c3p),
    ]
    if has_se:
        cr = p["wse1"].shape[1]
        dev += [_pad2d(p["wse1"], c3p, cr).astype(bf),
                _pad2d(p["wse2"], cr, c3p).astype(bf)]
    if has_down:
        dev += [_pad2d(p["wd"], cinp, c3p).astype(bf),
                _pad2d(p["sd"], 1, c3p),
                _pad2d(p["bd"], 1, c3p)]
    return dev


def build_block(key, config, num_layers, stride, H, W, residual_attention):
    cfg = list(config)
    c3 = cfg[3]
    c3p = _ceil_to(c3, LANE)
    units, meta = [], []
    h, w = H, W
    for i in range(num_layers):
        s = stride if i == 0 else 1
        if i > 0 and s != 1:
            raise ValueError("stride > 1 is only supported on the first unit")
        cin, c1, c2, c3 = cfg
        has_down = (s != 1) or (cin != c3)
        has_se = bool(residual_attention)
        key, sub = jax.random.split(key)
        p = init_unit_params(sub, cin, c1, c2, c3)
        ho = (h - 1) // s + 1
        wo = (w - 1) // s + 1
        cinp = _ceil_to(cin, LANE) if i == 0 else c3p
        dev = make_dev_params(p, c1, c2, c3, cinp, c3p, has_se, has_down)
        meta.append(dict(H=h, W=w, Ho=ho, Wo=wo, s=s, c1=c1, c2=c2, c3p=c3p,
                         cinp=cinp, has_se=has_se, has_down=has_down,
                         np=len(dev)))
        units.append(dict(params=p, dev_params=dev, stride=s, has_se=has_se,
                          has_down=has_down))
        h, w = ho, wo
        cfg[0] = cfg[-1]
    return dict(units=units, meta=meta, c3=c3, c3p=c3p)


# ----------------------------------------------------------------------------
# Pallas kernel: one fused ResidualBlock (all units, whole batch) per call
# ----------------------------------------------------------------------------
def _unit_body(B, m, prefs, in_ref, out_ref, pad_ref, patch_ref):
    H, W, Ho, Wo, s = m["H"], m["W"], m["Ho"], m["Wo"], m["s"]
    c1, c3p, cinp = m["c1"], m["c3p"], m["cinp"]
    rows_out = B * Ho * Wo
    bf = jnp.bfloat16

    (w1, s1, b1, w2f, s2, b2, w3, s3, b3) = prefs[:9]
    k = 9
    if m["has_se"]:
        wse1, wse2 = prefs[k], prefs[k + 1]
        k += 2
    if m["has_down"]:
        wd, sd, bd = prefs[k], prefs[k + 1], prefs[k + 2]

    # ---- conv1 (1x1) + BN1 + ReLU, written into a zero-padded (H+2, W+2)
    #      activation buffer (implements the 3x3 conv's zero padding) ---------
    pad_ref[...] = jnp.zeros_like(pad_ref)
    w1v, s1v, b1v = w1[...], s1[...], b1[...]
    hc = max(1, 128 // W)                 # rows of H per chunk (bounds vregs)
    for b in range(B):
        for h0 in range(0, H, hc):
            h1 = min(h0 + hc, H)
            nh = h1 - h0
            xc = in_ref[b, h0:h1, :, :].reshape(nh * W, cinp)
            t1 = jnp.dot(xc.astype(bf), w1v,
                         preferred_element_type=jnp.float32)
            t1 = jnp.maximum(t1 * s1v + b1v, 0.0)
            pad_ref[b, 1 + h0:1 + h1, 1:W + 1, :] = t1.reshape(nh, W, c1)

    # ---- conv2 (3x3, padding=1, stride s): 9 shifted/strided windows
    #      assembled into one (rows, 9*C1) x (9*C1, C2) MXU matmul ------------
    for kh in range(3):
        for kw in range(3):
            if s == 1:
                win = pad_ref[:, kh:kh + Ho, kw:kw + Wo, :]
            else:
                win = pad_ref[:, pl.ds(kh, Ho, stride=s),
                              pl.ds(kw, Wo, stride=s), :]
            t = kh * 3 + kw
            patch_ref[:, t * c1:(t + 1) * c1] = win.reshape(rows_out, c1)
    t2 = jnp.dot(patch_ref[...].astype(bf), w2f[...],
                 preferred_element_type=jnp.float32)
    t2 = jnp.maximum(t2 * s2[...] + b2[...], 0.0)

    # ---- conv3 (1x1) + BN3 (output channels padded to a 128-lane multiple) --
    t3 = jnp.dot(t2.astype(bf), w3[...], preferred_element_type=jnp.float32)
    t3 = t3 * s3[...] + b3[...]

    # ---- SELayer: per-sample global avg pool, 2 linears, sigmoid gate -------
    if m["has_se"]:
        t3b = t3.reshape(B, Ho * Wo, c3p)
        pooled = jnp.mean(t3b, axis=1)                       # (B, C3P)
        hid = jnp.maximum(
            jnp.dot(pooled.astype(bf), wse1[...],
                    preferred_element_type=jnp.float32), 0.0)
        gate = jax.nn.sigmoid(
            jnp.dot(hid.astype(bf), wse2[...],
                    preferred_element_type=jnp.float32))
        t3 = (t3b * gate[:, None, :]).reshape(rows_out, c3p)

    # ---- residual path -------------------------------------------------------
    if m["has_down"]:
        if s == 1:
            xs = in_ref[...]
        else:
            # strided VMEM read == spatial subsample of the stride-s 1x1 conv
            xs = in_ref[:, pl.ds(0, Ho, stride=s), pl.ds(0, Wo, stride=s), :]
        res = jnp.dot(xs.reshape(rows_out, cinp).astype(bf), wd[...],
                      preferred_element_type=jnp.float32)
        res = res * sd[...] + bd[...]
    else:
        res = in_ref[...].reshape(rows_out, c3p)

    out_ref[...] = jnp.maximum(t3 + res, 0.0).reshape(B, Ho, Wo, c3p)


def make_block_kernel(B, meta):
    n_units = len(meta)
    n_params = sum(m["np"] for m in meta)

    def kernel(*refs):
        x_ref = refs[0]
        out_ref = refs[1 + n_params]
        scratch = refs[2 + n_params:]
        pidx = 1
        in_ref = x_ref
        for ui, m in enumerate(meta):
            prefs = refs[pidx:pidx + m["np"]]
            pidx += m["np"]
            pad_ref = scratch[2 * ui]
            patch_ref = scratch[2 * ui + 1]
            o_ref = out_ref if ui == n_units - 1 else scratch[2 * n_units + ui]
            _unit_body(B, m, prefs, in_ref, o_ref, pad_ref, patch_ref)
            in_ref = o_ref

    return kernel


def run_block(xp, block):
    meta = block["meta"]
    B = xp.shape[0]
    flat = []
    for u in block["units"]:
        flat.extend(u["dev_params"])
    scratch = []
    for m in meta:
        scratch.append(pltpu.VMEM((B, m["H"] + 2, m["W"] + 2, m["c1"]),
                                  jnp.float32))
        scratch.append(pltpu.VMEM((B * m["Ho"] * m["Wo"], 9 * m["c1"]),
                                  jnp.float32))
    for m in meta[:-1]:
        scratch.append(pltpu.VMEM((B, m["Ho"], m["Wo"], m["c3p"]),
                                  jnp.float32))
    last = meta[-1]
    out_shape = jax.ShapeDtypeStruct((B, last["Ho"], last["Wo"], last["c3p"]),
                                     jnp.float32)
    return pl.pallas_call(
        make_block_kernel(B, meta),
        out_shape=out_shape,
        scratch_shapes=scratch,
        compiler_params=pltpu.CompilerParams(
            vmem_limit_bytes=32 * 1024 * 1024),
    )(xp, *flat)


# ----------------------------------------------------------------------------
# ResidualBlock wrapper (NCHW in / NCHW out, like PyTorch)
# ----------------------------------------------------------------------------
def residual_block_forward(x_nchw, block):
    B, C, H, W = x_nchw.shape
    xh = jnp.transpose(x_nchw, (0, 2, 3, 1))
    cinp = block["meta"][0]["cinp"]
    xp = jnp.pad(xh, ((0, 0), (0, 0), (0, 0), (0, cinp - C)))
    outp = run_block(xp, block)
    out = outp[..., : block["c3"]]
    return jnp.transpose(out, (0, 3, 1, 2))


# ----------------------------------------------------------------------------
# Pure-JAX reference (for correctness check)
# ----------------------------------------------------------------------------
def _ref_unit(x, p, stride, has_se, has_down):
    def pw(z, w):
        return jnp.einsum("bhwc,cd->bhwd", z, w)

    t1 = jax.nn.relu(pw(x, p["w1"]) * p["s1"] + p["b1"])
    t2 = lax.conv_general_dilated(t1, p["w2_hwio"], (stride, stride),
                                  ((1, 1), (1, 1)),
                                  dimension_numbers=("NHWC", "HWIO", "NHWC"))
    t2 = jax.nn.relu(t2 * p["s2"] + p["b2"])
    t3 = pw(t2, p["w3"]) * p["s3"] + p["b3"]
    if has_se:
        pooled = jnp.mean(t3, axis=(1, 2))
        g = jax.nn.sigmoid(jax.nn.relu(pooled @ p["wse1"]) @ p["wse2"])
        t3 = t3 * g[:, None, None, :]
    if has_down:
        xs = x[:, ::stride, ::stride, :]
        res = pw(xs, p["wd"]) * p["sd"] + p["bd"]
    else:
        res = x
    return jax.nn.relu(t3 + res)


def reference_forward(x_nchw, block):
    x = jnp.transpose(x_nchw, (0, 2, 3, 1))
    for u in block["units"]:
        x = _ref_unit(x, u["params"], u["stride"], u["has_se"], u["has_down"])
    return jnp.transpose(x, (0, 3, 1, 2))


# ----------------------------------------------------------------------------
if __name__ == "__main__":
    key = jax.random.PRNGKey(0)
    k_x, k_p = jax.random.split(key)

    B, Cin, H, W = 2, 4, 16, 16
    config = [4, 8, 8, 32]          # [in, c1, c2, c3]
    num_layers = 2
    stride = 2
    residual_attention = True       # opt.residual_attention

    x = jax.random.normal(k_x, (B, Cin, H, W), jnp.float32)
    block = build_block(k_p, config, num_layers, stride, H, W,
                        residual_attention)

    out = jax.block_until_ready(residual_block_forward(x, block))
    ref = jax.block_until_ready(reference_forward(x, block))

    assert out.shape == ref.shape, (out.shape, ref.shape)
    max_err = float(jnp.max(jnp.abs(out - ref)))
    assert max_err < 5e-2, f"max abs error too large: {max_err}"

    print("KERNEL_OK")
</pallas_src>

<mosaic_0001>
module attributes {stable_mosaic.version = 11 : i64} {
  func.func @kernel(%arg0: memref<2x16x16x128xf32, #tpu.memory_space<vmem>>, %arg1: memref<128x8xbf16, #tpu.memory_space<vmem>>, %arg2: memref<1x8xf32, #tpu.memory_space<vmem>>, %arg3: memref<1x8xf32, #tpu.memory_space<vmem>>, %arg4: memref<72x8xbf16, #tpu.memory_space<vmem>>, %arg5: memref<1x8xf32, #tpu.memory_space<vmem>>, %arg6: memref<1x8xf32, #tpu.memory_space<vmem>>, %arg7: memref<8x128xbf16, #tpu.memory_space<vmem>>, %arg8: memref<1x128xf32, #tpu.memory_space<vmem>>, %arg9: memref<1x128xf32, #tpu.memory_space<vmem>>, %arg10: memref<128x2xbf16, #tpu.memory_space<vmem>>, %arg11: memref<2x128xbf16, #tpu.memory_space<vmem>>, %arg12: memref<128x128xbf16, #tpu.memory_space<vmem>>, %arg13: memref<1x128xf32, #tpu.memory_space<vmem>>, %arg14: memref<1x128xf32, #tpu.memory_space<vmem>>, %arg15: memref<128x8xbf16, #tpu.memory_space<vmem>>, %arg16: memref<1x8xf32, #tpu.memory_space<vmem>>, %arg17: memref<1x8xf32, #tpu.memory_space<vmem>>, %arg18: memref<72x8xbf16, #tpu.memory_space<vmem>>, %arg19: memref<1x8xf32, #tpu.memory_space<vmem>>, %arg20: memref<1x8xf32, #tpu.memory_space<vmem>>, %arg21: memref<8x128xbf16, #tpu.memory_space<vmem>>, %arg22: memref<1x128xf32, #tpu.memory_space<vmem>>, %arg23: memref<1x128xf32, #tpu.memory_space<vmem>>, %arg24: memref<128x2xbf16, #tpu.memory_space<vmem>>, %arg25: memref<2x128xbf16, #tpu.memory_space<vmem>>, %arg26: memref<2x8x8x128xf32, #tpu.memory_space<vmem>>, %arg27: memref<2x18x18x8xf32, #tpu.memory_space<vmem>>, %arg28: memref<128x72xf32, #tpu.memory_space<vmem>>, %arg29: memref<2x10x10x8xf32, #tpu.memory_space<vmem>>, %arg30: memref<128x72xf32, #tpu.memory_space<vmem>>, %arg31: memref<2x8x8x128xf32, #tpu.memory_space<vmem>>) attributes {dimension_semantics = [], scalar_prefetch = 0 : i64, scratch_operands = 5 : i64, tpu.core_type = #tpu.core_type<tc>} {
    %cst = arith.constant 0.000000e+00 : f32
    %0 = vector.broadcast %cst : f32 to vector<2x18x18x8xf32>
    %c0 = arith.constant 0 : index
    %c0_0 = arith.constant 0 : index
    %c0_1 = arith.constant 0 : index
    %c0_2 = arith.constant 0 : index
    %1 = vector.load %arg27[%c0, %c0_0, %c0_1, %c0_2] : memref<2x18x18x8xf32, #tpu.memory_space<vmem>>, vector<2x18x18x8xf32>
    tpu.vector_store %arg27[%c0, %c0_0, %c0_1, %c0_2], %0 {strides = array<i32>} : memref<2x18x18x8xf32, #tpu.memory_space<vmem>>, vector<2x18x18x8xf32>,
    %c0_3 = arith.constant 0 : index
    %c0_4 = arith.constant 0 : index
    %2 = vector.load %arg1[%c0_3, %c0_4] : memref<128x8xbf16, #tpu.memory_space<vmem>>, vector<128x8xbf16>
    %c0_5 = arith.constant 0 : index
    %c0_6 = arith.constant 0 : index
    %3 = vector.load %arg2[%c0_5, %c0_6] : memref<1x8xf32, #tpu.memory_space<vmem>>, vector<1x8xf32>
    %c0_7 = arith.constant 0 : index
    %c0_8 = arith.constant 0 : index
    %4 = vector.load %arg3[%c0_7, %c0_8] : memref<1x8xf32, #tpu.memory_space<vmem>>, vector<1x8xf32>
    %c0_9 = arith.constant 0 : index
    %c0_10 = arith.constant 0 : index
    %c0_11 = arith.constant 0 : index
    %c0_12 = arith.constant 0 : index
    %5 = vector.load %arg0[%c0_9, %c0_10, %c0_11, %c0_12] : memref<2x16x16x128xf32, #tpu.memory_space<vmem>>, vector<1x8x16x128xf32>
    %6 = vector.shape_cast %5 : vector<1x8x16x128xf32> to vector<8x16x128xf32>
    %7 = vector.shape_cast %6 : vector<8x16x128xf32> to vector<128x128xf32>
    %8 = arith.truncf %7 : vector<128x128xf32> to vector<128x128xbf16>
    %cst_13 = arith.constant dense<0.000000e+00> : vector<128x8xf32>
    %9 = tpu.matmul %8, %2, %cst_13 {dimension_numbers = #tpu.dot_dimension_numbers<[1], [0], [0], [1], [0, 0, 1, 1], [], []>} : vector<128x128xbf16>, vector<128x8xbf16>, vector<128x8xf32> -> vector<128x8xf32>
    %10 = vector.broadcast %3 : vector<1x8xf32> to vector<128x8xf32>
    %11 = arith.mulf %9, %10 : vector<128x8xf32>
    %12 = vector.broadcast %4 : vector<1x8xf32> to vector<128x8xf32>
    %13 = arith.addf %11, %12 : vector<128x8xf32>
    %cst_14 = arith.constant 0.000000e+00 : f32
    %14 = vector.broadcast %cst_14 : f32 to vector<128x8xf32>
    %15 = arith.maximumf %13, %14 : vector<128x8xf32>
    %16 = vector.shape_cast %15 : vector<128x8xf32> to vector<8x16x8xf32>
    %c0_15 = arith.constant 0 : index
    %c1 = arith.constant 1 : index
    %c1_16 = arith.constant 1 : index
    %c0_17 = arith.constant 0 : index
    %17 = vector.load %arg27[%c0_15, %c1, %c1_16, %c0_17] : memref<2x18x18x8xf32, #tpu.memory_space<vmem>>, vector<1x8x16x8xf32>
    %18 = vector.shape_cast %17 : vector<1x8x16x8xf32> to vector<8x16x8xf32>
    %19 = vector.shape_cast %16 : vector<8x16x8xf32> to vector<1x8x16x8xf32>
    tpu.vector_store %arg27[%c0_15, %c1, %c1_16, %c0_17], %19 {strides = array<i32>} : memref<2x18x18x8xf32, #tpu.memory_space<vmem>>, vector<1x8x16x8xf32>,
    %c0_18 = arith.constant 0 : index
    %c8 = arith.constant 8 : index
    %c0_19 = arith.constant 0 : index
    %c0_20 = arith.constant 0 : index
    %20 = vector.load %arg0[%c0_18, %c8, %c0_19, %c0_20] : memref<2x16x16x128xf32, #tpu.memory_space<vmem>>, vector<1x8x16x128xf32>
    %21 = vector.shape_cast %20 : vector<1x8x16x128xf32> to vector<8x16x128xf32>
    %22 = vector.shape_cast %21 : vector<8x16x128xf32> to vector<128x128xf32>
    %23 = arith.truncf %22 : vector<128x128xf32> to vector<128x128xbf16>
    %cst_21 = arith.constant dense<0.000000e+00> : vector<128x8xf32>
    %24 = tpu.matmul %23, %2, %cst_21 {dimension_numbers = #tpu.dot_dimension_numbers<[1], [0], [0], [1], [0, 0, 1, 1], [], []>} : vector<128x128xbf16>, vector<128x8xbf16>, vector<128x8xf32> -> vector<128x8xf32>
    %25 = vector.broadcast %3 : vector<1x8xf32> to vector<128x8xf32>
    %26 = arith.mulf %24, %25 : vector<128x8xf32>
    %27 = vector.broadcast %4 : vector<1x8xf32> to vector<128x8xf32>
    %28 = arith.addf %26, %27 : vector<128x8xf32>
    %cst_22 = arith.constant 0.000000e+00 : f32
    %29 = vector.broadcast %cst_22 : f32 to vector<128x8xf32>
    %30 = arith.maximumf %28, %29 : vector<128x8xf32>
    %31 = vector.shape_cast %30 : vector<128x8xf32> to vector<8x16x8xf32>
    %c0_23 = arith.constant 0 : index
    %c9 = arith.constant 9 : index
    %c1_24 = arith.constant 1 : index
    %c0_25 = arith.constant 0 : index
    %32 = vector.load %arg27[%c0_23, %c9, %c1_24, %c0_25] : memref<2x18x18x8xf32, #tpu.memory_space<vmem>>, vector<1x8x16x8xf32>
    %33 = vector.shape_cast %32 : vector<1x8x16x8xf32> to vector<8x16x8xf32>
    %34 = vector.shape_cast %31 : vector<8x16x8xf32> to vector<1x8x16x8xf32>
    tpu.vector_store %arg27[%c0_23, %c9, %c1_24, %c0_25], %34 {strides = array<i32>} : memref<2x18x18x8xf32, #tpu.memory_space<vmem>>, vector<1x8x16x8xf32>,
    %c1_26 = arith.constant 1 : index
    %c0_27 = arith.constant 0 : index
    %c0_28 = arith.constant 0 : index
    %c0_29 = arith.constant 0 : index
    %35 = vector.load %arg0[%c1_26, %c0_27, %c0_28, %c0_29] : memref<2x16x16x128xf32, #tpu.memory_space<vmem>>, vector<1x8x16x128xf32>
    %36 = vector.shape_cast %35 : vector<1x8x16x128xf32> to vector<8x16x128xf32>
    %37 = vector.shape_cast %36 : vector<8x16x128xf32> to vector<128x128xf32>
    %38 = arith.truncf %37 : vector<128x128xf32> to vector<128x128xbf16>
    %cst_30 = arith.constant dense<0.000000e+00> : vector<128x8xf32>
    %39 = tpu.matmul %38, %2, %cst_30 {dimension_numbers = #tpu.dot_dimension_numbers<[1], [0], [0], [1], [0, 0, 1, 1], [], []>} : vector<128x128xbf16>, vector<128x8xbf16>, vector<128x8xf32> -> vector<128x8xf32>
    %40 = vector.broadcast %3 : vector<1x8xf32> to vector<128x8xf32>
    %41 = arith.mulf %39, %40 : vector<128x8xf32>
    %42 = vector.broadcast %4 : vector<1x8xf32> to vector<128x8xf32>
    %43 = arith.addf %41, %42 : vector<128x8xf32>
    %cst_31 = arith.constant 0.000000e+00 : f32
    %44 = vector.broadcast %cst_31 : f32 to vector<128x8xf32>
    %45 = arith.maximumf %43, %44 : vector<128x8xf32>
    %46 = vector.shape_cast %45 : vector<128x8xf32> to vector<8x16x8xf32>
    %c1_32 = arith.constant 1 : index
    %c1_33 = arith.constant 1 : index
    %c1_34 = arith.constant 1 : index
    %c0_35 = arith.constant 0 : index
    %47 = vector.load %arg27[%c1_32, %c1_33, %c1_34, %c0_35] : memref<2x18x18x8xf32, #tpu.memory_space<vmem>>, vector<1x8x16x8xf32>
    %48 = vector.shape_cast %47 : vector<1x8x16x8xf32> to vector<8x16x8xf32>
    %49 = vector.shape_cast %46 : vector<8x16x8xf32> to vector<1x8x16x8xf32>
    tpu.vector_store %arg27[%c1_32, %c1_33, %c1_34, %c0_35], %49 {strides = array<i32>} : memref<2x18x18x8xf32, #tpu.memory_space<vmem>>, vector<1x8x16x8xf32>,
    %c1_36 = arith.constant 1 : index
    %c8_37 = arith.constant 8 : index
    %c0_38 = arith.constant 0 : index
    %c0_39 = arith.constant 0 : index
    %50 = vector.load %arg0[%c1_36, %c8_37, %c0_38, %c0_39] : memref<2x16x16x128xf32, #tpu.memory_space<vmem>>, vector<1x8x16x128xf32>
    %51 = vector.shape_cast %50 : vector<1x8x16x128xf32> to vector<8x16x128xf32>
    %52 = vector.shape_cast %51 : vector<8x16x128xf32> to vector<128x128xf32>
    %53 = arith.truncf %52 : vector<128x128xf32> to vector<128x128xbf16>
    %cst_40 = arith.constant dense<0.000000e+00> : vector<128x8xf32>
    %54 = tpu.matmul %53, %2, %cst_40 {dimension_numbers = #tpu.dot_dimension_numbers<[1], [0], [0], [1], [0, 0, 1, 1], [], []>} : vector<128x128xbf16>, vector<128x8xbf16>, vector<128x8xf32> -> vector<128x8xf32>
    %55 = vector.broadcast %3 : vector<1x8xf32> to vector<128x8xf32>
    %56 = arith.mulf %54, %55 : vector<128x8xf32>
    %57 = vector.broadcast %4 : vector<1x8xf32> to vector<128x8xf32>
    %58 = arith.addf %56, %57 : vector<128x8xf32>
    %cst_41 = arith.constant 0.000000e+00 : f32
    %59 = vector.broadcast %cst_41 : f32 to vector<128x8xf32>
    %60 = arith.maximumf %58, %59 : vector<128x8xf32>
    %61 = vector.shape_cast %60 : vector<128x8xf32> to vector<8x16x8xf32>
    %c1_42 = arith.constant 1 : index
    %c9_43 = arith.constant 9 : index
    %c1_44 = arith.constant 1 : index
    %c0_45 = arith.constant 0 : index
    %62 = vector.load %arg27[%c1_42, %c9_43, %c1_44, %c0_45] : memref<2x18x18x8xf32, #tpu.memory_space<vmem>>, vector<1x8x16x8xf32>
    %63 = vector.shape_cast %62 : vector<1x8x16x8xf32> to vector<8x16x8xf32>
    %64 = vector.shape_cast %61 : vector<8x16x8xf32> to vector<1x8x16x8xf32>
    tpu.vector_store %arg27[%c1_42, %c9_43, %c1_44, %c0_45], %64 {strides = array<i32>} : memref<2x18x18x8xf32, #tpu.memory_space<vmem>>, vector<1x8x16x8xf32>,
    %c0_46 = arith.constant 0 : index
    %c0_47 = arith.constant 0 : index
    %c0_48 = arith.constant 0 : index
    %c0_49 = arith.constant 0 : index
    %65 = tpu.strided_load %arg27[%c0_46, %c0_47, %c0_48, %c0_49] {strides = array<i32: 1, 2, 2, 1>} : memref<2x18x18x8xf32, #tpu.memory_space<vmem>>, vector<2x8x8x8xf32>
    %66 = vector.shape_cast %65 : vector<2x8x8x8xf32> to vector<128x8xf32>
    %c0_50 = arith.constant 0 : index
    %c0_51 = arith.constant 0 : index
    %67 = vector.load %arg28[%c0_50, %c0_51] : memref<128x72xf32, #tpu.memory_space<vmem>>, vector<128x8xf32>
    tpu.vector_store %arg28[%c0_50, %c0_51], %66 {strides = array<i32>} : memref<128x72xf32, #tpu.memory_space<vmem>>, vector<128x8xf32>,
    %c0_52 = arith.constant 0 : index
    %c0_53 = arith.constant 0 : index
    %c1_54 = arith.constant 1 : index
    %c0_55 = arith.constant 0 : index
    %68 = tpu.strided_load %arg27[%c0_52, %c0_53, %c1_54, %c0_55] {strides = array<i32: 1, 2, 2, 1>} : memref<2x18x18x8xf32, #tpu.memory_space<vmem>>, vector<2x8x8x8xf32>
    %69 = vector.shape_cast %68 : vector<2x8x8x8xf32> to vector<128x8xf32>
    %c0_56 = arith.constant 0 : index
    %c8_57 = arith.constant 8 : index
    %70 = vector.load %arg28[%c0_56, %c8_57] : memref<128x72xf32, #tpu.memory_space<vmem>>, vector<128x8xf32>
    tpu.vector_store %arg28[%c0_56, %c8_57], %69 {strides = array<i32>} : memref<128x72xf32, #tpu.memory_space<vmem>>, vector<128x8xf32>,
    %c0_58 = arith.constant 0 : index
    %c0_59 = arith.constant 0 : index
    %c2 = arith.constant 2 : index
    %c0_60 = arith.constant 0 : index
    %71 = tpu.strided_load %arg27[%c0_58, %c0_59, %c2, %c0_60] {strides = array<i32: 1, 2, 2, 1>} : memref<2x18x18x8xf32, #tpu.memory_space<vmem>>, vector<2x8x8x8xf32>
    %72 = vector.shape_cast %71 : vector<2x8x8x8xf32> to vector<128x8xf32>
    %c0_61 = arith.constant 0 : index
    %c16 = arith.constant 16 : index
    %73 = vector.load %arg28[%c0_61, %c16] : memref<128x72xf32, #tpu.memory_space<vmem>>, vector<128x8xf32>
    tpu.vector_store %arg28[%c0_61, %c16], %72 {strides = array<i32>} : memref<128x72xf32, #tpu.memory_space<vmem>>, vector<128x8xf32>,
    %c0_62 = arith.constant 0 : index
    %c1_63 = arith.constant 1 : index
    %c0_64 = arith.constant 0 : index
    %c0_65 = arith.constant 0 : index
    %74 = tpu.strided_load %arg27[%c0_62, %c1_63, %c0_64, %c0_65] {strides = array<i32: 1, 2, 2, 1>} : memref<2x18x18x8xf32, #tpu.memory_space<vmem>>, vector<2x8x8x8xf32>
    %75 = vector.shape_cast %74 : vector<2x8x8x8xf32> to vector<128x8xf32>
    %c0_66 = arith.constant 0 : index
    %c24 = arith.constant 24 : index
    %76 = vector.load %arg28[%c0_66, %c24] : memref<128x72xf32, #tpu.memory_space<vmem>>, vector<128x8xf32>
    tpu.vector_store %arg28[%c0_66, %c24], %75 {strides = array<i32>} : memref<128x72xf32, #tpu.memory_space<vmem>>, vector<128x8xf32>,
    %c0_67 = arith.constant 0 : index
    %c1_68 = arith.constant 1 : index
    %c1_69 = arith.constant 1 : index
    %c0_70 = arith.constant 0 : index
    %77 = tpu.strided_load %arg27[%c0_67, %c1_68, %c1_69, %c0_70] {strides = array<i32: 1, 2, 2, 1>} : memref<2x18x18x8xf32, #tpu.memory_space<vmem>>, vector<2x8x8x8xf32>
    %78 = vector.shape_cast %77 : vector<2x8x8x8xf32> to vector<128x8xf32>
    %c0_71 = arith.constant 0 : index
    %c32 = arith.constant 32 : index
    %79 = vector.load %arg28[%c0_71, %c32] : memref<128x72xf32, #tpu.memory_space<vmem>>, vector<128x8xf32>
    tpu.vector_store %arg28[%c0_71, %c32], %78 {strides = array<i32>} : memref<128x72xf32, #tpu.memory_space<vmem>>, vector<128x8xf32>,
    %c0_72 = arith.constant 0 : index
    %c1_73 = arith.constant 1 : index
    %c2_74 = arith.constant 2 : index
    %c0_75 = arith.constant 0 : index
    %80 = tpu.strided_load %arg27[%c0_72, %c1_73, %c2_74, %c0_75] {strides = array<i32: 1, 2, 2, 1>} : memref<2x18x18x8xf32, #tpu.memory_space<vmem>>, vector<2x8x8x8xf32>
    %81 = vector.shape_cast %80 : vector<2x8x8x8xf32> to vector<128x8xf32>
    %c0_76 = arith.constant 0 : index
    %c40 = arith.constant 40 : index
    %82 = vector.load %arg28[%c0_76, %c40] : memref<128x72xf32, #tpu.memory_space<vmem>>, vector<128x8xf32>
    tpu.vector_store %arg28[%c0_76, %c40], %81 {strides = array<i32>} : memref<128x72xf32, #tpu.memory_space<vmem>>, vector<128x8xf32>,
    %c0_77 = arith.constant 0 : index
    %c2_78 = arith.constant 2 : index
    %c0_79 = arith.constant 0 : index
    %c0_80 = arith.constant 0 : index
    %83 = tpu.strided_load %arg27[%c0_77, %c2_78, %c0_79, %c0_80] {strides = array<i32: 1, 2, 2, 1>} : memref<2x18x18x8xf32, #tpu.memory_space<vmem>>, vector<2x8x8x8xf32>
    %84 = vector.shape_cast %83 : vector<2x8x8x8xf32> to vector<128x8xf32>
    %c0_81 = arith.constant 0 : index
    %c48 = arith.constant 48 : index
    %85 = vector.load %arg28[%c0_81, %c48] : memref<128x72xf32, #tpu.memory_space<vmem>>, vector<128x8xf32>
    tpu.vector_store %arg28[%c0_81, %c48], %84 {strides = array<i32>} : memref<128x72xf32, #tpu.memory_space<vmem>>, vector<128x8xf32>,
    %c0_82 = arith.constant 0 : index
    %c2_83 = arith.constant 2 : index
    %c1_84 = arith.constant 1 : index
    %c0_85 = arith.constant 0 : index
    %86 = tpu.strided_load %arg27[%c0_82, %c2_83, %c1_84, %c0_85] {strides = array<i32: 1, 2, 2, 1>} : memref<2x18x18x8xf32, #tpu.memory_space<vmem>>, vector<2x8x8x8xf32>
    %87 = vector.shape_cast %86 : vector<2x8x8x8xf32> to vector<128x8xf32>
    %c0_86 = arith.constant 0 : index
    %c56 = arith.constant 56 : index
    %88 = vector.load %arg28[%c0_86, %c56] : memref<128x72xf32, #tpu.memory_space<vmem>>, vector<128x8xf32>
    tpu.vector_store %arg28[%c0_86, %c56], %87 {strides = array<i32>} : memref<128x72xf32, #tpu.memory_space<vmem>>, vector<128x8xf32>,
    %c0_87 = arith.constant 0 : index
    %c2_88 = arith.constant 2 : index
    %c2_89 = arith.constant 2 : index
    %c0_90 = arith.constant 0 : index
    %89 = tpu.strided_load %arg27[%c0_87, %c2_88, %c2_89, %c0_90] {strides = array<i32: 1, 2, 2, 1>} : memref<2x18x18x8xf32, #tpu.memory_space<vmem>>, vector<2x8x8x8xf32>
    %90 = vector.shape_cast %89 : vector<2x8x8x8xf32> to vector<128x8xf32>
    %c0_91 = arith.constant 0 : index
    %c64 = arith.constant 64 : index
    %91 = vector.load %arg28[%c0_91, %c64] : memref<128x72xf32, #tpu.memory_space<vmem>>, vector<128x8xf32>
    tpu.vector_store %arg28[%c0_91, %c64], %90 {strides = array<i32>} : memref<128x72xf32, #tpu.memory_space<vmem>>, vector<128x8xf32>,
    %c0_92 = arith.constant 0 : index
    %c0_93 = arith.constant 0 : index
    %92 = vector.load %arg28[%c0_92, %c0_93] : memref<128x72xf32, #tpu.memory_space<vmem>>, vector<128x72xf32>
    %93 = arith.truncf %92 : vector<128x72xf32> to vector<128x72xbf16>
    %c0_94 = arith.constant 0 : index
    %c0_95 = arith.constant 0 : index
    %94 = vector.load %arg4[%c0_94, %c0_95] : memref<72x8xbf16, #tpu.memory_space<vmem>>, vector<72x8xbf16>
    %cst_96 = arith.constant dense<0.000000e+00> : vector<128x8xf32>
    %95 = tpu.matmul %93, %94, %cst_96 {dimension_numbers = #tpu.dot_dimension_numbers<[1], [0], [0], [1], [0, 0, 1, 1], [], []>} : vector<128x72xbf16>, vector<72x8xbf16>, vector<128x8xf32> -> vector<128x8xf32>
    %c0_97 = arith.constant 0 : index
    %c0_98 = arith.constant 0 : index
    %96 = vector.load %arg5[%c0_97, %c0_98] : memref<1x8xf32, #tpu.memory_space<vmem>>, vector<1x8xf32>
    %97 = vector.broadcast %96 : vector<1x8xf32> to vector<128x8xf32>
    %98 = arith.mulf %95, %97 : vector<128x8xf32>
    %c0_99 = arith.constant 0 : index
    %c0_100 = arith.constant 0 : index
    %99 = vector.load %arg6[%c0_99, %c0_100] : memref<1x8xf32, #tpu.memory_space<vmem>>, vector<1x8xf32>
    %100 = vector.broadcast %99 : vector<1x8xf32> to vector<128x8xf32>
    %101 = arith.addf %98, %100 : vector<128x8xf32>
    %cst_101 = arith.constant 0.000000e+00 : f32
    %102 = vector.broadcast %cst_101 : f32 to vector<128x8xf32>
    %103 = arith.maximumf %101, %102 : vector<128x8xf32>
    %104 = arith.truncf %103 : vector<128x8xf32> to vector<128x8xbf16>
    %c0_102 = arith.constant 0 : index
    %c0_103 = arith.constant 0 : index
    %105 = vector.load %arg7[%c0_102, %c0_103] : memref<8x128xbf16, #tpu.memory_space<vmem>>, vector<8x128xbf16>
    %cst_104 = arith.constant dense<0.000000e+00> : vector<128x128xf32>
    %106 = tpu.matmul %104, %105, %cst_104 {dimension_numbers = #tpu.dot_dimension_numbers<[1], [0], [0], [1], [0, 0, 1, 1], [], []>} : vector<128x8xbf16>, vector<8x128xbf16>, vector<128x128xf32> -> vector<128x128xf32>
    %c0_105 = arith.constant 0 : index
    %c0_106 = arith.constant 0 : index
    %107 = vector.load %arg8[%c0_105, %c0_106] : memref<1x128xf32, #tpu.memory_space<vmem>>, vector<1x128xf32>
    %108 = vector.broadcast %107 : vector<1x128xf32> to vector<128x128xf32>
    %109 = arith.mulf %106, %108 : vector<128x128xf32>
    %c0_107 = arith.constant 0 : index
    %c0_108 = arith.constant 0 : index
    %110 = vector.load %arg9[%c0_107, %c0_108] : memref<1x128xf32, #tpu.memory_space<vmem>>, vector<1x128xf32>
    %111 = vector.broadcast %110 : vector<1x128xf32> to vector<128x128xf32>
    %112 = arith.addf %109, %111 : vector<128x128xf32>
    %113 = vector.shape_cast %112 : vector<128x128xf32> to vector<2x64x128xf32>
    %cst_109 = arith.constant dense<0.000000e+00> : vector<2x128xf32>
    %114 = vector.multi_reduction <add>, %113, %cst_109 [1] : vector<2x64x128xf32> to vector<2x128xf32>
    %cst_110 = arith.constant 6.400000e+01 : f32
    %115 = vector.broadcast %cst_110 : f32 to vector<2x128xf32>
    %116 = arith.divf %114, %115 : vector<2x128xf32>
    %117 = arith.truncf %116 : vector<2x128xf32> to vector<2x128xbf16>
    %c0_111 = arith.constant 0 : index
    %c0_112 = arith.constant 0 : index
    %118 = vector.load %arg10[%c0_111, %c0_112] : memref<128x2xbf16, #tpu.memory_space<vmem>>, vector<128x2xbf16>
    %cst_113 = arith.constant dense<0.000000e+00> : vector<2x2xf32>
    %119 = tpu.matmul %117, %118, %cst_113 {dimension_numbers = #tpu.dot_dimension_numbers<[1], [0], [0], [1], [0, 0, 1, 1], [], []>} : vector<2x128xbf16>, vector<128x2xbf16>, vector<2x2xf32> -> vector<2x2xf32>
    %cst_114 = arith.constant 0.000000e+00 : f32
    %120 = vector.broadcast %cst_114 : f32 to vector<2x2xf32>
    %121 = arith.maximumf %119, %120 : vector<2x2xf32>
    %122 = arith.truncf %121 : vector<2x2xf32> to vector<2x2xbf16>
    %c0_115 = arith.constant 0 : index
    %c0_116 = arith.constant 0 : index
    %123 = vector.load %arg11[%c0_115, %c0_116] : memref<2x128xbf16, #tpu.memory_space<vmem>>, vector<2x128xbf16>
    %cst_117 = arith.constant dense<0.000000e+00> : vector<2x128xf32>
    %124 = tpu.matmul %122, %123, %cst_117 {dimension_numbers = #tpu.dot_dimension_numbers<[1], [0], [0], [1], [0, 0, 1, 1], [], []>} : vector<2x2xbf16>, vector<2x128xbf16>, vector<2x128xf32> -> vector<2x128xf32>
    %125 = arith.negf %124 : vector<2x128xf32>
    %126 = math.exp %125 : vector<2x128xf32>
    %cst_118 = arith.constant 1.000000e+00 : f32
    %127 = vector.broadcast %cst_118 : f32 to vector<2x128xf32>
    %128 = arith.addf %127, %126 : vector<2x128xf32>
    %129 = arith.divf %127, %128 : vector<2x128xf32>
    %130 = vector.shape_cast %129 : vector<2x128xf32> to vector<2x1x128xf32>
    %131 = vector.broadcast %130 : vector<2x1x128xf32> to vector<2x64x128xf32>
    %132 = arith.mulf %113, %131 : vector<2x64x128xf32>
    %133 = vector.shape_cast %132 : vector<2x64x128xf32> to vector<128x128xf32>
    %c0_119 = arith.constant 0 : index
    %c0_120 = arith.constant 0 : index
    %c0_121 = arith.constant 0 : index
    %c0_122 = arith.constant 0 : index
    %134 = tpu.strided_load %arg0[%c0_119, %c0_120, %c0_121, %c0_122] {strides = array<i32: 1, 2, 2, 1>} : memref<2x16x16x128xf32, #tpu.memory_space<vmem>>, vector<2x8x8x128xf32>
    %135 = vector.shape_cast %134 : vector<2x8x8x128xf32> to vector<128x128xf32>
    %136 = arith.truncf %135 : vector<128x128xf32> to vector<128x128xbf16>
    %c0_123 = arith.constant 0 : index
    %c0_124 = arith.constant 0 : index
    %137 = vector.load %arg12[%c0_123, %c0_124] : memref<128x128xbf16, #tpu.memory_space<vmem>>, vector<128x128xbf16>
    %cst_125 = arith.constant dense<0.000000e+00> : vector<128x128xf32>
    %138 = tpu.matmul %136, %137, %cst_125 {dimension_numbers = #tpu.dot_dimension_numbers<[1], [0], [0], [1], [0, 0, 1, 1], [], []>} : vector<128x128xbf16>, vector<128x128xbf16>, vector<128x128xf32> -> vector<128x128xf32>
    %c0_126 = arith.constant 0 : index
    %c0_127 = arith.constant 0 : index
    %139 = vector.load %arg13[%c0_126, %c0_127] : memref<1x128xf32, #tpu.memory_space<vmem>>, vector<1x128xf32>
    %140 = vector.broadcast %139 : vector<1x128xf32> to vector<128x128xf32>
    %141 = arith.mulf %138, %140 : vector<128x128xf32>
    %c0_128 = arith.constant 0 : index
    %c0_129 = arith.constant 0 : index
    %142 = vector.load %arg14[%c0_128, %c0_129] : memref<1x128xf32, #tpu.memory_space<vmem>>, vector<1x128xf32>
    %143 = vector.broadcast %142 : vector<1x128xf32> to vector<128x128xf32>
    %144 = arith.addf %141, %143 : vector<128x128xf32>
    %145 = arith.addf %133, %144 : vector<128x128xf32>
    %cst_130 = arith.constant 0.000000e+00 : f32
    %146 = vector.broadcast %cst_130 : f32 to vector<128x128xf32>
    %147 = arith.maximumf %145, %146 : vector<128x128xf32>
    %148 = vector.shape_cast %147 : vector<128x128xf32> to vector<2x8x8x128xf32>
    %c0_131 = arith.constant 0 : index
    %c0_132 = arith.constant 0 : index
    %c0_133 = arith.constant 0 : index
    %c0_134 = arith.constant 0 : index
    %149 = vector.load %arg31[%c0_131, %c0_132, %c0_133, %c0_134] : memref<2x8x8x128xf32, #tpu.memory_space<vmem>>, vector<2x8x8x128xf32>
    tpu.vector_store %arg31[%c0_131, %c0_132, %c0_133, %c0_134], %148 {strides = array<i32>} : memref<2x8x8x128xf32, #tpu.memory_space<vmem>>, vector<2x8x8x128xf32>,
    %cst_135 = arith.constant 0.000000e+00 : f32
    %150 = vector.broadcast %cst_135 : f32 to vector<2x10x10x8xf32>
    %c0_136 = arith.constant 0 : index
    %c0_137 = arith.constant 0 : index
    %c0_138 = arith.constant 0 : index
    %c0_139 = arith.constant 0 : index
    %151 = vector.load %arg29[%c0_136, %c0_137, %c0_138, %c0_139] : memref<2x10x10x8xf32, #tpu.memory_space<vmem>>, vector<2x10x10x8xf32>
    tpu.vector_store %arg29[%c0_136, %c0_137, %c0_138, %c0_139], %150 {strides = array<i32>} : memref<2x10x10x8xf32, #tpu.memory_space<vmem>>, vector<2x10x10x8xf32>,
    %c0_140 = arith.constant 0 : index
    %c0_141 = arith.constant 0 : index
    %152 = vector.load %arg15[%c0_140, %c0_141] : memref<128x8xbf16, #tpu.memory_space<vmem>>, vector<128x8xbf16>
    %c0_142 = arith.constant 0 : index
    %c0_143 = arith.constant 0 : index
    %153 = vector.load %arg16[%c0_142, %c0_143] : memref<1x8xf32, #tpu.memory_space<vmem>>, vector<1x8xf32>
    %c0_144 = arith.constant 0 : index
    %c0_145 = arith.constant 0 : index
    %154 = vector.load %arg17[%c0_144, %c0_145] : memref<1x8xf32, #tpu.memory_space<vmem>>, vector<1x8xf32>
    %c0_146 = arith.constant 0 : index
    %c0_147 = arith.constant 0 : index
    %c0_148 = arith.constant 0 : index
    %c0_149 = arith.constant 0 : index
    %155 = vector.load %arg31[%c0_146, %c0_147, %c0_148, %c0_149] : memref<2x8x8x128xf32, #tpu.memory_space<vmem>>, vector<1x8x8x128xf32>
    %156 = vector.shape_cast %155 : vector<1x8x8x128xf32> to vector<8x8x128xf32>
    %157 = vector.shape_cast %156 : vector<8x8x128xf32> to vector<64x128xf32>
    %158 = arith.truncf %157 : vector<64x128xf32> to vector<64x128xbf16>
    %cst_150 = arith.constant dense<0.000000e+00> : vector<64x8xf32>
    %159 = tpu.matmul %158, %152, %cst_150 {dimension_numbers = #tpu.dot_dimension_numbers<[1], [0], [0], [1], [0, 0, 1, 1], [], []>} : vector<64x128xbf16>, vector<128x8xbf16>, vector<64x8xf32> -> vector<64x8xf32>
    %160 = vector.broadcast %153 : vector<1x8xf32> to vector<64x8xf32>
    %161 = arith.mulf %159, %160 : vector<64x8xf32>
    %162 = vector.broadcast %154 : vector<1x8xf32> to vector<64x8xf32>
    %163 = arith.addf %161, %162 : vector<64x8xf32>
    %cst_151 = arith.constant 0.000000e+00 : f32
    %164 = vector.broadcast %cst_151 : f32 to vector<64x8xf32>
    %165 = arith.maximumf %163, %164 : vector<64x8xf32>
    %166 = vector.shape_cast %165 : vector<64x8xf32> to vector<8x8x8xf32>
    %c0_152 = arith.constant 0 : index
    %c1_153 = arith.constant 1 : index
    %c1_154 = arith.constant 1 : index
    %c0_155 = arith.constant 0 : index
    %167 = vector.load %arg29[%c0_152, %c1_153, %c1_154, %c0_155] : memref<2x10x10x8xf32, #tpu.memory_space<vmem>>, vector<1x8x8x8xf32>
    %168 = vector.shape_cast %167 : vector<1x8x8x8xf32> to vector<8x8x8xf32>
    %169 = vector.shape_cast %166 : vector<8x8x8xf32> to vector<1x8x8x8xf32>
    tpu.vector_store %arg29[%c0_152, %c1_153, %c1_154, %c0_155], %169 {strides = array<i32>} : memref<2x10x10x8xf32, #tpu.memory_space<vmem>>, vector<1x8x8x8xf32>,
    %c1_156 = arith.constant 1 : index
    %c0_157 = arith.constant 0 : index
    %c0_158 = arith.constant 0 : index
    %c0_159 = arith.constant 0 : index
    %170 = vector.load %arg31[%c1_156, %c0_157, %c0_158, %c0_159] : memref<2x8x8x128xf32, #tpu.memory_space<vmem>>, vector<1x8x8x128xf32>
    %171 = vector.shape_cast %170 : vector<1x8x8x128xf32> to vector<8x8x128xf32>
    %172 = vector.shape_cast %171 : vector<8x8x128xf32> to vector<64x128xf32>
    %173 = arith.truncf %172 : vector<64x128xf32> to vector<64x128xbf16>
    %cst_160 = arith.constant dense<0.000000e+00> : vector<64x8xf32>
    %174 = tpu.matmul %173, %152, %cst_160 {dimension_numbers = #tpu.dot_dimension_numbers<[1], [0], [0], [1], [0, 0, 1, 1], [], []>} : vector<64x128xbf16>, vector<128x8xbf16>, vector<64x8xf32> -> vector<64x8xf32>
    %175 = vector.broadcast %153 : vector<1x8xf32> to vector<64x8xf32>
    %176 = arith.mulf %174, %175 : vector<64x8xf32>
    %177 = vector.broadcast %154 : vector<1x8xf32> to vector<64x8xf32>
    %178 = arith.addf %176, %177 : vector<64x8xf32>
    %cst_161 = arith.constant 0.000000e+00 : f32
    %179 = vector.broadcast %cst_161 : f32 to vector<64x8xf32>
    %180 = arith.maximumf %178, %179 : vector<64x8xf32>
    %181 = vector.shape_cast %180 : vector<64x8xf32> to vector<8x8x8xf32>
    %c1_162 = arith.constant 1 : index
    %c1_163 = arith.constant 1 : index
    %c1_164 = arith.constant 1 : index
    %c0_165 = arith.constant 0 : index
    %182 = vector.load %arg29[%c1_162, %c1_163, %c1_164, %c0_165] : memref<2x10x10x8xf32, #tpu.memory_space<vmem>>, vector<1x8x8x8xf32>
    %183 = vector.shape_cast %182 : vector<1x8x8x8xf32> to vector<8x8x8xf32>
    %184 = vector.shape_cast %181 : vector<8x8x8xf32> to vector<1x8x8x8xf32>
    tpu.vector_store %arg29[%c1_162, %c1_163, %c1_164, %c0_165], %184 {strides = array<i32>} : memref<2x10x10x8xf32, #tpu.memory_space<vmem>>, vector<1x8x8x8xf32>,
    %c0_166 = arith.constant 0 : index
    %c0_167 = arith.constant 0 : index
    %c0_168 = arith.constant 0 : index
    %c0_169 = arith.constant 0 : index
    %185 = vector.load %arg29[%c0_166, %c0_167, %c0_168, %c0_169] : memref<2x10x10x8xf32, #tpu.memory_space<vmem>>, vector<2x8x8x8xf32>
    %186 = vector.shape_cast %185 : vector<2x8x8x8xf32> to vector<128x8xf32>
    %c0_170 = arith.constant 0 : index
    %c0_171 = arith.constant 0 : index
    %187 = vector.load %arg30[%c0_170, %c0_171] : memref<128x72xf32, #tpu.memory_space<vmem>>, vector<128x8xf32>
    tpu.vector_store %arg30[%c0_170, %c0_171], %186 {strides = array<i32>} : memref<128x72xf32, #tpu.memory_space<vmem>>, vector<128x8xf32>,
    %c0_172 = arith.constant 0 : index
    %c0_173 = arith.constant 0 : index
    %c1_174 = arith.constant 1 : index
    %c0_175 = arith.constant 0 : index
    %188 = vector.load %arg29[%c0_172, %c0_173, %c1_174, %c0_175] : memref<2x10x10x8xf32, #tpu.memory_space<vmem>>, vector<2x8x8x8xf32>
    %189 = vector.shape_cast %188 : vector<2x8x8x8xf32> to vector<128x8xf32>
    %c0_176 = arith.constant 0 : index
    %c8_177 = arith.constant 8 : index
    %190 = vector.load %arg30[%c0_176, %c8_177] : memref<128x72xf32, #tpu.memory_space<vmem>>, vector<128x8xf32>
    tpu.vector_store %arg30[%c0_176, %c8_177], %189 {strides = array<i32>} : memref<128x72xf32, #tpu.memory_space<vmem>>, vector<128x8xf32>,
    %c0_178 = arith.constant 0 : index
    %c0_179 = arith.constant 0 : index
    %c2_180 = arith.constant 2 : index
    %c0_181 = arith.constant 0 : index
    %191 = vector.load %arg29[%c0_178, %c0_179, %c2_180, %c0_181] : memref<2x10x10x8xf32, #tpu.memory_space<vmem>>, vector<2x8x8x8xf32>
    %192 = vector.shape_cast %191 : vector<2x8x8x8xf32> to vector<128x8xf32>
    %c0_182 = arith.constant 0 : index
    %c16_183 = arith.constant 16 : index
    %193 = vector.load %arg30[%c0_182, %c16_183] : memref<128x72xf32, #tpu.memory_space<vmem>>, vector<128x8xf32>
    tpu.vector_store %arg30[%c0_182, %c16_183], %192 {strides = array<i32>} : memref<128x72xf32, #tpu.memory_space<vmem>>, vector<128x8xf32>,
    %c0_184 = arith.constant 0 : index
    %c1_185 = arith.constant 1 : index
    %c0_186 = arith.constant 0 : index
    %c0_187 = arith.constant 0 : index
    %194 = vector.load %arg29[%c0_184, %c1_185, %c0_186, %c0_187] : memref<2x10x10x8xf32, #tpu.memory_space<vmem>>, vector<2x8x8x8xf32>
    %195 = vector.shape_cast %194 : vector<2x8x8x8xf32> to vector<128x8xf32>
    %c0_188 = arith.constant 0 : index
    %c24_189 = arith.constant 24 : index
    %196 = vector.load %arg30[%c0_188, %c24_189] : memref<128x72xf32, #tpu.memory_space<vmem>>, vector<128x8xf32>
    tpu.vector_store %arg30[%c0_188, %c24_189], %195 {strides = array<i32>} : memref<128x72xf32, #tpu.memory_space<vmem>>, vector<128x8xf32>,
    %c0_190 = arith.constant 0 : index
    %c1_191 = arith.constant 1 : index
    %c1_192 = arith.constant 1 : index
    %c0_193 = arith.constant 0 : index
    %197 = vector.load %arg29[%c0_190, %c1_191, %c1_192, %c0_193] : memref<2x10x10x8xf32, #tpu.memory_space<vmem>>, vector<2x8x8x8xf32>
    %198 = vector.shape_cast %197 : vector<2x8x8x8xf32> to vector<128x8xf32>
    %c0_194 = arith.constant 0 : index
    %c32_195 = arith.constant 32 : index
    %199 = vector.load %arg30[%c0_194, %c32_195] : memref<128x72xf32, #tpu.memory_space<vmem>>, vector<128x8xf32>
    tpu.vector_store %arg30[%c0_194, %c32_195], %198 {strides = array<i32>} : memref<128x72xf32, #tpu.memory_space<vmem>>, vector<128x8xf32>,
    %c0_196 = arith.constant 0 : index
    %c1_197 = arith.constant 1 : index
    %c2_198 = arith.constant 2 : index
    %c0_199 = arith.constant 0 : index
    %200 = vector.load %arg29[%c0_196, %c1_197, %c2_198, %c0_199] : memref<2x10x10x8xf32, #tpu.memory_space<vmem>>, vector<2x8x8x8xf32>
    %201 = vector.shape_cast %200 : vector<2x8x8x8xf32> to vector<128x8xf32>
    %c0_200 = arith.constant 0 : index
    %c40_201 = arith.constant 40 : index
    %202 = vector.load %arg30[%c0_200, %c40_201] : memref<128x72xf32, #tpu.memory_space<vmem>>, vector<128x8xf32>
    tpu.vector_store %arg30[%c0_200, %c40_201], %201 {strides = array<i32>} : memref<128x72xf32, #tpu.memory_space<vmem>>, vector<128x8xf32>,
    %c0_202 = arith.constant 0 : index
    %c2_203 = arith.constant 2 : index
    %c0_204 = arith.constant 0 : index
    %c0_205 = arith.constant 0 : index
    %203 = vector.load %arg29[%c0_202, %c2_203, %c0_204, %c0_205] : memref<2x10x10x8xf32, #tpu.memory_space<vmem>>, vector<2x8x8x8xf32>
    %204 = vector.shape_cast %203 : vector<2x8x8x8xf32> to vector<128x8xf32>
    %c0_206 = arith.constant 0 : index
    %c48_207 = arith.constant 48 : index
    %205 = vector.load %arg30[%c0_206, %c48_207] : memref<128x72xf32, #tpu.memory_space<vmem>>, vector<128x8xf32>
    tpu.vector_store %arg30[%c0_206, %c48_207], %204 {strides = array<i32>} : memref<128x72xf32, #tpu.memory_space<vmem>>, vector<128x8xf32>,
    %c0_208 = arith.constant 0 : index
    %c2_209 = arith.constant 2 : index
    %c1_210 = arith.constant 1 : index
    %c0_211 = arith.constant 0 : index
    %206 = vector.load %arg29[%c0_208, %c2_209, %c1_210, %c0_211] : memref<2x10x10x8xf32, #tpu.memory_space<vmem>>, vector<2x8x8x8xf32>
    %207 = vector.shape_cast %206 : vector<2x8x8x8xf32> to vector<128x8xf32>
    %c0_212 = arith.constant 0 : index
    %c56_213 = arith.constant 56 : index
    %208 = vector.load %arg30[%c0_212, %c56_213] : memref<128x72xf32, #tpu.memory_space<vmem>>, vector<128x8xf32>
    tpu.vector_store %arg30[%c0_212, %c56_213], %207 {strides = array<i32>} : memref<128x72xf32, #tpu.memory_space<vmem>>, vector<128x8xf32>,
    %c0_214 = arith.constant 0 : index
    %c2_215 = arith.constant 2 : index
    %c2_216 = arith.constant 2 : index
    %c0_217 = arith.constant 0 : index
    %209 = vector.load %arg29[%c0_214, %c2_215, %c2_216, %c0_217] : memref<2x10x10x8xf32, #tpu.memory_space<vmem>>, vector<2x8x8x8xf32>
    %210 = vector.shape_cast %209 : vector<2x8x8x8xf32> to vector<128x8xf32>
    %c0_218 = arith.constant 0 : index
    %c64_219 = arith.constant 64 : index
    %211 = vector.load %arg30[%c0_218, %c64_219] : memref<128x72xf32, #tpu.memory_space<vmem>>, vector<128x8xf32>
    tpu.vector_store %arg30[%c0_218, %c64_219], %210 {strides = array<i32>} : memref<128x72xf32, #tpu.memory_space<vmem>>, vector<128x8xf32>,
    %c0_220 = arith.constant 0 : index
    %c0_221 = arith.constant 0 : index
    %212 = vector.load %arg30[%c0_220, %c0_221] : memref<128x72xf32, #tpu.memory_space<vmem>>, vector<128x72xf32>
    %213 = arith.truncf %212 : vector<128x72xf32> to vector<128x72xbf16>
    %c0_222 = arith.constant 0 : index
    %c0_223 = arith.constant 0 : index
    %214 = vector.load %arg18[%c0_222, %c0_223] : memref<72x8xbf16, #tpu.memory_space<vmem>>, vector<72x8xbf16>
    %cst_224 = arith.constant dense<0.000000e+00> : vector<128x8xf32>
    %215 = tpu.matmul %213, %214, %cst_224 {dimension_numbers = #tpu.dot_dimension_numbers<[1], [0], [0], [1], [0, 0, 1, 1], [], []>} : vector<128x72xbf16>, vector<72x8xbf16>, vector<128x8xf32> -> vector<128x8xf32>
    %c0_225 = arith.constant 0 : index
    %c0_226 = arith.constant 0 : index
    %216 = vector.load %arg19[%c0_225, %c0_226] : memref<1x8xf32, #tpu.memory_space<vmem>>, vector<1x8xf32>
    %217 = vector.broadcast %216 : vector<1x8xf32> to vector<128x8xf32>
    %218 = arith.mulf %215, %217 : vector<128x8xf32>
    %c0_227 = arith.constant 0 : index
    %c0_228 = arith.constant 0 : index
    %219 = vector.load %arg20[%c0_227, %c0_228] : memref<1x8xf32, #tpu.memory_space<vmem>>, vector<1x8xf32>
    %220 = vector.broadcast %219 : vector<1x8xf32> to vector<128x8xf32>
    %221 = arith.addf %218, %220 : vector<128x8xf32>
    %cst_229 = arith.constant 0.000000e+00 : f32
    %222 = vector.broadcast %cst_229 : f32 to vector<128x8xf32>
    %223 = arith.maximumf %221, %222 : vector<128x8xf32>
    %224 = arith.truncf %223 : vector<128x8xf32> to vector<128x8xbf16>
    %c0_230 = arith.constant 0 : index
    %c0_231 = arith.constant 0 : index
    %225 = vector.load %arg21[%c0_230, %c0_231] : memref<8x128xbf16, #tpu.memory_space<vmem>>, vector<8x128xbf16>
    %cst_232 = arith.constant dense<0.000000e+00> : vector<128x128xf32>
    %226 = tpu.matmul %224, %225, %cst_232 {dimension_numbers = #tpu.dot_dimension_numbers<[1], [0], [0], [1], [0, 0, 1, 1], [], []>} : vector<128x8xbf16>, vector<8x128xbf16>, vector<128x128xf32> -> vector<128x128xf32>
    %c0_233 = arith.constant 0 : index
    %c0_234 = arith.constant 0 : index
    %227 = vector.load %arg22[%c0_233, %c0_234] : memref<1x128xf32, #tpu.memory_space<vmem>>, vector<1x128xf32>
    %228 = vector.broadcast %227 : vector<1x128xf32> to vector<128x128xf32>
    %229 = arith.mulf %226, %228 : vector<128x128xf32>
    %c0_235 = arith.constant 0 : index
    %c0_236 = arith.constant 0 : index
    %230 = vector.load %arg23[%c0_235, %c0_236] : memref<1x128xf32, #tpu.memory_space<vmem>>, vector<1x128xf32>
    %231 = vector.broadcast %230 : vector<1x128xf32> to vector<128x128xf32>
    %232 = arith.addf %229, %231 : vector<128x128xf32>
    %233 = vector.shape_cast %232 : vector<128x128xf32> to vector<2x64x128xf32>
    %cst_237 = arith.constant dense<0.000000e+00> : vector<2x128xf32>
    %234 = vector.multi_reduction <add>, %233, %cst_237 [1] : vector<2x64x128xf32> to vector<2x128xf32>
    %cst_238 = arith.constant 6.400000e+01 : f32
    %235 = vector.broadcast %cst_238 : f32 to vector<2x128xf32>
    %236 = arith.divf %234, %235 : vector<2x128xf32>
    %237 = arith.truncf %236 : vector<2x128xf32> to vector<2x128xbf16>
    %c0_239 = arith.constant 0 : index
    %c0_240 = arith.constant 0 : index
    %238 = vector.load %arg24[%c0_239, %c0_240] : memref<128x2xbf16, #tpu.memory_space<vmem>>, vector<128x2xbf16>
    %cst_241 = arith.constant dense<0.000000e+00> : vector<2x2xf32>
    %239 = tpu.matmul %237, %238, %cst_241 {dimension_numbers = #tpu.dot_dimension_numbers<[1], [0], [0], [1], [0, 0, 1, 1], [], []>} : vector<2x128xbf16>, vector<128x2xbf16>, vector<2x2xf32> -> vector<2x2xf32>
    %cst_242 = arith.constant 0.000000e+00 : f32
    %240 = vector.broadcast %cst_242 : f32 to vector<2x2xf32>
    %241 = arith.maximumf %239, %240 : vector<2x2xf32>
    %242 = arith.truncf %241 : vector<2x2xf32> to vector<2x2xbf16>
    %c0_243 = arith.constant 0 : index
    %c0_244 = arith.constant 0 : index
    %243 = vector.load %arg25[%c0_243, %c0_244] : memref<2x128xbf16, #tpu.memory_space<vmem>>, vector<2x128xbf16>
    %cst_245 = arith.constant dense<0.000000e+00> : vector<2x128xf32>
    %244 = tpu.matmul %242, %243, %cst_245 {dimension_numbers = #tpu.dot_dimension_numbers<[1], [0], [0], [1], [0, 0, 1, 1], [], []>} : vector<2x2xbf16>, vector<2x128xbf16>, vector<2x128xf32> -> vector<2x128xf32>
    %245 = arith.negf %244 : vector<2x128xf32>
    %246 = math.exp %245 : vector<2x128xf32>
    %cst_246 = arith.constant 1.000000e+00 : f32
    %247 = vector.broadcast %cst_246 : f32 to vector<2x128xf32>
    %248 = arith.addf %247, %246 : vector<2x128xf32>
    %249 = arith.divf %247, %248 : vector<2x128xf32>
    %250 = vector.shape_cast %249 : vector<2x128xf32> to vector<2x1x128xf32>
    %251 = vector.broadcast %250 : vector<2x1x128xf32> to vector<2x64x128xf32>
    %252 = arith.mulf %233, %251 : vector<2x64x128xf32>
    %253 = vector.shape_cast %252 : vector<2x64x128xf32> to vector<128x128xf32>
    %c0_247 = arith.constant 0 : index
    %c0_248 = arith.constant 0 : index
    %c0_249 = arith.constant 0 : index
    %c0_250 = arith.constant 0 : index
    %254 = vector.load %arg31[%c0_247, %c0_248, %c0_249, %c0_250] : memref<2x8x8x128xf32, #tpu.memory_space<vmem>>, vector<2x8x8x128xf32>
    %255 = vector.shape_cast %254 : vector<2x8x8x128xf32> to vector<128x128xf32>
    %256 = arith.addf %253, %255 : vector<128x128xf32>
    %cst_251 = arith.constant 0.000000e+00 : f32
    %257 = vector.broadcast %cst_251 : f32 to vector<128x128xf32>
    %258 = arith.maximumf %256, %257 : vector<128x128xf32>
    %259 = vector.shape_cast %258 : vector<128x128xf32> to vector<2x8x8x128xf32>
    %c0_252 = arith.constant 0 : index
    %c0_253 = arith.constant 0 : index
    %c0_254 = arith.constant 0 : index
    %c0_255 = arith.constant 0 : index
    %260 = vector.load %arg26[%c0_252, %c0_253, %c0_254, %c0_255] : memref<2x8x8x128xf32, #tpu.memory_space<vmem>>, vector<2x8x8x128xf32>
    tpu.vector_store %arg26[%c0_252, %c0_253, %c0_254, %c0_255], %259 {strides = array<i32>} : memref<2x8x8x128xf32, #tpu.memory_space<vmem>>, vector<2x8x8x128xf32>,
    return
  }
}

</mosaic_0001>

<llo_original>
// kernel: tpu_custom_call.1
$region0: #{tpu_custom_call.1}
  #allocation0 [shape = 'u32[]', space=smem, size = 0x4, offset = 0x4, fixed_abs, tag = 'smem constant byte address 0x4 - core index']
  #allocation1 [shape = 'u32[144,128]{1,0:T(1,128)}', space=vmem, size = 0x12000, scoped, tag = 'internal scratch']
  #allocation2 [shape = 'f32[2,18,18,8]{3,2,1,0:T(8,128)}', space=vmem, size = 0x6c000, scoped, tag = 'scratch operand']
  #allocation3 [shape = 'f32[128,72]{1,0:T(8,128)}', space=vmem, size = 0x10000, scoped, tag = 'scratch operand']
  #allocation4 [shape = 'f32[2,10,10,8]{3,2,1,0:T(8,128)}', space=vmem, size = 0x28000, scoped, tag = 'scratch operand']
  #allocation5 [shape = 'f32[128,72]{1,0:T(8,128)}', space=vmem, size = 0x10000, scoped, tag = 'scratch operand']
  #allocation6 [shape = 'f32[2,8,8,128]{3,2,1,0:T(8,128)}', space=vmem, size = 0x10000, scoped, tag = 'scratch operand']
  %s0 = inlined_call_operand.hbm [shape: f32[2,16,16,128], index: 0, kind: input, shape index: {}]
  %s1 = inlined_call_operand.vmem [shape: bf16[128,8], index: 1, kind: input, shape index: {}]
  %s2 = inlined_call_operand.vmem [shape: f32[1,8], index: 2, kind: input, shape index: {}]
  %s3 = inlined_call_operand.vmem [shape: f32[1,8], index: 3, kind: input, shape index: {}]
  %s4 = inlined_call_operand.vmem [shape: bf16[72,8], index: 4, kind: input, shape index: {}]
  %s5 = inlined_call_operand.vmem [shape: f32[1,8], index: 5, kind: input, shape index: {}]
  %s6 = inlined_call_operand.vmem [shape: f32[1,8], index: 6, kind: input, shape index: {}]
  %s7 = inlined_call_operand.vmem [shape: bf16[8,128], index: 7, kind: input, shape index: {}]
  %s8 = inlined_call_operand.vmem [shape: f32[1,128], index: 8, kind: input, shape index: {}]
  %s9 = inlined_call_operand.vmem [shape: f32[1,128], index: 9, kind: input, shape index: {}]
  %s10 = inlined_call_operand.vmem [shape: bf16[128,2], index: 10, kind: input, shape index: {}]
  %s11 = inlined_call_operand.vmem [shape: bf16[2,128], index: 11, kind: input, shape index: {}]
  %s12 = inlined_call_operand.vmem [shape: bf16[128,128], index: 12, kind: input, shape index: {}]
  %s13 = inlined_call_operand.vmem [shape: f32[1,128], index: 13, kind: input, shape index: {}]
  %s14 = inlined_call_operand.vmem [shape: f32[1,128], index: 14, kind: input, shape index: {}]
  %s15 = inlined_call_operand.vmem [shape: bf16[128,8], index: 15, kind: input, shape index: {}]
  %s16 = inlined_call_operand.vmem [shape: f32[1,8], index: 16, kind: input, shape index: {}]
  %s17 = inlined_call_operand.vmem [shape: f32[1,8], index: 17, kind: input, shape index: {}]
  %s18 = inlined_call_operand.vmem [shape: bf16[72,8], index: 18, kind: input, shape index: {}]
  %s19 = inlined_call_operand.vmem [shape: f32[1,8], index: 19, kind: input, shape index: {}]
  %s20 = inlined_call_operand.vmem [shape: f32[1,8], index: 20, kind: input, shape index: {}]
  %s21 = inlined_call_operand.vmem [shape: bf16[8,128], index: 21, kind: input, shape index: {}]
  %s22 = inlined_call_operand.vmem [shape: f32[1,128], index: 22, kind: input, shape index: {}]
  %s23 = inlined_call_operand.vmem [shape: f32[1,128], index: 23, kind: input, shape index: {}]
  %s24 = inlined_call_operand.vmem [shape: bf16[128,2], index: 24, kind: input, shape index: {}]
  %s25 = inlined_call_operand.vmem [shape: bf16[2,128], index: 25, kind: input, shape index: {}]
  %s26 = inlined_call_operand.hbm [shape: f32[2,8,8,128], index: 26, kind: output, shape index: {}]
  %s27 = sld [smem:[#allocation0]]
  $region118: #{tpu_custom_call.1} parent=0
    _
  %s29 = ssub.s32 1, %s27
  %s30 = scalar_select 0, %s29, %s27
  $region1: #{tpu_custom_call.1} parent=0
    #allocation7 [shape = 'u8[262144]{0}', space=vmem, size = 0x40000, scoped, tag = 'input window, operand 0, single buffered']
    #allocation8 [shape = 's32[1]{0}', space=sflag, size = 0x4, scoped, tag = 'scoped memory for tpu_custom_call.1']
    #allocation9 [shape = 's32[1]{0}', space=sflag, size = 0x4, scoped, tag = 'scoped memory for tpu_custom_call.1']
    #allocation10 [shape = 'u8[65536]{0}', space=vmem, size = 0x10000, scoped, tag = 'output window, operand 0, single buffered']
    %31 = vsyncpa [#allocation8], 0
    %32 = vsyncpa [#allocation9], 0
    // Predicated region
    $region2: #{tpu_custom_call.1} parent=1 // pred_check
      _
    $region3: #{tpu_custom_call.1} parent=1 // pred_check_branch
      %34 = sbr.rel (0) target = $region5
    $region4: #{tpu_custom_call.1} parent=1 // pred_region
      %s36 = ssub.s32 8192, 8192
      %37 = vsyncadd [#allocation8], %s36
      %s38 = sshll.u32 [#allocation7], 4
      %s39 = int_to_ptr.vmem [resolvable:$true] %s38
      %44 = dma.hbm_to_vmem [thread:$0]  %s0, 8192, %s39, [#allocation8], 128, 128, 8
    $region5: #{tpu_custom_call.1} parent=1 // pred_fallthru
      _
    // Predicated region
    $region6: #{tpu_custom_call.1} parent=1 // pred_check
      _
    $region7: #{tpu_custom_call.1} parent=1 // pred_check_branch
      %46 = sbr.rel (0) target = $region9
    $region8: #{tpu_custom_call.1} parent=1 // pred_region
      _
    $region9: #{tpu_custom_call.1} parent=1 // pred_fallthru
      _
    // Predicated region
    $region10: #{tpu_custom_call.1} parent=1 // pred_check
      _
    $region11: #{tpu_custom_call.1} parent=1 // pred_check_branch
      %48 = sbr.rel (0) target = $region13
    $region12: #{tpu_custom_call.1} parent=1 // pred_region
      _
    $region13: #{tpu_custom_call.1} parent=1 // pred_fallthru
      _
    // Predicated region
    $region14: #{tpu_custom_call.1} parent=1 // pred_check
      _
    $region15: #{tpu_custom_call.1} parent=1 // pred_check_branch
      %50 = sbr.rel (0) target = $region17
    $region16: #{tpu_custom_call.1} parent=1 // pred_region
      _
    $region17: #{tpu_custom_call.1} parent=1 // pred_fallthru
      _
    // Predicated region
    $region18: #{tpu_custom_call.1} parent=1 // pred_check
      _
    $region19: #{tpu_custom_call.1} parent=1 // pred_check_branch
      %52 = sbr.rel (0) target = $region21
    $region20: #{tpu_custom_call.1} parent=1 // pred_region
      _
    $region21: #{tpu_custom_call.1} parent=1 // pred_fallthru
      _
    // Predicated region
    $region22: #{tpu_custom_call.1} parent=1 // pred_check
      _
    $region23: #{tpu_custom_call.1} parent=1 // pred_check_branch
      %54 = sbr.rel (0) target = $region25
    $region24: #{tpu_custom_call.1} parent=1 // pred_region
      _
    $region25: #{tpu_custom_call.1} parent=1 // pred_fallthru
      _
    // Predicated region
    $region26: #{tpu_custom_call.1} parent=1 // pred_check
      _
    $region27: #{tpu_custom_call.1} parent=1 // pred_check_branch
      %56 = sbr.rel (0) target = $region29
    $region28: #{tpu_custom_call.1} parent=1 // pred_region
      _
    $region29: #{tpu_custom_call.1} parent=1 // pred_fallthru
      _
    // Predicated region
    $region30: #{tpu_custom_call.1} parent=1 // pred_check
      _
    $region31: #{tpu_custom_call.1} parent=1 // pred_check_branch
      %58 = sbr.rel (0) target = $region33
    $region32: #{tpu_custom_call.1} parent=1 // pred_region
      _
    $region33: #{tpu_custom_call.1} parent=1 // pred_fallthru
      _
    // Predicated region
    $region34: #{tpu_custom_call.1} parent=1 // pred_check
      _
    $region35: #{tpu_custom_call.1} parent=1 // pred_check_branch
      %60 = sbr.rel (0) target = $region37
    $region36: #{tpu_custom_call.1} parent=1 // pred_region
      _
    $region37: #{tpu_custom_call.1} parent=1 // pred_fallthru
      _
    // Predicated region
    $region38: #{tpu_custom_call.1} parent=1 // pred_check
      _
    $region39: #{tpu_custom_call.1} parent=1 // pred_check_branch
      %62 = sbr.rel (0) target = $region41
    $region40: #{tpu_custom_call.1} parent=1 // pred_region
      _
    $region41: #{tpu_custom_call.1} parent=1 // pred_fallthru
      _
    // Predicated region
    $region42: #{tpu_custom_call.1} parent=1 // pred_check
      _
    $region43: #{tpu_custom_call.1} parent=1 // pred_check_branch
      %64 = sbr.rel (0) target = $region45
    $region44: #{tpu_custom_call.1} parent=1 // pred_region
      _
    $region45: #{tpu_custom_call.1} parent=1 // pred_fallthru
      _
    // Predicated region
    $region46: #{tpu_custom_call.1} parent=1 // pred_check
      _
    $region47: #{tpu_custom_call.1} parent=1 // pred_check_branch
      %66 = sbr.rel (0) target = $region49
    $region48: #{tpu_custom_call.1} parent=1 // pred_region
      _
    $region49: #{tpu_custom_call.1} parent=1 // pred_fallthru
      _
    // Predicated region
    $region50: #{tpu_custom_call.1} parent=1 // pred_check
      _
    $region51: #{tpu_custom_call.1} parent=1 // pred_check_branch
      %68 = sbr.rel (0) target = $region53
    $region52: #{tpu_custom_call.1} parent=1 // pred_region
      _
    $region53: #{tpu_custom_call.1} parent=1 // pred_fallthru
      _
    // Predicated region
    $region54: #{tpu_custom_call.1} parent=1 // pred_check
      _
    $region55: #{tpu_custom_call.1} parent=1 // pred_check_branch
      %70 = sbr.rel (0) target = $region57
    $region56: #{tpu_custom_call.1} parent=1 // pred_region
      _
    $region57: #{tpu_custom_call.1} parent=1 // pred_fallthru
      _
    // Predicated region
    $region58: #{tpu_custom_call.1} parent=1 // pred_check
      _
    $region59: #{tpu_custom_call.1} parent=1 // pred_check_branch
      %72 = sbr.rel (0) target = $region61
    $region60: #{tpu_custom_call.1} parent=1 // pred_region
      _
    $region61: #{tpu_custom_call.1} parent=1 // pred_fallthru
      _
    // Predicated region
    $region62: #{tpu_custom_call.1} parent=1 // pred_check
      _
    $region63: #{tpu_custom_call.1} parent=1 // pred_check_branch
      %74 = sbr.rel (0) target = $region65
    $region64: #{tpu_custom_call.1} parent=1 // pred_region
      _
    $region65: #{tpu_custom_call.1} parent=1 // pred_fallthru
      _
    // Predicated region
    $region66: #{tpu_custom_call.1} parent=1 // pred_check
      _
    $region67: #{tpu_custom_call.1} parent=1 // pred_check_branch
      %76 = sbr.rel (0) target = $region69
    $region68: #{tpu_custom_call.1} parent=1 // pred_region
      _
    $region69: #{tpu_custom_call.1} parent=1 // pred_fallthru
      _
    // Predicated region
    $region70: #{tpu_custom_call.1} parent=1 // pred_check
      _
    $region71: #{tpu_custom_call.1} parent=1 // pred_check_branch
      %78 = sbr.rel (0) target = $region73
    $region72: #{tpu_custom_call.1} parent=1 // pred_region
      _
    $region73: #{tpu_custom_call.1} parent=1 // pred_fallthru
      _
    // Predicated region
    $region74: #{tpu_custom_call.1} parent=1 // pred_check
      _
    $region75: #{tpu_custom_call.1} parent=1 // pred_check_branch
      %80 = sbr.rel (0) target = $region77
    $region76: #{tpu_custom_call.1} parent=1 // pred_region
      _
    $region77: #{tpu_custom_call.1} parent=1 // pred_fallthru
      _
    // Predicated region
    $region78: #{tpu_custom_call.1} parent=1 // pred_check
      _
    $region79: #{tpu_custom_call.1} parent=1 // pred_check_branch
      %82 = sbr.rel (0) target = $region81
    $region80: #{tpu_custom_call.1} parent=1 // pred_region
      _
    $region81: #{tpu_custom_call.1} parent=1 // pred_fallthru
      _
    // Predicated region
    $region82: #{tpu_custom_call.1} parent=1 // pred_check
      _
    $region83: #{tpu_custom_call.1} parent=1 // pred_check_branch
      %84 = sbr.rel (0) target = $region85
    $region84: #{tpu_custom_call.1} parent=1 // pred_region
      _
    $region85: #{tpu_custom_call.1} parent=1 // pred_fallthru
      _
    // Predicated region
    $region86: #{tpu_custom_call.1} parent=1 // pred_check
      _
    $region87: #{tpu_custom_call.1} parent=1 // pred_check_branch
      %86 = sbr.rel (0) target = $region89
    $region88: #{tpu_custom_call.1} parent=1 // pred_region
      _
    $region89: #{tpu_custom_call.1} parent=1 // pred_fallthru
      _
    // Predicated region
    $region90: #{tpu_custom_call.1} parent=1 // pred_check
      _
    $region91: #{tpu_custom_call.1} parent=1 // pred_check_branch
      %88 = sbr.rel (0) target = $region93
    $region92: #{tpu_custom_call.1} parent=1 // pred_region
      _
    $region93: #{tpu_custom_call.1} parent=1 // pred_fallthru
      _
    // Predicated region
    $region94: #{tpu_custom_call.1} parent=1 // pred_check
      _
    $region95: #{tpu_custom_call.1} parent=1 // pred_check_branch
      %90 = sbr.rel (0) target = $region97
    $region96: #{tpu_custom_call.1} parent=1 // pred_region
      _
    $region97: #{tpu_custom_call.1} parent=1 // pred_fallthru
      _
    // Predicated region
    $region98: #{tpu_custom_call.1} parent=1 // pred_check
      _
    $region99: #{tpu_custom_call.1} parent=1 // pred_check_branch
      %92 = sbr.rel (0) target = $region101
    $region100: #{tpu_custom_call.1} parent=1 // pred_region
      _
    $region101: #{tpu_custom_call.1} parent=1 // pred_fallthru
      _
    // Predicated region
    $region102: #{tpu_custom_call.1} parent=1 // pred_check
      _
    $region103: #{tpu_custom_call.1} parent=1 // pred_check_branch
      %94 = sbr.rel (0) target = $region105
    $region104: #{tpu_custom_call.1} parent=1 // pred_region
      _
    $region105: #{tpu_custom_call.1} parent=1 // pred_fallthru
      _
    // Predicated region
    $region106: #{tpu_custom_call.1} parent=1 // pred_check
      _
    $region107: #{tpu_custom_call.1} parent=1 // pred_check_branch
      %96 = sbr.rel (0) target = $region109
    $region108: #{tpu_custom_call.1} parent=1 // pred_region
      %97 = dma.done [#allocation8], 8192
    $region109: #{tpu_custom_call.1} parent=1 // pred_fallthru
      _
    %vm99 = vcmask 64512
    %100 = vst.msk [vmem:[#allocation2] sm:$0xff] %vm99, 0.0
    %101 = vst.msk [vmem:[#allocation2 + $0x8] sm:$0xff] %vm99, 0.0
    %vm102 = vcmask 58368
    %103 = vst.msk [vmem:[#allocation2 + $0x10] sm:$0x3] %vm102, 0.0
    %104 = vst.msk [vmem:[#allocation2 + $0x18] sm:$0xff] %vm99, 0.0
    %105 = vst.msk [vmem:[#allocation2 + $0x20] sm:$0xff] %vm99, 0.0
    %106 = vst.msk [vmem:[#allocation2 + $0x28] sm:$0x3] %vm102, 0.0
    %107 = vst.msk [vmem:[#allocation2 + $0x30] sm:$0xff] %vm99, 0.0
    %108 = vst.msk [vmem:[#allocation2 + $0x38] sm:$0xff] %vm99, 0.0
    %109 = vst.msk [vmem:[#allocation2 + $0x40] sm:$0x3] %vm102, 0.0
    %110 = vst.msk [vmem:[#allocation2 + $0x48] sm:$0xff] %vm99, 0.0
    %111 = vst.msk [vmem:[#allocation2 + $0x50] sm:$0xff] %vm99, 0.0
    %112 = vst.msk [vmem:[#allocation2 + $0x58] sm:$0x3] %vm102, 0.0
    %113 = vst.msk [vmem:[#allocation2 + $0x60] sm:$0xff] %vm99, 0.0
    %114 = vst.msk [vmem:[#allocation2 + $0x68] sm:$0xff] %vm99, 0.0
    %115 = vst.msk [vmem:[#allocation2 + $0x70] sm:$0x3] %vm102, 0.0
    %116 = vst.msk [vmem:[#allocation2 + $0x78] sm:$0xff] %vm99, 0.0
    %117 = vst.msk [vmem:[#allocation2 + $0x80] sm:$0xff] %vm99, 0.0
    %118 = vst.msk [vmem:[#allocation2 + $0x88] sm:$0x3] %vm102, 0.0
    %119 = vst.msk [vmem:[#allocation2 + $0x90] sm:$0xff] %vm99, 0.0
    %120 = vst.msk [vmem:[#allocation2 + $0x98] sm:$0xff] %vm99, 0.0
    %121 = vst.msk [vmem:[#allocation2 + $0xa0] sm:$0x3] %vm102, 0.0
    %122 = vst.msk [vmem:[#allocation2 + $0xa8] sm:$0xff] %vm99, 0.0
    %123 = vst.msk [vmem:[#allocation2 + $0xb0] sm:$0xff] %vm99, 0.0
    %124 = vst.msk [vmem:[#allocation2 + $0xb8] sm:$0x3] %vm102, 0.0
    %125 = vst.msk [vmem:[#allocation2 + $0xc0] sm:$0xff] %vm99, 0.0
    %126 = vst.msk [vmem:[#allocation2 + $0xc8] sm:$0xff] %vm99, 0.0
    %127 = vst.msk [vmem:[#allocation2 + $0xd0] sm:$0x3] %vm102, 0.0
    %128 = vst.msk [vmem:[#allocation2 + $0xd8] sm:$0xff] %vm99, 0.0
    %129 = vst.msk [vmem:[#allocation2 + $0xe0] sm:$0xff] %vm99, 0.0
    %130 = vst.msk [vmem:[#allocation2 + $0xe8] sm:$0x3] %vm102, 0.0
    %131 = vst.msk [vmem:[#allocation2 + $0xf0] sm:$0xff] %vm99, 0.0
    %132 = vst.msk [vmem:[#allocation2 + $0xf8] sm:$0xff] %vm99, 0.0
    %133 = vst.msk [vmem:[#allocation2 + $0x100] sm:$0x3] %vm102, 0.0
    %134 = vst.msk [vmem:[#allocation2 + $0x108] sm:$0xff] %vm99, 0.0
    %135 = vst.msk [vmem:[#allocation2 + $0x110] sm:$0xff] %vm99, 0.0
    %136 = vst.msk [vmem:[#allocation2 + $0x118] sm:$0x3] %vm102, 0.0
    %137 = vst.msk [vmem:[#allocation2 + $0x120] sm:$0xff] %vm99, 0.0
    %138 = vst.msk [vmem:[#allocation2 + $0x128] sm:$0xff] %vm99, 0.0
    %139 = vst.msk [vmem:[#allocation2 + $0x130] sm:$0x3] %vm102, 0.0
    %140 = vst.msk [vmem:[#allocation2 + $0x138] sm:$0xff] %vm99, 0.0
    %141 = vst.msk [vmem:[#allocation2 + $0x140] sm:$0xff] %vm99, 0.0
    %142 = vst.msk [vmem:[#allocation2 + $0x148] sm:$0x3] %vm102, 0.0
    %143 = vst.msk [vmem:[#allocation2 + $0x150] sm:$0xff] %vm99, 0.0
    %144 = vst.msk [vmem:[#allocation2 + $0x158] sm:$0xff] %vm99, 0.0
    %145 = vst.msk [vmem:[#allocation2 + $0x160] sm:$0x3] %vm102, 0.0
    %146 = vst.msk [vmem:[#allocation2 + $0x168] sm:$0xff] %vm99, 0.0
    %147 = vst.msk [vmem:[#allocation2 + $0x170] sm:$0xff] %vm99, 0.0
    %148 = vst.msk [vmem:[#allocation2 + $0x178] sm:$0x3] %vm102, 0.0
    %149 = vst.msk [vmem:[#allocation2 + $0x180] sm:$0xff] %vm99, 0.0
    %150 = vst.msk [vmem:[#allocation2 + $0x188] sm:$0xff] %vm99, 0.0
    %151 = vst.msk [vmem:[#allocation2 + $0x190] sm:$0x3] %vm102, 0.0
    %152 = vst.msk [vmem:[#allocation2 + $0x198] sm:$0xff] %vm99, 0.0
    %153 = vst.msk [vmem:[#allocation2 + $0x1a0] sm:$0xff] %vm99, 0.0
    %154 = vst.msk [vmem:[#allocation2 + $0x1a8] sm:$0x3] %vm102, 0.0
    %155 = vst.msk [vmem:[#allocation2 + $0x1b0] sm:$0xff] %vm99, 0.0
    %156 = vst.msk [vmem:[#allocation2 + $0x1b8] sm:$0xff] %vm99, 0.0
    %157 = vst.msk [vmem:[#allocation2 + $0x1c0] sm:$0x3] %vm102, 0.0
    %158 = vst.msk [vmem:[#allocation2 + $0x1c8] sm:$0xff] %vm99, 0.0
    %159 = vst.msk [vmem:[#allocation2 + $0x1d0] sm:$0xff] %vm99, 0.0
    %160 = vst.msk [vmem:[#allocation2 + $0x1d8] sm:$0x3] %vm102, 0.0
    %161 = vst.msk [vmem:[#allocation2 + $0x1e0] sm:$0xff] %vm99, 0.0
    %162 = vst.msk [vmem:[#allocation2 + $0x1e8] sm:$0xff] %vm99, 0.0
    %163 = vst.msk [vmem:[#allocation2 + $0x1f0] sm:$0x3] %vm102, 0.0
    %164 = vst.msk [vmem:[#allocation2 + $0x1f8] sm:$0xff] %vm99, 0.0
    %165 = vst.msk [vmem:[#allocation2 + $0x200] sm:$0xff] %vm99, 0.0
    %166 = vst.msk [vmem:[#allocation2 + $0x208] sm:$0x3] %vm102, 0.0
    %167 = vst.msk [vmem:[#allocation2 + $0x210] sm:$0xff] %vm99, 0.0
    %168 = vst.msk [vmem:[#allocation2 + $0x218] sm:$0xff] %vm99, 0.0
    %169 = vst.msk [vmem:[#allocation2 + $0x220] sm:$0x3] %vm102, 0.0
    %170 = vst.msk [vmem:[#allocation2 + $0x228] sm:$0xff] %vm99, 0.0
    %171 = vst.msk [vmem:[#allocation2 + $0x230] sm:$0xff] %vm99, 0.0
    %172 = vst.msk [vmem:[#allocation2 + $0x238] sm:$0x3] %vm102, 0.0
    %173 = vst.msk [vmem:[#allocation2 + $0x240] sm:$0xff] %vm99, 0.0
    %174 = vst.msk [vmem:[#allocation2 + $0x248] sm:$0xff] %vm99, 0.0
    %175 = vst.msk [vmem:[#allocation2 + $0x250] sm:$0x3] %vm102, 0.0
    %176 = vst.msk [vmem:[#allocation2 + $0x258] sm:$0xff] %vm99, 0.0
    %177 = vst.msk [vmem:[#allocation2 + $0x260] sm:$0xff] %vm99, 0.0
    %178 = vst.msk [vmem:[#allocation2 + $0x268] sm:$0x3] %vm102, 0.0
    %179 = vst.msk [vmem:[#allocation2 + $0x270] sm:$0xff] %vm99, 0.0
    %180 = vst.msk [vmem:[#allocation2 + $0x278] sm:$0xff] %vm99, 0.0
    %181 = vst.msk [vmem:[#allocation2 + $0x280] sm:$0x3] %vm102, 0.0
    %182 = vst.msk [vmem:[#allocation2 + $0x288] sm:$0xff] %vm99, 0.0
    %183 = vst.msk [vmem:[#allocation2 + $0x290] sm:$0xff] %vm99, 0.0
    %184 = vst.msk [vmem:[#allocation2 + $0x298] sm:$0x3] %vm102, 0.0
    %185 = vst.msk [vmem:[#allocation2 + $0x2a0] sm:$0xff] %vm99, 0.0
    %186 = vst.msk [vmem:[#allocation2 + $0x2a8] sm:$0xff] %vm99, 0.0
    %187 = vst.msk [vmem:[#allocation2 + $0x2b0] sm:$0x3] %vm102, 0.0
    %188 = vst.msk [vmem:[#allocation2 + $0x2b8] sm:$0xff] %vm99, 0.0
    %189 = vst.msk [vmem:[#allocation2 + $0x2c0] sm:$0xff] %vm99, 0.0
    %190 = vst.msk [vmem:[#allocation2 + $0x2c8] sm:$0x3] %vm102, 0.0
    %191 = vst.msk [vmem:[#allocation2 + $0x2d0] sm:$0xff] %vm99, 0.0
    %192 = vst.msk [vmem:[#allocation2 + $0x2d8] sm:$0xff] %vm99, 0.0
    %193 = vst.msk [vmem:[#allocation2 + $0x2e0] sm:$0x3] %vm102, 0.0
    %194 = vst.msk [vmem:[#allocation2 + $0x2e8] sm:$0xff] %vm99, 0.0
    %195 = vst.msk [vmem:[#allocation2 + $0x2f0] sm:$0xff] %vm99, 0.0
    %196 = vst.msk [vmem:[#allocation2 + $0x2f8] sm:$0x3] %vm102, 0.0
    %197 = vst.msk [vmem:[#allocation2 + $0x300] sm:$0xff] %vm99, 0.0
    %198 = vst.msk [vmem:[#allocation2 + $0x308] sm:$0xff] %vm99, 0.0
    %199 = vst.msk [vmem:[#allocation2 + $0x310] sm:$0x3] %vm102, 0.0
    %200 = vst.msk [vmem:[#allocation2 + $0x318] sm:$0xff] %vm99, 0.0
    %201 = vst.msk [vmem:[#allocation2 + $0x320] sm:$0xff] %vm99, 0.0
    %202 = vst.msk [vmem:[#allocation2 + $0x328] sm:$0x3] %vm102, 0.0
    %203 = vst.msk [vmem:[#allocation2 + $0x330] sm:$0xff] %vm99, 0.0
    %204 = vst.msk [vmem:[#allocation2 + $0x338] sm:$0xff] %vm99, 0.0
    %205 = vst.msk [vmem:[#allocation2 + $0x340] sm:$0x3] %vm102, 0.0
    %206 = vst.msk [vmem:[#allocation2 + $0x348] sm:$0xff] %vm99, 0.0
    %207 = vst.msk [vmem:[#allocation2 + $0x350] sm:$0xff] %vm99, 0.0
    %208 = vst.msk [vmem:[#allocation2 + $0x358] sm:$0x3] %vm102, 0.0
    %v209 = vld [vmem:[%s1] sm:$0xf]
    %v210 = vld [vmem:[%s1 + $0x4] sm:$0xf]
    %v211 = vld [vmem:[%s1 + $0x8] sm:$0xf]
    %v212 = vld [vmem:[%s1 + $0xc] sm:$0xf]
    %v213 = vld [vmem:[%s1 + $0x10] sm:$0xf]
    %v214 = vld [vmem:[%s1 + $0x14] sm:$0xf]
    %v215 = vld [vmem:[%s1 + $0x18] sm:$0xf]
    %v216 = vld [vmem:[%s1 + $0x1c] sm:$0xf]
    %v217 = vld [vmem:[%s1 + $0x20] sm:$0xf]
    %v218 = vld [vmem:[%s1 + $0x24] sm:$0xf]
    %v219 = vld [vmem:[%s1 + $0x28] sm:$0xf]
    %v220 = vld [vmem:[%s1 + $0x2c] sm:$0xf]
    %v221 = vld [vmem:[%s1 + $0x30] sm:$0xf]
    %v222 = vld [vmem:[%s1 + $0x34] sm:$0xf]
    %v223 = vld [vmem:[%s1 + $0x38] sm:$0xf]
    %v224 = vld [vmem:[%s1 + $0x3c] sm:$0xf]
    %v225 = vld [vmem:[%s2] sm:$0x1]
    %v226 = vld [vmem:[%s3] sm:$0x1]
    %v227 = vld [vmem:[#allocation7] sm:$0xff]
    %v228 = vld [vmem:[#allocation7 + $0x8] sm:$0xff]
    %v229 = vld [vmem:[#allocation7 + $0x10] sm:$0xff]
    %v230 = vld [vmem:[#allocation7 + $0x18] sm:$0xff]
    %v231 = vld [vmem:[#allocation7 + $0x20] sm:$0xff]
    %v232 = vld [vmem:[#allocation7 + $0x28] sm:$0xff]
    %v233 = vld [vmem:[#allocation7 + $0x30] sm:$0xff]
    %v234 = vld [vmem:[#allocation7 + $0x38] sm:$0xff]
    %v235 = vld [vmem:[#allocation7 + $0x40] sm:$0xff]
    %v236 = vld [vmem:[#allocation7 + $0x48] sm:$0xff]
    %v237 = vld [vmem:[#allocation7 + $0x50] sm:$0xff]
    %v238 = vld [vmem:[#allocation7 + $0x58] sm:$0xff]
    %v239 = vld [vmem:[#allocation7 + $0x60] sm:$0xff]
    %v240 = vld [vmem:[#allocation7 + $0x68] sm:$0xff]
    %v241 = vld [vmem:[#allocation7 + $0x70] sm:$0xff]
    %v242 = vld [vmem:[#allocation7 + $0x78] sm:$0xff]
    %v243 = vpack.c.bf16 %v228, %v227
    %v244 = vpack.c.bf16 %v230, %v229
    %v245 = vpack.c.bf16 %v232, %v231
    %v246 = vpack.c.bf16 %v234, %v233
    %v247 = vpack.c.bf16 %v236, %v235
    %v248 = vpack.c.bf16 %v238, %v237
    %v249 = vpack.c.bf16 %v240, %v239
    %v250 = vpack.c.bf16 %v242, %v241
    %v267 = vunpack.c.l.b16 %v209
    %v268 = vunpack.c.l.b16 %v210
    %v269 = vunpack.c.l.b16 %v211
    %v270 = vunpack.c.l.b16 %v212
    %v271 = vunpack.c.l.b16 %v213
    %v272 = vunpack.c.l.b16 %v214
    %v273 = vunpack.c.l.b16 %v215
    %v274 = vunpack.c.l.b16 %v216
    %v275 = vunpack.c.l.b16 %v217
    %v276 = vunpack.c.l.b16 %v218
    %v277 = vunpack.c.l.b16 %v219
    %v278 = vunpack.c.l.b16 %v220
    %v279 = vunpack.c.l.b16 %v221
    %v280 = vunpack.c.l.b16 %v222
    %v281 = vunpack.c.l.b16 %v223
    %v282 = vunpack.c.l.b16 %v224
    %v283 = vpack.c.b16 %v268, %v267
    %v284 = vpack.c.b16 %v270, %v269
    %v285 = vpack.c.b16 %v272, %v271
    %v286 = vpack.c.b16 %v274, %v273
    %v287 = vpack.c.b16 %v276, %v275
    %v288 = vpack.c.b16 %v278, %v277
    %v289 = vpack.c.b16 %v280, %v279
    %v290 = vpack.c.b16 %v282, %v281
    %299 = vmatprep.subr.bf16.mxu0 0
    %300 = vmatpush1.bf16.msra.mxu0 %v283
    %301 = vmatprep.subr.bf16.mxu0 0
    %302 = vmatpush1.bf16.msra.mxu0 %v284
    %303 = vmatprep.subr.bf16.mxu0 0
    %304 = vmatpush1.bf16.msra.mxu0 %v285
    %305 = vmatprep.subr.bf16.mxu0 0
    %306 = vmatpush1.bf16.msra.mxu0 %v286
    %307 = vmatprep.subr.bf16.mxu0 0
    %308 = vmatpush1.bf16.msra.mxu0 %v287
    %309 = vmatprep.subr.bf16.mxu0 0
    %310 = vmatpush1.bf16.msra.mxu0 %v288
    %311 = vmatprep.subr.bf16.mxu0 0
    %312 = vmatpush1.bf16.msra.mxu0 %v289
    %313 = vmatprep.subr.bf16.mxu0 0
    %314 = vmatpush1.bf16.msra.mxu0 %v290
    %315 = vmatprep.subr.bf16.mxu0 0
    %316 = vmatpush1.bf16.msra.mxu0 0
    %317 = vmatprep.subr.bf16.mxu0 0
    %318 = vmatpush1.bf16.msra.mxu0 0
    %319 = vmatprep.subr.bf16.mxu0 0
    %320 = vmatpush1.bf16.msra.mxu0 0
    %321 = vmatprep.subr.bf16.mxu0 0
    %322 = vmatpush1.bf16.msra.mxu0 0
    %323 = vmatprep.subr.bf16.mxu0 0
    %324 = vmatpush1.bf16.msra.mxu0 0
    %325 = vmatprep.subr.bf16.mxu0 0
    %326 = vmatpush1.bf16.msra.mxu0 0
    %327 = vmatprep.subr.bf16.mxu0 0
    %328 = vmatpush1.bf16.msra.mxu0 0
    %329 = vmatprep.subr.bf16.mxu0 0
    %330 = vmatpush1.bf16.msra.mxu0 0
    %331 = vmatprep.mubr.bf16.mxu0 0
    %332 = vmatmul.mubr.bf16.gmra.mrb[0].mxu0 %v243
    %v333 = vpop.f32.mrb[0].mxu0
    %v334 = vadd.f32 0.0, %v333
    %v335 = vpop.f32.mrb[0].mxu0
    %v336 = vpop.f32.mrb[0].mxu0
    %v337 = vadd.f32 0.0, %v336
    %v338 = vpop.f32.mrb[0].mxu0
    %339 = vmatprep.mubr.bf16.mxu0 0
    %340 = vmatmul.mubr.bf16.gmra.mrb[0].mxu0 %v244
    %v341 = vpop.f32.mrb[0].mxu0
    %v342 = vadd.f32 0.0, %v341
    %v343 = vpop.f32.mrb[0].mxu0
    %v344 = vpop.f32.mrb[0].mxu0
    %v345 = vadd.f32 0.0, %v344
    %v346 = vpop.f32.mrb[0].mxu0
    %347 = vmatprep.mubr.bf16.mxu0 0
    %348 = vmatmul.mubr.bf16.gmra.mrb[0].mxu0 %v245
    %v349 = vpop.f32.mrb[0].mxu0
    %v350 = vadd.f32 0.0, %v349
    %v351 = vpop.f32.mrb[0].mxu0
    %v352 = vpop.f32.mrb[0].mxu0
    %v353 = vadd.f32 0.0, %v352
    %v354 = vpop.f32.mrb[0].mxu0
    %355 = vmatprep.mubr.bf16.mxu0 0
    %356 = vmatmul.mubr.bf16.gmra.mrb[0].mxu0 %v246
    %v357 = vpop.f32.mrb[0].mxu0
    %v358 = vadd.f32 0.0, %v357
    %v359 = vpop.f32.mrb[0].mxu0
    %v360 = vpop.f32.mrb[0].mxu0
    %v361 = vadd.f32 0.0, %v360
    %v362 = vpop.f32.mrb[0].mxu0
    %363 = vmatprep.mubr.bf16.mxu0 0
    %364 = vmatmul.mubr.bf16.gmra.mrb[0].mxu0 %v247
    %v365 = vpop.f32.mrb[0].mxu0
    %v366 = vadd.f32 0.0, %v365
    %v367 = vpop.f32.mrb[0].mxu0
    %v368 = vpop.f32.mrb[0].mxu0
    %v369 = vadd.f32 0.0, %v368
    %v370 = vpop.f32.mrb[0].mxu0
    %371 = vmatprep.mubr.bf16.mxu0 0
    %372 = vmatmul.mubr.bf16.gmra.mrb[0].mxu0 %v248
    %v373 = vpop.f32.mrb[0].mxu0
    %v374 = vadd.f32 0.0, %v373
    %v375 = vpop.f32.mrb[0].mxu0
    %v376 = vpop.f32.mrb[0].mxu0
    %v377 = vadd.f32 0.0, %v376
    %v378 = vpop.f32.mrb[0].mxu0
    %379 = vmatprep.mubr.bf16.mxu0 0
    %380 = vmatmul.mubr.bf16.gmra.mrb[0].mxu0 %v249
    %v381 = vpop.f32.mrb[0].mxu0
    %v382 = vadd.f32 0.0, %v381
    %v383 = vpop.f32.mrb[0].mxu0
    %v384 = vpop.f32.mrb[0].mxu0
    %v385 = vadd.f32 0.0, %v384
    %v386 = vpop.f32.mrb[0].mxu0
    %387 = vmatprep.mubr.bf16.mxu0 0
    %388 = vmatmul.mubr.bf16.gmra.mrb[0].mxu0 %v250
    %v389 = vpop.f32.mrb[0].mxu0
    %v390 = vadd.f32 0.0, %v389
    %v391 = vpop.f32.mrb[0].mxu0
    %v392 = vpop.f32.mrb[0].mxu0
    %v393 = vadd.f32 0.0, %v392
    %v394 = vpop.f32.mrb[0].mxu0
    %395 = vdwg.mxu0
    %v397 = vlaneseq
    %v398 = vshrl.u32 %v397, 7
    %v399 = vsub.s32 0, %v398
    %v400 = vrot.slane %v225, %v399
    %v402 = vmul.f32 %v334, %v400
    %v403 = vmul.f32 %v337, %v400
    %v404 = vmul.f32 %v342, %v400
    %v405 = vmul.f32 %v345, %v400
    %v406 = vmul.f32 %v350, %v400
    %v407 = vmul.f32 %v353, %v400
    %v408 = vmul.f32 %v358, %v400
    %v409 = vmul.f32 %v361, %v400
    %v410 = vmul.f32 %v366, %v400
    %v411 = vmul.f32 %v369, %v400
    %v412 = vmul.f32 %v374, %v400
    %v413 = vmul.f32 %v377, %v400
    %v414 = vmul.f32 %v382, %v400
    %v415 = vmul.f32 %v385, %v400
    %v416 = vmul.f32 %v390, %v400
    %v417 = vmul.f32 %v393, %v400
    %v419 = vlaneseq
    %v420 = vshrl.u32 %v419, 7
    %v421 = vsub.s32 0, %v420
    %v422 = vrot.slane %v226, %v421
    %v424 = vadd.f32 %v402, %v422
    %v425 = vadd.f32 %v403, %v422
    %v426 = vadd.f32 %v404, %v422
    %v427 = vadd.f32 %v405, %v422
    %v428 = vadd.f32 %v406, %v422
    %v429 = vadd.f32 %v407, %v422
    %v430 = vadd.f32 %v408, %v422
    %v431 = vadd.f32 %v409, %v422
    %v432 = vadd.f32 %v410, %v422
    %v433 = vadd.f32 %v411, %v422
    %v434 = vadd.f32 %v412, %v422
    %v435 = vadd.f32 %v413, %v422
    %v436 = vadd.f32 %v414, %v422
    %v437 = vadd.f32 %v415, %v422
    %v438 = vadd.f32 %v416, %v422
    %v439 = vadd.f32 %v417, %v422
    %v440 = vmax.f32 %v424, 0.0
    %v441 = vmax.f32 %v425, 0.0
    %v442 = vmax.f32 %v426, 0.0
    %v443 = vmax.f32 %v427, 0.0
    %v444 = vmax.f32 %v428, 0.0
    %v445 = vmax.f32 %v429, 0.0
    %v446 = vmax.f32 %v430, 0.0
    %v447 = vmax.f32 %v431, 0.0
    %v448 = vmax.f32 %v432, 0.0
    %v449 = vmax.f32 %v433, 0.0
    %v450 = vmax.f32 %v434, 0.0
    %v451 = vmax.f32 %v435, 0.0
    %v452 = vmax.f32 %v436, 0.0
    %v453 = vmax.f32 %v437, 0.0
    %v454 = vmax.f32 %v438, 0.0
    %v455 = vmax.f32 %v439, 0.0
    %s456 = scalar_lea.vmem [#allocation2], 24
    %457 = vst.msk [vmem:[%s456 + $0x1] sm:$0xff] %vm99, %v440
    %458 = vst.msk [vmem:[%s456 + $0x9] sm:$0xff] %vm99, %v441
    %459 = vst.msk [vmem:[%s456 + $0x19] sm:$0xff] %vm99, %v442
    %460 = vst.msk [vmem:[%s456 + $0x21] sm:$0xff] %vm99, %v443
    %461 = vst.msk [vmem:[%s456 + $0x31] sm:$0xff] %vm99, %v444
    %462 = vst.msk [vmem:[%s456 + $0x39] sm:$0xff] %vm99, %v445
    %463 = vst.msk [vmem:[%s456 + $0x49] sm:$0xff] %vm99, %v446
    %464 = vst.msk [vmem:[%s456 + $0x51] sm:$0xff] %vm99, %v447
    %465 = vst.msk [vmem:[%s456 + $0x61] sm:$0xff] %vm99, %v448
    %466 = vst.msk [vmem:[%s456 + $0x69] sm:$0xff] %vm99, %v449
    %467 = vst.msk [vmem:[%s456 + $0x79] sm:$0xff] %vm99, %v450
    %468 = vst.msk [vmem:[%s456 + $0x81] sm:$0xff] %vm99, %v451
    %469 = vst.msk [vmem:[%s456 + $0x91] sm:$0xff] %vm99, %v452
    %470 = vst.msk [vmem:[%s456 + $0x99] sm:$0xff] %vm99, %v453
    %471 = vst.msk [vmem:[%s456 + $0xa9] sm:$0xff] %vm99, %v454
    %472 = vst.msk [vmem:[%s456 + $0xb1] sm:$0xff] %vm99, %v455
    %s473 = scalar_lea.vmem [#allocation7], 128
    %v474 = vld [vmem:[%s473] sm:$0xff]
    %v475 = vld [vmem:[%s473 + $0x8] sm:$0xff]
    %v476 = vld [vmem:[%s473 + $0x10] sm:$0xff]
    %v477 = vld [vmem:[%s473 + $0x18] sm:$0xff]
    %v478 = vld [vmem:[%s473 + $0x20] sm:$0xff]
    %v479 = vld [vmem:[%s473 + $0x28] sm:$0xff]
    %v480 = vld [vmem:[%s473 + $0x30] sm:$0xff]
    %v481 = vld [vmem:[%s473 + $0x38] sm:$0xff]
    %v482 = vld [vmem:[%s473 + $0x40] sm:$0xff]
    %v483 = vld [vmem:[%s473 + $0x48] sm:$0xff]
    %v484 = vld [vmem:[%s473 + $0x50] sm:$0xff]
    %v485 = vld [vmem:[%s473 + $0x58] sm:$0xff]
    %v486 = vld [vmem:[%s473 + $0x60] sm:$0xff]
    %v487 = vld [vmem:[%s473 + $0x68] sm:$0xff]
    %v488 = vld [vmem:[%s473 + $0x70] sm:$0xff]
    %v489 = vld [vmem:[%s473 + $0x78] sm:$0xff]
    %v490 = vpack.c.bf16 %v475, %v474
    %v491 = vpack.c.bf16 %v477, %v476
    %v492 = vpack.c.bf16 %v479, %v478
    %v493 = vpack.c.bf16 %v481, %v480
    %v494 = vpack.c.bf16 %v483, %v482
    %v495 = vpack.c.bf16 %v485, %v484
    %v496 = vpack.c.bf16 %v487, %v486
    %v497 = vpack.c.bf16 %v489, %v488
    %498 = vmatprep.subr.bf16.mxu0 0
    %499 = vmatpush1.bf16.msra.mxu0 %v283
    %500 = vmatprep.subr.bf16.mxu0 0
    %501 = vmatpush1.bf16.msra.mxu0 %v284
    %502 = vmatprep.subr.bf16.mxu0 0
    %503 = vmatpush1.bf16.msra.mxu0 %v285
    %504 = vmatprep.subr.bf16.mxu0 0
    %505 = vmatpush1.bf16.msra.mxu0 %v286
    %506 = vmatprep.subr.bf16.mxu0 0
    %507 = vmatpush1.bf16.msra.mxu0 %v287
    %508 = vmatprep.subr.bf16.mxu0 0
    %509 = vmatpush1.bf16.msra.mxu0 %v288
    %510 = vmatprep.subr.bf16.mxu0 0
    %511 = vmatpush1.bf16.msra.mxu0 %v289
    %512 = vmatprep.subr.bf16.mxu0 0
    %513 = vmatpush1.bf16.msra.mxu0 %v290
    %514 = vmatprep.subr.bf16.mxu0 0
    %515 = vmatpush1.bf16.msra.mxu0 0
    %516 = vmatprep.subr.bf16.mxu0 0
    %517 = vmatpush1.bf16.msra.mxu0 0
    %518 = vmatprep.subr.bf16.mxu0 0
    %519 = vmatpush1.bf16.msra.mxu0 0
    %520 = vmatprep.subr.bf16.mxu0 0
    %521 = vmatpush1.bf16.msra.mxu0 0
    %522 = vmatprep.subr.bf16.mxu0 0
    %523 = vmatpush1.bf16.msra.mxu0 0
    %524 = vmatprep.subr.bf16.mxu0 0
    %525 = vmatpush1.bf16.msra.mxu0 0
    %526 = vmatprep.subr.bf16.mxu0 0
    %527 = vmatpush1.bf16.msra.mxu0 0
    %528 = vmatprep.subr.bf16.mxu0 0
    %529 = vmatpush1.bf16.msra.mxu0 0
    %530 = vmatprep.mubr.bf16.mxu0 0
    %531 = vmatmul.mubr.bf16.gmra.mrb[0].mxu0 %v490
    %v532 = vpop.f32.mrb[0].mxu0
    %v533 = vadd.f32 0.0, %v532
    %v534 = vpop.f32.mrb[0].mxu0
    %v535 = vpop.f32.mrb[0].mxu0
    %v536 = vadd.f32 0.0, %v535
    %v537 = vpop.f32.mrb[0].mxu0
    %538 = vmatprep.mubr.bf16.mxu0 0
    %539 = vmatmul.mubr.bf16.gmra.mrb[0].mxu0 %v491
    %v540 = vpop.f32.mrb[0].mxu0
    %v541 = vadd.f32 0.0, %v540
    %v542 = vpop.f32.mrb[0].mxu0
    %v543 = vpop.f32.mrb[0].mxu0
    %v544 = vadd.f32 0.0, %v543
    %v545 = vpop.f32.mrb[0].mxu0
    %546 = vmatprep.mubr.bf16.mxu0 0
    %547 = vmatmul.mubr.bf16.gmra.mrb[0].mxu0 %v492
    %v548 = vpop.f32.mrb[0].mxu0
    %v549 = vadd.f32 0.0, %v548
    %v550 = vpop.f32.mrb[0].mxu0
    %v551 = vpop.f32.mrb[0].mxu0
    %v552 = vadd.f32 0.0, %v551
    %v553 = vpop.f32.mrb[0].mxu0
    %554 = vmatprep.mubr.bf16.mxu0 0
    %555 = vmatmul.mubr.bf16.gmra.mrb[0].mxu0 %v493
    %v556 = vpop.f32.mrb[0].mxu0
    %v557 = vadd.f32 0.0, %v556
    %v558 = vpop.f32.mrb[0].mxu0
    %v559 = vpop.f32.mrb[0].mxu0
    %v560 = vadd.f32 0.0, %v559
    %v561 = vpop.f32.mrb[0].mxu0
    %562 = vmatprep.mubr.bf16.mxu0 0
    %563 = vmatmul.mubr.bf16.gmra.mrb[0].mxu0 %v494
    %v564 = vpop.f32.mrb[0].mxu0
    %v565 = vadd.f32 0.0, %v564
    %v566 = vpop.f32.mrb[0].mxu0
    %v567 = vpop.f32.mrb[0].mxu0
    %v568 = vadd.f32 0.0, %v567
    %v569 = vpop.f32.mrb[0].mxu0
    %570 = vmatprep.mubr.bf16.mxu0 0
    %571 = vmatmul.mubr.bf16.gmra.mrb[0].mxu0 %v495
    %v572 = vpop.f32.mrb[0].mxu0
    %v573 = vadd.f32 0.0, %v572
    %v574 = vpop.f32.mrb[0].mxu0
    %v575 = vpop.f32.mrb[0].mxu0
    %v576 = vadd.f32 0.0, %v575
    %v577 = vpop.f32.mrb[0].mxu0
    %578 = vmatprep.mubr.bf16.mxu0 0
    %579 = vmatmul.mubr.bf16.gmra.mrb[0].mxu0 %v496
    %v580 = vpop.f32.mrb[0].mxu0
    %v581 = vadd.f32 0.0, %v580
    %v582 = vpop.f32.mrb[0].mxu0
    %v583 = vpop.f32.mrb[0].mxu0
    %v584 = vadd.f32 0.0, %v583
    %v585 = vpop.f32.mrb[0].mxu0
    %586 = vmatprep.mubr.bf16.mxu0 0
    %587 = vmatmul.mubr.bf16.gmra.mrb[0].mxu0 %v497
    %v588 = vpop.f32.mrb[0].mxu0
    %v589 = vadd.f32 0.0, %v588
    %v590 = vpop.f32.mrb[0].mxu0
    %v591 = vpop.f32.mrb[0].mxu0
    %v592 = vadd.f32 0.0, %v591
    %v593 = vpop.f32.mrb[0].mxu0
    %594 = vdwg.mxu0
    %v595 = vmul.f32 %v533, %v400
    %v596 = vmul.f32 %v536, %v400
    %v597 = vmul.f32 %v541, %v400
    %v598 = vmul.f32 %v544, %v400
    %v599 = vmul.f32 %v549, %v400
    %v600 = vmul.f32 %v552, %v400
    %v601 = vmul.f32 %v557, %v400
    %v602 = vmul.f32 %v560, %v400
    %v603 = vmul.f32 %v565, %v400
    %v604 = vmul.f32 %v568, %v400
    %v605 = vmul.f32 %v573, %v400
    %v606 = vmul.f32 %v576, %v400
    %v607 = vmul.f32 %v581, %v400
    %v608 = vmul.f32 %v584, %v400
    %v609 = vmul.f32 %v589, %v400
    %v610 = vmul.f32 %v592, %v400
    %v611 = vadd.f32 %v595, %v422
    %v612 = vadd.f32 %v596, %v422
    %v613 = vadd.f32 %v597, %v422
    %v614 = vadd.f32 %v598, %v422
    %v615 = vadd.f32 %v599, %v422
    %v616 = vadd.f32 %v600, %v422
    %v617 = vadd.f32 %v601, %v422
    %v618 = vadd.f32 %v602, %v422
    %v619 = vadd.f32 %v603, %v422
    %v620 = vadd.f32 %v604, %v422
    %v621 = vadd.f32 %v605, %v422
    %v622 = vadd.f32 %v606, %v422
    %v623 = vadd.f32 %v607, %v422
    %v624 = vadd.f32 %v608, %v422
    %v625 = vadd.f32 %v609, %v422
    %v626 = vadd.f32 %v610, %v422
    %v627 = vmax.f32 %v611, 0.0
    %v628 = vmax.f32 %v612, 0.0
    %v629 = vmax.f32 %v613, 0.0
    %v630 = vmax.f32 %v614, 0.0
    %v631 = vmax.f32 %v615, 0.0
    %v632 = vmax.f32 %v616, 0.0
    %v633 = vmax.f32 %v617, 0.0
    %v634 = vmax.f32 %v618, 0.0
    %v635 = vmax.f32 %v619, 0.0
    %v636 = vmax.f32 %v620, 0.0
    %v637 = vmax.f32 %v621, 0.0
    %v638 = vmax.f32 %v622, 0.0
    %v639 = vmax.f32 %v623, 0.0
    %v640 = vmax.f32 %v624, 0.0
    %v641 = vmax.f32 %v625, 0.0
    %v642 = vmax.f32 %v626, 0.0
    %s643 = scalar_lea.vmem [#allocation2], 216
    %644 = vst.msk [vmem:[%s643 + $0x1] sm:$0xff] %vm99, %v627
    %645 = vst.msk [vmem:[%s643 + $0x9] sm:$0xff] %vm99, %v628
    %646 = vst.msk [vmem:[%s643 + $0x19] sm:$0xff] %vm99, %v629
    %647 = vst.msk [vmem:[%s643 + $0x21] sm:$0xff] %vm99, %v630
    %648 = vst.msk [vmem:[%s643 + $0x31] sm:$0xff] %vm99, %v631
    %649 = vst.msk [vmem:[%s643 + $0x39] sm:$0xff] %vm99, %v632
    %650 = vst.msk [vmem:[%s643 + $0x49] sm:$0xff] %vm99, %v633
    %651 = vst.msk [vmem:[%s643 + $0x51] sm:$0xff] %vm99, %v634
    %652 = vst.msk [vmem:[%s643 + $0x61] sm:$0xff] %vm99, %v635
    %653 = vst.msk [vmem:[%s643 + $0x69] sm:$0xff] %vm99, %v636
    %654 = vst.msk [vmem:[%s643 + $0x79] sm:$0xff] %vm99, %v637
    %655 = vst.msk [vmem:[%s643 + $0x81] sm:$0xff] %vm99, %v638
    %656 = vst.msk [vmem:[%s643 + $0x91] sm:$0xff] %vm99, %v639
    %657 = vst.msk [vmem:[%s643 + $0x99] sm:$0xff] %vm99, %v640
    %658 = vst.msk [vmem:[%s643 + $0xa9] sm:$0xff] %vm99, %v641
    %659 = vst.msk [vmem:[%s643 + $0xb1] sm:$0xff] %vm99, %v642
    %s660 = scalar_lea.vmem [#allocation7], 256
    %v661 = vld [vmem:[%s660] sm:$0xff]
    %v662 = vld [vmem:[%s660 + $0x8] sm:$0xff]
    %v663 = vld [vmem:[%s660 + $0x10] sm:$0xff]
    %v664 = vld [vmem:[%s660 + $0x18] sm:$0xff]
    %v665 = vld [vmem:[%s660 + $0x20] sm:$0xff]
    %v666 = vld [vmem:[%s660 + $0x28] sm:$0xff]
    %v667 = vld [vmem:[%s660 + $0x30] sm:$0xff]
    %v668 = vld [vmem:[%s660 + $0x38] sm:$0xff]
    %v669 = vld [vmem:[%s660 + $0x40] sm:$0xff]
    %v670 = vld [vmem:[%s660 + $0x48] sm:$0xff]
    %v671 = vld [vmem:[%s660 + $0x50] sm:$0xff]
    %v672 = vld [vmem:[%s660 + $0x58] sm:$0xff]
    %v673 = vld [vmem:[%s660 + $0x60] sm:$0xff]
    %v674 = vld [vmem:[%s660 + $0x68] sm:$0xff]
    %v675 = vld [vmem:[%s660 + $0x70] sm:$0xff]
    %v676 = vld [vmem:[%s660 + $0x78] sm:$0xff]
    %v677 = vpack.c.bf16 %v662, %v661
    %v678 = vpack.c.bf16 %v664, %v663
    %v679 = vpack.c.bf16 %v666, %v665
    %v680 = vpack.c.bf16 %v668, %v667
    %v681 = vpack.c.bf16 %v670, %v669
    %v682 = vpack.c.bf16 %v672, %v671
    %v683 = vpack.c.bf16 %v674, %v673
    %v684 = vpack.c.bf16 %v676, %v675
    %685 = vmatprep.subr.bf16.mxu0 0
    %686 = vmatpush1.bf16.msra.mxu0 %v283
    %687 = vmatprep.subr.bf16.mxu0 0
    %688 = vmatpush1.bf16.msra.mxu0 %v284
    %689 = vmatprep.subr.bf16.mxu0 0
    %690 = vmatpush1.bf16.msra.mxu0 %v285
    %691 = vmatprep.subr.bf16.mxu0 0
    %692 = vmatpush1.bf16.msra.mxu0 %v286
    %693 = vmatprep.subr.bf16.mxu0 0
    %694 = vmatpush1.bf16.msra.mxu0 %v287
    %695 = vmatprep.subr.bf16.mxu0 0
    %696 = vmatpush1.bf16.msra.mxu0 %v288
    %697 = vmatprep.subr.bf16.mxu0 0
    %698 = vmatpush1.bf16.msra.mxu0 %v289
    %699 = vmatprep.subr.bf16.mxu0 0
    %700 = vmatpush1.bf16.msra.mxu0 %v290
    %701 = vmatprep.subr.bf16.mxu0 0
    %702 = vmatpush1.bf16.msra.mxu0 0
    %703 = vmatprep.subr.bf16.mxu0 0
    %704 = vmatpush1.bf16.msra.mxu0 0
    %705 = vmatprep.subr.bf16.mxu0 0
    %706 = vmatpush1.bf16.msra.mxu0 0
    %707 = vmatprep.subr.bf16.mxu0 0
    %708 = vmatpush1.bf16.msra.mxu0 0
    %709 = vmatprep.subr.bf16.mxu0 0
    %710 = vmatpush1.bf16.msra.mxu0 0
    %711 = vmatprep.subr.bf16.mxu0 0
    %712 = vmatpush1.bf16.msra.mxu0 0
    %713 = vmatprep.subr.bf16.mxu0 0
    %714 = vmatpush1.bf16.msra.mxu0 0
    %715 = vmatprep.subr.bf16.mxu0 0
    %716 = vmatpush1.bf16.msra.mxu0 0
    %717 = vmatprep.mubr.bf16.mxu0 0
    %718 = vmatmul.mubr.bf16.gmra.mrb[0].mxu0 %v677
    %v719 = vpop.f32.mrb[0].mxu0
    %v720 = vadd.f32 0.0, %v719
    %v721 = vpop.f32.mrb[0].mxu0
    %v722 = vpop.f32.mrb[0].mxu0
    %v723 = vadd.f32 0.0, %v722
    %v724 = vpop.f32.mrb[0].mxu0
    %725 = vmatprep.mubr.bf16.mxu0 0
    %726 = vmatmul.mubr.bf16.gmra.mrb[0].mxu0 %v678
    %v727 = vpop.f32.mrb[0].mxu0
    %v728 = vadd.f32 0.0, %v727
    %v729 = vpop.f32.mrb[0].mxu0
    %v730 = vpop.f32.mrb[0].mxu0
    %v731 = vadd.f32 0.0, %v730
    %v732 = vpop.f32.mrb[0].mxu0
    %733 = vmatprep.mubr.bf16.mxu0 0
    %734 = vmatmul.mubr.bf16.gmra.mrb[0].mxu0 %v679
    %v735 = vpop.f32.mrb[0].mxu0
    %v736 = vadd.f32 0.0, %v735
    %v737 = vpop.f32.mrb[0].mxu0
    %v738 = vpop.f32.mrb[0].mxu0
    %v739 = vadd.f32 0.0, %v738
    %v740 = vpop.f32.mrb[0].mxu0
    %741 = vmatprep.mubr.bf16.mxu0 0
    %742 = vmatmul.mubr.bf16.gmra.mrb[0].mxu0 %v680
    %v743 = vpop.f32.mrb[0].mxu0
    %v744 = vadd.f32 0.0, %v743
    %v745 = vpop.f32.mrb[0].mxu0
    %v746 = vpop.f32.mrb[0].mxu0
    %v747 = vadd.f32 0.0, %v746
    %v748 = vpop.f32.mrb[0].mxu0
    %749 = vmatprep.mubr.bf16.mxu0 0
    %750 = vmatmul.mubr.bf16.gmra.mrb[0].mxu0 %v681
    %v751 = vpop.f32.mrb[0].mxu0
    %v752 = vadd.f32 0.0, %v751
    %v753 = vpop.f32.mrb[0].mxu0
    %v754 = vpop.f32.mrb[0].mxu0
    %v755 = vadd.f32 0.0, %v754
    %v756 = vpop.f32.mrb[0].mxu0
    %757 = vmatprep.mubr.bf16.mxu0 0
    %758 = vmatmul.mubr.bf16.gmra.mrb[0].mxu0 %v682
    %v759 = vpop.f32.mrb[0].mxu0
    %v760 = vadd.f32 0.0, %v759
    %v761 = vpop.f32.mrb[0].mxu0
    %v762 = vpop.f32.mrb[0].mxu0
    %v763 = vadd.f32 0.0, %v762
    %v764 = vpop.f32.mrb[0].mxu0
    %765 = vmatprep.mubr.bf16.mxu0 0
    %766 = vmatmul.mubr.bf16.gmra.mrb[0].mxu0 %v683
    %v767 = vpop.f32.mrb[0].mxu0
    %v768 = vadd.f32 0.0, %v767
    %v769 = vpop.f32.mrb[0].mxu0
    %v770 = vpop.f32.mrb[0].mxu0
    %v771 = vadd.f32 0.0, %v770
    %v772 = vpop.f32.mrb[0].mxu0
    %773 = vmatprep.mubr.bf16.mxu0 0
    %774 = vmatmul.mubr.bf16.gmra.mrb[0].mxu0 %v684
    %v775 = vpop.f32.mrb[0].mxu0
    %v776 = vadd.f32 0.0, %v775
    %v777 = vpop.f32.mrb[0].mxu0
    %v778 = vpop.f32.mrb[0].mxu0
    %v779 = vadd.f32 0.0, %v778
    %v780 = vpop.f32.mrb[0].mxu0
    %781 = vdwg.mxu0
    %v782 = vmul.f32 %v720, %v400
    %v783 = vmul.f32 %v723, %v400
    %v784 = vmul.f32 %v728, %v400
    %v785 = vmul.f32 %v731, %v400
    %v786 = vmul.f32 %v736, %v400
    %v787 = vmul.f32 %v739, %v400
    %v788 = vmul.f32 %v744, %v400
    %v789 = vmul.f32 %v747, %v400
    %v790 = vmul.f32 %v752, %v400
    %v791 = vmul.f32 %v755, %v400
    %v792 = vmul.f32 %v760, %v400
    %v793 = vmul.f32 %v763, %v400
    %v794 = vmul.f32 %v768, %v400
    %v795 = vmul.f32 %v771, %v400
    %v796 = vmul.f32 %v776, %v400
    %v797 = vmul.f32 %v779, %v400
    %v798 = vadd.f32 %v782, %v422
    %v799 = vadd.f32 %v783, %v422
    %v800 = vadd.f32 %v784, %v422
    %v801 = vadd.f32 %v785, %v422
    %v802 = vadd.f32 %v786, %v422
    %v803 = vadd.f32 %v787, %v422
    %v804 = vadd.f32 %v788, %v422
    %v805 = vadd.f32 %v789, %v422
    %v806 = vadd.f32 %v790, %v422
    %v807 = vadd.f32 %v791, %v422
    %v808 = vadd.f32 %v792, %v422
    %v809 = vadd.f32 %v793, %v422
    %v810 = vadd.f32 %v794, %v422
    %v811 = vadd.f32 %v795, %v422
    %v812 = vadd.f32 %v796, %v422
    %v813 = vadd.f32 %v797, %v422
    %v814 = vmax.f32 %v798, 0.0
    %v815 = vmax.f32 %v799, 0.0
    %v816 = vmax.f32 %v800, 0.0
    %v817 = vmax.f32 %v801, 0.0
    %v818 = vmax.f32 %v802, 0.0
    %v819 = vmax.f32 %v803, 0.0
    %v820 = vmax.f32 %v804, 0.0
    %v821 = vmax.f32 %v805, 0.0
    %v822 = vmax.f32 %v806, 0.0
    %v823 = vmax.f32 %v807, 0.0
    %v824 = vmax.f32 %v808, 0.0
    %v825 = vmax.f32 %v809, 0.0
    %v826 = vmax.f32 %v810, 0.0
    %v827 = vmax.f32 %v811, 0.0
    %v828 = vmax.f32 %v812, 0.0
    %v829 = vmax.f32 %v813, 0.0
    %s830 = scalar_lea.vmem [#allocation2], 456
    %831 = vst.msk [vmem:[%s830 + $0x1] sm:$0xff] %vm99, %v814
    %832 = vst.msk [vmem:[%s830 + $0x9] sm:$0xff] %vm99, %v815
    %833 = vst.msk [vmem:[%s830 + $0x19] sm:$0xff] %vm99, %v816
    %834 = vst.msk [vmem:[%s830 + $0x21] sm:$0xff] %vm99, %v817
    %835 = vst.msk [vmem:[%s830 + $0x31] sm:$0xff] %vm99, %v818
    %836 = vst.msk [vmem:[%s830 + $0x39] sm:$0xff] %vm99, %v819
    %837 = vst.msk [vmem:[%s830 + $0x49] sm:$0xff] %vm99, %v820
    %838 = vst.msk [vmem:[%s830 + $0x51] sm:$0xff] %vm99, %v821
    %839 = vst.msk [vmem:[%s830 + $0x61] sm:$0xff] %vm99, %v822
    %840 = vst.msk [vmem:[%s830 + $0x69] sm:$0xff] %vm99, %v823
    %841 = vst.msk [vmem:[%s830 + $0x79] sm:$0xff] %vm99, %v824
    %842 = vst.msk [vmem:[%s830 + $0x81] sm:$0xff] %vm99, %v825
    %843 = vst.msk [vmem:[%s830 + $0x91] sm:$0xff] %vm99, %v826
    %844 = vst.msk [vmem:[%s830 + $0x99] sm:$0xff] %vm99, %v827
    %845 = vst.msk [vmem:[%s830 + $0xa9] sm:$0xff] %vm99, %v828
    %846 = vst.msk [vmem:[%s830 + $0xb1] sm:$0xff] %vm99, %v829
    %s847 = scalar_lea.vmem [#allocation7], 384
    %v848 = vld [vmem:[%s847] sm:$0xff]
    %v849 = vld [vmem:[%s847 + $0x8] sm:$0xff]
    %v850 = vld [vmem:[%s847 + $0x10] sm:$0xff]
    %v851 = vld [vmem:[%s847 + $0x18] sm:$0xff]
    %v852 = vld [vmem:[%s847 + $0x20] sm:$0xff]
    %v853 = vld [vmem:[%s847 + $0x28] sm:$0xff]
    %v854 = vld [vmem:[%s847 + $0x30] sm:$0xff]
    %v855 = vld [vmem:[%s847 + $0x38] sm:$0xff]
    %v856 = vld [vmem:[%s847 + $0x40] sm:$0xff]
    %v857 = vld [vmem:[%s847 + $0x48] sm:$0xff]
    %v858 = vld [vmem:[%s847 + $0x50] sm:$0xff]
    %v859 = vld [vmem:[%s847 + $0x58] sm:$0xff]
    %v860 = vld [vmem:[%s847 + $0x60] sm:$0xff]
    %v861 = vld [vmem:[%s847 + $0x68] sm:$0xff]
    %v862 = vld [vmem:[%s847 + $0x70] sm:$0xff]
    %v863 = vld [vmem:[%s847 + $0x78] sm:$0xff]
    %v864 = vpack.c.bf16 %v849, %v848
    %v865 = vpack.c.bf16 %v851, %v850
    %v866 = vpack.c.bf16 %v853, %v852
    %v867 = vpack.c.bf16 %v855, %v854
    %v868 = vpack.c.bf16 %v857, %v856
    %v869 = vpack.c.bf16 %v859, %v858
    %v870 = vpack.c.bf16 %v861, %v860
    %v871 = vpack.c.bf16 %v863, %v862
    %872 = vmatprep.subr.bf16.mxu0 0
    %873 = vmatpush1.bf16.msra.mxu0 %v283
    %874 = vmatprep.subr.bf16.mxu0 0
    %875 = vmatpush1.bf16.msra.mxu0 %v284
    %876 = vmatprep.subr.bf16.mxu0 0
    %877 = vmatpush1.bf16.msra.mxu0 %v285
    %878 = vmatprep.subr.bf16.mxu0 0
    %879 = vmatpush1.bf16.msra.mxu0 %v286
    %880 = vmatprep.subr.bf16.mxu0 0
    %881 = vmatpush1.bf16.msra.mxu0 %v287
    %882 = vmatprep.subr.bf16.mxu0 0
    %883 = vmatpush1.bf16.msra.mxu0 %v288
    %884 = vmatprep.subr.bf16.mxu0 0
    %885 = vmatpush1.bf16.msra.mxu0 %v289
    %886 = vmatprep.subr.bf16.mxu0 0
    %887 = vmatpush1.bf16.msra.mxu0 %v290
    %888 = vmatprep.subr.bf16.mxu0 0
    %889 = vmatpush1.bf16.msra.mxu0 0
    %890 = vmatprep.subr.bf16.mxu0 0
    %891 = vmatpush1.bf16.msra.mxu0 0
    %892 = vmatprep.subr.bf16.mxu0 0
    %893 = vmatpush1.bf16.msra.mxu0 0
    %894 = vmatprep.subr.bf16.mxu0 0
    %895 = vmatpush1.bf16.msra.mxu0 0
    %896 = vmatprep.subr.bf16.mxu0 0
    %897 = vmatpush1.bf16.msra.mxu0 0
    %898 = vmatprep.subr.bf16.mxu0 0
    %899 = vmatpush1.bf16.msra.mxu0 0
    %900 = vmatprep.subr.bf16.mxu0 0
    %901 = vmatpush1.bf16.msra.mxu0 0
    %902 = vmatprep.subr.bf16.mxu0 0
    %903 = vmatpush1.bf16.msra.mxu0 0
    %904 = vmatprep.mubr.bf16.mxu0 0
    %905 = vmatmul.mubr.bf16.gmra.mrb[0].mxu0 %v864
    %v906 = vpop.f32.mrb[0].mxu0
    %v907 = vadd.f32 0.0, %v906
    %v908 = vpop.f32.mrb[0].mxu0
    %v909 = vpop.f32.mrb[0].mxu0
    %v910 = vadd.f32 0.0, %v909
    %v911 = vpop.f32.mrb[0].mxu0
    %912 = vmatprep.mubr.bf16.mxu0 0
    %913 = vmatmul.mubr.bf16.gmra.mrb[0].mxu0 %v865
    %v914 = vpop.f32.mrb[0].mxu0
    %v915 = vadd.f32 0.0, %v914
    %v916 = vpop.f32.mrb[0].mxu0
    %v917 = vpop.f32.mrb[0].mxu0
    %v918 = vadd.f32 0.0, %v917
    %v919 = vpop.f32.mrb[0].mxu0
    %920 = vmatprep.mubr.bf16.mxu0 0
    %921 = vmatmul.mubr.bf16.gmra.mrb[0].mxu0 %v866
    %v922 = vpop.f32.mrb[0].mxu0
    %v923 = vadd.f32 0.0, %v922
    %v924 = vpop.f32.mrb[0].mxu0
    %v925 = vpop.f32.mrb[0].mxu0
    %v926 = vadd.f32 0.0, %v925
    %v927 = vpop.f32.mrb[0].mxu0
    %928 = vmatprep.mubr.bf16.mxu0 0
    %929 = vmatmul.mubr.bf16.gmra.mrb[0].mxu0 %v867
    %v930 = vpop.f32.mrb[0].mxu0
    %v931 = vadd.f32 0.0, %v930
    %v932 = vpop.f32.mrb[0].mxu0
    %v933 = vpop.f32.mrb[0].mxu0
    %v934 = vadd.f32 0.0, %v933
    %v935 = vpop.f32.mrb[0].mxu0
    %936 = vmatprep.mubr.bf16.mxu0 0
    %937 = vmatmul.mubr.bf16.gmra.mrb[0].mxu0 %v868
    %v938 = vpop.f32.mrb[0].mxu0
    %v939 = vadd.f32 0.0, %v938
    %v940 = vpop.f32.mrb[0].mxu0
    %v941 = vpop.f32.mrb[0].mxu0
    %v942 = vadd.f32 0.0, %v941
    %v943 = vpop.f32.mrb[0].mxu0
    %944 = vmatprep.mubr.bf16.mxu0 0
    %945 = vmatmul.mubr.bf16.gmra.mrb[0].mxu0 %v869
    %v946 = vpop.f32.mrb[0].mxu0
    %v947 = vadd.f32 0.0, %v946
    %v948 = vpop.f32.mrb[0].mxu0
    %v949 = vpop.f32.mrb[0].mxu0
    %v950 = vadd.f32 0.0, %v949
    %v951 = vpop.f32.mrb[0].mxu0
    %952 = vmatprep.mubr.bf16.mxu0 0
    %953 = vmatmul.mubr.bf16.gmra.mrb[0].mxu0 %v870
    %v954 = vpop.f32.mrb[0].mxu0
    %v955 = vadd.f32 0.0, %v954
    %v956 = vpop.f32.mrb[0].mxu0
    %v957 = vpop.f32.mrb[0].mxu0
    %v958 = vadd.f32 0.0, %v957
    %v959 = vpop.f32.mrb[0].mxu0
    %960 = vmatprep.mubr.bf16.mxu0 0
    %961 = vmatmul.mubr.bf16.gmra.mrb[0].mxu0 %v871
    %v962 = vpop.f32.mrb[0].mxu0
    %v963 = vadd.f32 0.0, %v962
    %v964 = vpop.f32.mrb[0].mxu0
    %v965 = vpop.f32.mrb[0].mxu0
    %v966 = vadd.f32 0.0, %v965
    %v967 = vpop.f32.mrb[0].mxu0
    %968 = vdwg.mxu0
    %v969 = vmul.f32 %v907, %v400
    %v970 = vmul.f32 %v910, %v400
    %v971 = vmul.f32 %v915, %v400
    %v972 = vmul.f32 %v918, %v400
    %v973 = vmul.f32 %v923, %v400
    %v974 = vmul.f32 %v926, %v400
    %v975 = vmul.f32 %v931, %v400
    %v976 = vmul.f32 %v934, %v400
    %v977 = vmul.f32 %v939, %v400
    %v978 = vmul.f32 %v942, %v400
    %v979 = vmul.f32 %v947, %v400
    %v980 = vmul.f32 %v950, %v400
    %v981 = vmul.f32 %v955, %v400
    %v982 = vmul.f32 %v958, %v400
    %v983 = vmul.f32 %v963, %v400
    %v984 = vmul.f32 %v966, %v400
    %v985 = vadd.f32 %v969, %v422
    %v986 = vadd.f32 %v970, %v422
    %v987 = vadd.f32 %v971, %v422
    %v988 = vadd.f32 %v972, %v422
    %v989 = vadd.f32 %v973, %v422
    %v990 = vadd.f32 %v974, %v422
    %v991 = vadd.f32 %v975, %v422
    %v992 = vadd.f32 %v976, %v422
    %v993 = vadd.f32 %v977, %v422
    %v994 = vadd.f32 %v978, %v422
    %v995 = vadd.f32 %v979, %v422
    %v996 = vadd.f32 %v980, %v422
    %v997 = vadd.f32 %v981, %v422
    %v998 = vadd.f32 %v982, %v422
    %v999 = vadd.f32 %v983, %v422
    %v1000 = vadd.f32 %v984, %v422
    %v1001 = vmax.f32 %v985, 0.0
    %v1002 = vmax.f32 %v986, 0.0
    %v1003 = vmax.f32 %v987, 0.0
    %v1004 = vmax.f32 %v988, 0.0
    %v1005 = vmax.f32 %v989, 0.0
    %v1006 = vmax.f32 %v990, 0.0
    %v1007 = vmax.f32 %v991, 0.0
    %v1008 = vmax.f32 %v992, 0.0
    %v1009 = vmax.f32 %v993, 0.0
    %v1010 = vmax.f32 %v994, 0.0
    %v1011 = vmax.f32 %v995, 0.0
    %v1012 = vmax.f32 %v996, 0.0
    %v1013 = vmax.f32 %v997, 0.0
    %v1014 = vmax.f32 %v998, 0.0
    %v1015 = vmax.f32 %v999, 0.0
    %v1016 = vmax.f32 %v1000, 0.0
    %s1017 = scalar_lea.vmem [#allocation2], 648
    %1018 = vst.msk [vmem:[%s1017 + $0x1] sm:$0xff] %vm99, %v1001
    %1019 = vst.msk [vmem:[%s1017 + $0x9] sm:$0xff] %vm99, %v1002
    %1020 = vst.msk [vmem:[%s1017 + $0x19] sm:$0xff] %vm99, %v1003
    %1021 = vst.msk [vmem:[%s1017 + $0x21] sm:$0xff] %vm99, %v1004
    %1022 = vst.msk [vmem:[%s1017 + $0x31] sm:$0xff] %vm99, %v1005
    %1023 = vst.msk [vmem:[%s1017 + $0x39] sm:$0xff] %vm99, %v1006
    %1024 = vst.msk [vmem:[%s1017 + $0x49] sm:$0xff] %vm99, %v1007
    %1025 = vst.msk [vmem:[%s1017 + $0x51] sm:$0xff] %vm99, %v1008
    %1026 = vst.msk [vmem:[%s1017 + $0x61] sm:$0xff] %vm99, %v1009
    %1027 = vst.msk [vmem:[%s1017 + $0x69] sm:$0xff] %vm99, %v1010
    %1028 = vst.msk [vmem:[%s1017 + $0x79] sm:$0xff] %vm99, %v1011
    %1029 = vst.msk [vmem:[%s1017 + $0x81] sm:$0xff] %vm99, %v1012
    %1030 = vst.msk [vmem:[%s1017 + $0x91] sm:$0xff] %vm99, %v1013
    %1031 = vst.msk [vmem:[%s1017 + $0x99] sm:$0xff] %vm99, %v1014
    %1032 = vst.msk [vmem:[%s1017 + $0xa9] sm:$0xff] %vm99, %v1015
    %1033 = vst.msk [vmem:[%s1017 + $0xb1] sm:$0xff] %vm99, %v1016
    %v1034 = vld [vmem:[#allocation2] ss:$2 sm:$0xff]
    %s1035 = scalar_lea.vmem [#allocation2], 48
    %v1036 = vld [vmem:[%s1035] ss:$2 sm:$0xff]
    %s1037 = scalar_lea.vmem [#allocation2], 96
    %v1038 = vld [vmem:[%s1037] ss:$2 sm:$0xff]
    %s1039 = scalar_lea.vmem [#allocation2], 144
    %v1040 = vld [vmem:[%s1039] ss:$2 sm:$0xff]
    %s1041 = scalar_lea.vmem [#allocation2], 192
    %v1042 = vld [vmem:[%s1041] ss:$2 sm:$0xff]
    %s1043 = scalar_lea.vmem [#allocation2], 240
    %v1044 = vld [vmem:[%s1043] ss:$2 sm:$0xff]
    %s1045 = scalar_lea.vmem [#allocation2], 288
    %v1046 = vld [vmem:[%s1045] ss:$2 sm:$0xff]
    %s1047 = scalar_lea.vmem [#allocation2], 336
    %v1048 = vld [vmem:[%s1047] ss:$2 sm:$0xff]
    %s1049 = scalar_lea.vmem [#allocation2], 432
    %v1050 = vld [vmem:[%s1049] ss:$2 sm:$0xff]
    %s1051 = scalar_lea.vmem [#allocation2], 480
    %v1052 = vld [vmem:[%s1051] ss:$2 sm:$0xff]
    %s1053 = scalar_lea.vmem [#allocation2], 528
    %v1054 = vld [vmem:[%s1053] ss:$2 sm:$0xff]
    %s1055 = scalar_lea.vmem [#allocation2], 576
    %v1056 = vld [vmem:[%s1055] ss:$2 sm:$0xff]
    %s1057 = scalar_lea.vmem [#allocation2], 624
    %v1058 = vld [vmem:[%s1057] ss:$2 sm:$0xff]
    %s1059 = scalar_lea.vmem [#allocation2], 672
    %v1060 = vld [vmem:[%s1059] ss:$2 sm:$0xff]
    %s1061 = scalar_lea.vmem [#allocation2], 720
    %v1062 = vld [vmem:[%s1061] ss:$2 sm:$0xff]
    %s1063 = scalar_lea.vmem [#allocation2], 768
    %v1064 = vld [vmem:[%s1063] ss:$2 sm:$0xff]
    %1065 = vst.msk [vmem:[#allocation3] sm:$0xff] %vm99, %v1034
    %1066 = vst.msk [vmem:[#allocation3 + $0x8] sm:$0xff] %vm99, %v1036
    %1067 = vst.msk [vmem:[#allocation3 + $0x10] sm:$0xff] %vm99, %v1038
    %1068 = vst.msk [vmem:[#allocation3 + $0x18] sm:$0xff] %vm99, %v1040
    %1069 = vst.msk [vmem:[#allocation3 + $0x20] sm:$0xff] %vm99, %v1042
    %1070 = vst.msk [vmem:[#allocation3 + $0x28] sm:$0xff] %vm99, %v1044
    %1071 = vst.msk [vmem:[#allocation3 + $0x30] sm:$0xff] %vm99, %v1046
    %1072 = vst.msk [vmem:[#allocation3 + $0x38] sm:$0xff] %vm99, %v1048
    %1073 = vst.msk [vmem:[#allocation3 + $0x40] sm:$0xff] %vm99, %v1050
    %1074 = vst.msk [vmem:[#allocation3 + $0x48] sm:$0xff] %vm99, %v1052
    %1075 = vst.msk [vmem:[#allocation3 + $0x50] sm:$0xff] %vm99, %v1054
    %1076 = vst.msk [vmem:[#allocation3 + $0x58] sm:$0xff] %vm99, %v1056
    %1077 = vst.msk [vmem:[#allocation3 + $0x60] sm:$0xff] %vm99, %v1058
    %1078 = vst.msk [vmem:[#allocation3 + $0x68] sm:$0xff] %vm99, %v1060
    %1079 = vst.msk [vmem:[#allocation3 + $0x70] sm:$0xff] %vm99, %v1062
    %1080 = vst.msk [vmem:[#allocation3 + $0x78] sm:$0xff] %vm99, %v1064
    %s1081 = scalar_lea.vmem [#allocation2], 1
    %v1082 = vld [vmem:[%s1081] ss:$2 sm:$0xff]
    %s1083 = scalar_lea.vmem [#allocation2], 49
    %v1084 = vld [vmem:[%s1083] ss:$2 sm:$0xff]
    %s1085 = scalar_lea.vmem [#allocation2], 97
    %v1086 = vld [vmem:[%s1085] ss:$2 sm:$0xff]
    %s1087 = scalar_lea.vmem [#allocation2], 145
    %v1088 = vld [vmem:[%s1087] ss:$2 sm:$0xff]
    %s1089 = scalar_lea.vmem [#allocation2], 193
    %v1090 = vld [vmem:[%s1089] ss:$2 sm:$0xff]
    %s1091 = scalar_lea.vmem [#allocation2], 241
    %v1092 = vld [vmem:[%s1091] ss:$2 sm:$0xff]
    %s1093 = scalar_lea.vmem [#allocation2], 289
    %v1094 = vld [vmem:[%s1093] ss:$2 sm:$0xff]
    %s1095 = scalar_lea.vmem [#allocation2], 337
    %v1096 = vld [vmem:[%s1095] ss:$2 sm:$0xff]
    %s1097 = scalar_lea.vmem [#allocation2], 433
    %v1098 = vld [vmem:[%s1097] ss:$2 sm:$0xff]
    %s1099 = scalar_lea.vmem [#allocation2], 481
    %v1100 = vld [vmem:[%s1099] ss:$2 sm:$0xff]
    %s1101 = scalar_lea.vmem [#allocation2], 529
    %v1102 = vld [vmem:[%s1101] ss:$2 sm:$0xff]
    %s1103 = scalar_lea.vmem [#allocation2], 577
    %v1104 = vld [vmem:[%s1103] ss:$2 sm:$0xff]
    %s1105 = scalar_lea.vmem [#allocation2], 625
    %v1106 = vld [vmem:[%s1105] ss:$2 sm:$0xff]
    %s1107 = scalar_lea.vmem [#allocation2], 673
    %v1108 = vld [vmem:[%s1107] ss:$2 sm:$0xff]
    %s1109 = scalar_lea.vmem [#allocation2], 721
    %v1110 = vld [vmem:[%s1109] ss:$2 sm:$0xff]
    %s1111 = scalar_lea.vmem [#allocation2], 769
    %v1112 = vld [vmem:[%s1111] ss:$2 sm:$0xff]
    %1129 = vrot.lane.b32.xlu0 %v1082, 8
    %v1130 = vpop.permute.xlu0 %1129
    %1131 = vrot.lane.b32.xlu0 %v1084, 8
    %v1132 = vpop.permute.xlu0 %1131
    %1133 = vrot.lane.b32.xlu0 %v1086, 8
    %v1134 = vpop.permute.xlu0 %1133
    %1135 = vrot.lane.b32.xlu0 %v1088, 8
    %v1136 = vpop.permute.xlu0 %1135
    %1137 = vrot.lane.b32.xlu0 %v1090, 8
    %v1138 = vpop.permute.xlu0 %1137
    %1139 = vrot.lane.b32.xlu0 %v1092, 8
    %v1140 = vpop.permute.xlu0 %1139
    %1141 = vrot.lane.b32.xlu0 %v1094, 8
    %v1142 = vpop.permute.xlu0 %1141
    %1143 = vrot.lane.b32.xlu0 %v1096, 8
    %v1144 = vpop.permute.xlu0 %1143
    %1145 = vrot.lane.b32.xlu0 %v1098, 8
    %v1146 = vpop.permute.xlu0 %1145
    %1147 = vrot.lane.b32.xlu0 %v1100, 8
    %v1148 = vpop.permute.xlu0 %1147
    %1149 = vrot.lane.b32.xlu0 %v1102, 8
    %v1150 = vpop.permute.xlu0 %1149
    %1151 = vrot.lane.b32.xlu0 %v1104, 8
    %v1152 = vpop.permute.xlu0 %1151
    %1153 = vrot.lane.b32.xlu0 %v1106, 8
    %v1154 = vpop.permute.xlu0 %1153
    %1155 = vrot.lane.b32.xlu0 %v1108, 8
    %v1156 = vpop.permute.xlu0 %1155
    %1157 = vrot.lane.b32.xlu0 %v1110, 8
    %v1158 = vpop.permute.xlu0 %1157
    %1159 = vrot.lane.b32.xlu0 %v1112, 8
    %v1160 = vpop.permute.xlu0 %1159
    %vm1177 = vcmask 130112
    %1178 = vst.msk [vmem:[#allocation3] sm:$0xff] %vm1177, %v1130
    %1179 = vst.msk [vmem:[#allocation3 + $0x8] sm:$0xff] %vm1177, %v1132
    %1180 = vst.msk [vmem:[#allocation3 + $0x10] sm:$0xff] %vm1177, %v1134
    %1181 = vst.msk [vmem:[#allocation3 + $0x18] sm:$0xff] %vm1177, %v1136
    %1182 = vst.msk [vmem:[#allocation3 + $0x20] sm:$0xff] %vm1177, %v1138
    %1183 = vst.msk [vmem:[#allocation3 + $0x28] sm:$0xff] %vm1177, %v1140
    %1184 = vst.msk [vmem:[#allocation3 + $0x30] sm:$0xff] %vm1177, %v1142
    %1185 = vst.msk [vmem:[#allocation3 + $0x38] sm:$0xff] %vm1177, %v1144
    %1186 = vst.msk [vmem:[#allocation3 + $0x40] sm:$0xff] %vm1177, %v1146
    %1187 = vst.msk [vmem:[#allocation3 + $0x48] sm:$0xff] %vm1177, %v1148
    %1188 = vst.msk [vmem:[#allocation3 + $0x50] sm:$0xff] %vm1177, %v1150
    %1189 = vst.msk [vmem:[#allocation3 + $0x58] sm:$0xff] %vm1177, %v1152
    %1190 = vst.msk [vmem:[#allocation3 + $0x60] sm:$0xff] %vm1177, %v1154
    %1191 = vst.msk [vmem:[#allocation3 + $0x68] sm:$0xff] %vm1177, %v1156
    %1192 = vst.msk [vmem:[#allocation3 + $0x70] sm:$0xff] %vm1177, %v1158
    %1193 = vst.msk [vmem:[#allocation3 + $0x78] sm:$0xff] %vm1177, %v1160
    %s1194 = scalar_lea.vmem [#allocation2], 2
    %v1195 = vld [vmem:[%s1194] ss:$2 sm:$0xff]
    %s1196 = scalar_lea.vmem [#allocation2], 50
    %v1197 = vld [vmem:[%s1196] ss:$2 sm:$0xff]
    %s1198 = scalar_lea.vmem [#allocation2], 98
    %v1199 = vld [vmem:[%s1198] ss:$2 sm:$0xff]
    %s1200 = scalar_lea.vmem [#allocation2], 146
    %v1201 = vld [vmem:[%s1200] ss:$2 sm:$0xff]
    %s1202 = scalar_lea.vmem [#allocation2], 194
    %v1203 = vld [vmem:[%s1202] ss:$2 sm:$0xff]
    %s1204 = scalar_lea.vmem [#allocation2], 242
    %v1205 = vld [vmem:[%s1204] ss:$2 sm:$0xff]
    %s1206 = scalar_lea.vmem [#allocation2], 290
    %v1207 = vld [vmem:[%s1206] ss:$2 sm:$0xff]
    %s1208 = scalar_lea.vmem [#allocation2], 338
    %v1209 = vld [vmem:[%s1208] ss:$2 sm:$0xff]
    %s1210 = scalar_lea.vmem [#allocation2], 434
    %v1211 = vld [vmem:[%s1210] ss:$2 sm:$0xff]
    %s1212 = scalar_lea.vmem [#allocation2], 482
    %v1213 = vld [vmem:[%s1212] ss:$2 sm:$0xff]
    %s1214 = scalar_lea.vmem [#allocation2], 530
    %v1215 = vld [vmem:[%s1214] ss:$2 sm:$0xff]
    %s1216 = scalar_lea.vmem [#allocation2], 578
    %v1217 = vld [vmem:[%s1216] ss:$2 sm:$0xff]
    %s1218 = scalar_lea.vmem [#allocation2], 626
    %v1219 = vld [vmem:[%s1218] ss:$2 sm:$0xff]
    %s1220 = scalar_lea.vmem [#allocation2], 674
    %v1221 = vld [vmem:[%s1220] ss:$2 sm:$0xff]
    %s1222 = scalar_lea.vmem [#allocation2], 722
    %v1223 = vld [vmem:[%s1222] ss:$2 sm:$0xff]
    %s1224 = scalar_lea.vmem [#allocation2], 770
    %v1225 = vld [vmem:[%s1224] ss:$2 sm:$0xff]
    %1242 = vrot.lane.b32.xlu0 %v1195, 16
    %v1243 = vpop.permute.xlu0 %1242
    %1244 = vrot.lane.b32.xlu0 %v1197, 16
    %v1245 = vpop.permute.xlu0 %1244
    %1246 = vrot.lane.b32.xlu0 %v1199, 16
    %v1247 = vpop.permute.xlu0 %1246
    %1248 = vrot.lane.b32.xlu0 %v1201, 16
    %v1249 = vpop.permute.xlu0 %1248
    %1250 = vrot.lane.b32.xlu0 %v1203, 16
    %v1251 = vpop.permute.xlu0 %1250
    %1252 = vrot.lane.b32.xlu0 %v1205, 16
    %v1253 = vpop.permute.xlu0 %1252
    %1254 = vrot.lane.b32.xlu0 %v1207, 16
    %v1255 = vpop.permute.xlu0 %1254
    %1256 = vrot.lane.b32.xlu0 %v1209, 16
    %v1257 = vpop.permute.xlu0 %1256
    %1258 = vrot.lane.b32.xlu0 %v1211, 16
    %v1259 = vpop.permute.xlu0 %1258
    %1260 = vrot.lane.b32.xlu0 %v1213, 16
    %v1261 = vpop.permute.xlu0 %1260
    %1262 = vrot.lane.b32.xlu0 %v1215, 16
    %v1263 = vpop.permute.xlu0 %1262
    %1264 = vrot.lane.b32.xlu0 %v1217, 16
    %v1265 = vpop.permute.xlu0 %1264
    %1266 = vrot.lane.b32.xlu0 %v1219, 16
    %v1267 = vpop.permute.xlu0 %1266
    %1268 = vrot.lane.b32.xlu0 %v1221, 16
    %v1269 = vpop.permute.xlu0 %1268
    %1270 = vrot.lane.b32.xlu0 %v1223, 16
    %v1271 = vpop.permute.xlu0 %1270
    %1272 = vrot.lane.b32.xlu0 %v1225, 16
    %v1273 = vpop.permute.xlu0 %1272
    %vm1290 = vcmask 195712
    %1291 = vst.msk [vmem:[#allocation3] sm:$0xff] %vm1290, %v1243
    %1292 = vst.msk [vmem:[#allocation3 + $0x8] sm:$0xff] %vm1290, %v1245
    %1293 = vst.msk [vmem:[#allocation3 + $0x10] sm:$0xff] %vm1290, %v1247
    %1294 = vst.msk [vmem:[#allocation3 + $0x18] sm:$0xff] %vm1290, %v1249
    %1295 = vst.msk [vmem:[#allocation3 + $0x20] sm:$0xff] %vm1290, %v1251
    %1296 = vst.msk [vmem:[#allocation3 + $0x28] sm:$0xff] %vm1290, %v1253
    %1297 = vst.msk [vmem:[#allocation3 + $0x30] sm:$0xff] %vm1290, %v1255
    %1298 = vst.msk [vmem:[#allocation3 + $0x38] sm:$0xff] %vm1290, %v1257
    %1299 = vst.msk [vmem:[#allocation3 + $0x40] sm:$0xff] %vm1290, %v1259
    %1300 = vst.msk [vmem:[#allocation3 + $0x48] sm:$0xff] %vm1290, %v1261
    %1301 = vst.msk [vmem:[#allocation3 + $0x50] sm:$0xff] %vm1290, %v1263
    %1302 = vst.msk [vmem:[#allocation3 + $0x58] sm:$0xff] %vm1290, %v1265
    %1303 = vst.msk [vmem:[#allocation3 + $0x60] sm:$0xff] %vm1290, %v1267
    %1304 = vst.msk [vmem:[#allocation3 + $0x68] sm:$0xff] %vm1290, %v1269
    %1305 = vst.msk [vmem:[#allocation3 + $0x70] sm:$0xff] %vm1290, %v1271
    %1306 = vst.msk [vmem:[#allocation3 + $0x78] sm:$0xff] %vm1290, %v1273
    %v1307 = vld [vmem:[%s456] ss:$2 sm:$0xff]
    %s1308 = scalar_lea.vmem %s456, 48 [#allocation2]
    %v1309 = vld [vmem:[%s1308] ss:$2 sm:$0xff]
    %s1310 = scalar_lea.vmem %s456, 96 [#allocation2]
    %v1311 = vld [vmem:[%s1310] ss:$2 sm:$0xff]
    %s1312 = scalar_lea.vmem %s456, 144 [#allocation2]
    %v1313 = vld [vmem:[%s1312] ss:$2 sm:$0xff]
    %s1314 = scalar_lea.vmem %s456, 192 [#allocation2]
    %v1315 = vld [vmem:[%s1314] ss:$2 sm:$0xff]
    %s1316 = scalar_lea.vmem %s456, 240 [#allocation2]
    %v1317 = vld [vmem:[%s1316] ss:$2 sm:$0xff]
    %s1318 = scalar_lea.vmem %s456, 288 [#allocation2]
    %v1319 = vld [vmem:[%s1318] ss:$2 sm:$0xff]
    %s1320 = scalar_lea.vmem %s456, 336 [#allocation2]
    %v1321 = vld [vmem:[%s1320] ss:$2 sm:$0xff]
    %s1322 = scalar_lea.vmem %s456, 432 [#allocation2]
    %v1323 = vld [vmem:[%s1322] ss:$2 sm:$0xff]
    %s1324 = scalar_lea.vmem %s456, 480 [#allocation2]
    %v1325 = vld [vmem:[%s1324] ss:$2 sm:$0xff]
    %s1326 = scalar_lea.vmem %s456, 528 [#allocation2]
    %v1327 = vld [vmem:[%s1326] ss:$2 sm:$0xff]
    %s1328 = scalar_lea.vmem %s456, 576 [#allocation2]
    %v1329 = vld [vmem:[%s1328] ss:$2 sm:$0xff]
    %s1330 = scalar_lea.vmem %s456, 624 [#allocation2]
    %v1331 = vld [vmem:[%s1330] ss:$2 sm:$0xff]
    %s1332 = scalar_lea.vmem %s456, 672 [#allocation2]
    %v1333 = vld [vmem:[%s1332] ss:$2 sm:$0xff]
    %s1334 = scalar_lea.vmem %s456, 720 [#allocation2]
    %v1335 = vld [vmem:[%s1334] ss:$2 sm:$0xff]
    %s1336 = scalar_lea.vmem %s456, 768 [#allocation2]
    %v1337 = vld [vmem:[%s1336] ss:$2 sm:$0xff]
    %1354 = vrot.lane.b32.xlu0 %v1307, 24
    %v1355 = vpop.permute.xlu0 %1354
    %1356 = vrot.lane.b32.xlu0 %v1309, 24
    %v1357 = vpop.permute.xlu0 %1356
    %1358 = vrot.lane.b32.xlu0 %v1311, 24
    %v1359 = vpop.permute.xlu0 %1358
    %1360 = vrot.lane.b32.xlu0 %v1313, 24
    %v1361 = vpop.permute.xlu0 %1360
    %1362 = vrot.lane.b32.xlu0 %v1315, 24
    %v1363 = vpop.permute.xlu0 %1362
    %1364 = vrot.lane.b32.xlu0 %v1317, 24
    %v1365 = vpop.permute.xlu0 %1364
    %1366 = vrot.lane.b32.xlu0 %v1319, 24
    %v1367 = vpop.permute.xlu0 %1366
    %1368 = vrot.lane.b32.xlu0 %v1321, 24
    %v1369 = vpop.permute.xlu0 %1368
    %1370 = vrot.lane.b32.xlu0 %v1323, 24
    %v1371 = vpop.permute.xlu0 %1370
    %1372 = vrot.lane.b32.xlu0 %v1325, 24
    %v1373 = vpop.permute.xlu0 %1372
    %1374 = vrot.lane.b32.xlu0 %v1327, 24
    %v1375 = vpop.permute.xlu0 %1374
    %1376 = vrot.lane.b32.xlu0 %v1329, 24
    %v1377 = vpop.permute.xlu0 %1376
    %1378 = vrot.lane.b32.xlu0 %v1331, 24
    %v1379 = vpop.permute.xlu0 %1378
    %1380 = vrot.lane.b32.xlu0 %v1333, 24
    %v1381 = vpop.permute.xlu0 %1380
    %1382 = vrot.lane.b32.xlu0 %v1335, 24
    %v1383 = vpop.permute.xlu0 %1382
    %1384 = vrot.lane.b32.xlu0 %v1337, 24
    %v1385 = vpop.permute.xlu0 %1384
    %vm1402 = vcmask 261312
    %1403 = vst.msk [vmem:[#allocation3] sm:$0xff] %vm1402, %v1355
    %1404 = vst.msk [vmem:[#allocation3 + $0x8] sm:$0xff] %vm1402, %v1357
    %1405 = vst.msk [vmem:[#allocation3 + $0x10] sm:$0xff] %vm1402, %v1359
    %1406 = vst.msk [vmem:[#allocation3 + $0x18] sm:$0xff] %vm1402, %v1361
    %1407 = vst.msk [vmem:[#allocation3 + $0x20] sm:$0xff] %vm1402, %v1363
    %1408 = vst.msk [vmem:[#allocation3 + $0x28] sm:$0xff] %vm1402, %v1365
    %1409 = vst.msk [vmem:[#allocation3 + $0x30] sm:$0xff] %vm1402, %v1367
    %1410 = vst.msk [vmem:[#allocation3 + $0x38] sm:$0xff] %vm1402, %v1369
    %1411 = vst.msk [vmem:[#allocation3 + $0x40] sm:$0xff] %vm1402, %v1371
    %1412 = vst.msk [vmem:[#allocation3 + $0x48] sm:$0xff] %vm1402, %v1373
    %1413 = vst.msk [vmem:[#allocation3 + $0x50] sm:$0xff] %vm1402, %v1375
    %1414 = vst.msk [vmem:[#allocation3 + $0x58] sm:$0xff] %vm1402, %v1377
    %1415 = vst.msk [vmem:[#allocation3 + $0x60] sm:$0xff] %vm1402, %v1379
    %1416 = vst.msk [vmem:[#allocation3 + $0x68] sm:$0xff] %vm1402, %v1381
    %1417 = vst.msk [vmem:[#allocation3 + $0x70] sm:$0xff] %vm1402, %v1383
    %1418 = vst.msk [vmem:[#allocation3 + $0x78] sm:$0xff] %vm1402, %v1385
    %s1419 = scalar_lea.vmem %s456, 1 [#allocation2]
    %v1420 = vld [vmem:[%s1419] ss:$2 sm:$0xff]
    %s1421 = scalar_lea.vmem %s456, 49 [#allocation2]
    %v1422 = vld [vmem:[%s1421] ss:$2 sm:$0xff]
    %s1423 = scalar_lea.vmem %s456, 97 [#allocation2]
    %v1424 = vld [vmem:[%s1423] ss:$2 sm:$0xff]
    %s1425 = scalar_lea.vmem %s456, 145 [#allocation2]
    %v1426 = vld [vmem:[%s1425] ss:$2 sm:$0xff]
    %s1427 = scalar_lea.vmem %s456, 193 [#allocation2]
    %v1428 = vld [vmem:[%s1427] ss:$2 sm:$0xff]
    %s1429 = scalar_lea.vmem %s456, 241 [#allocation2]
    %v1430 = vld [vmem:[%s1429] ss:$2 sm:$0xff]
    %s1431 = scalar_lea.vmem %s456, 289 [#allocation2]
    %v1432 = vld [vmem:[%s1431] ss:$2 sm:$0xff]
    %s1433 = scalar_lea.vmem %s456, 337 [#allocation2]
    %v1434 = vld [vmem:[%s1433] ss:$2 sm:$0xff]
    %s1435 = scalar_lea.vmem %s456, 433 [#allocation2]
    %v1436 = vld [vmem:[%s1435] ss:$2 sm:$0xff]
    %s1437 = scalar_lea.vmem %s456, 481 [#allocation2]
    %v1438 = vld [vmem:[%s1437] ss:$2 sm:$0xff]
    %s1439 = scalar_lea.vmem %s456, 529 [#allocation2]
    %v1440 = vld [vmem:[%s1439] ss:$2 sm:$0xff]
    %s1441 = scalar_lea.vmem %s456, 577 [#allocation2]
    %v1442 = vld [vmem:[%s1441] ss:$2 sm:$0xff]
    %s1443 = scalar_lea.vmem %s456, 625 [#allocation2]
    %v1444 = vld [vmem:[%s1443] ss:$2 sm:$0xff]
    %s1445 = scalar_lea.vmem %s456, 673 [#allocation2]
    %v1446 = vld [vmem:[%s1445] ss:$2 sm:$0xff]
    %s1447 = scalar_lea.vmem %s456, 721 [#allocation2]
    %v1448 = vld [vmem:[%s1447] ss:$2 sm:$0xff]
    %s1449 = scalar_lea.vmem %s456, 769 [#allocation2]
    %v1450 = vld [vmem:[%s1449] ss:$2 sm:$0xff]
    %1467 = vrot.lane.b32.xlu0 %v1420, 32
    %v1468 = vpop.permute.xlu0 %1467
    %1469 = vrot.lane.b32.xlu0 %v1422, 32
    %v1470 = vpop.permute.xlu0 %1469
    %1471 = vrot.lane.b32.xlu0 %v1424, 32
    %v1472 = vpop.permute.xlu0 %1471
    %1473 = vrot.lane.b32.xlu0 %v1426, 32
    %v1474 = vpop.permute.xlu0 %1473
    %1475 = vrot.lane.b32.xlu0 %v1428, 32
    %v1476 = vpop.permute.xlu0 %1475
    %1477 = vrot.lane.b32.xlu0 %v1430, 32
    %v1478 = vpop.permute.xlu0 %1477
    %1479 = vrot.lane.b32.xlu0 %v1432, 32
    %v1480 = vpop.permute.xlu0 %1479
    %1481 = vrot.lane.b32.xlu0 %v1434, 32
    %v1482 = vpop.permute.xlu0 %1481
    %1483 = vrot.lane.b32.xlu0 %v1436, 32
    %v1484 = vpop.permute.xlu0 %1483
    %1485 = vrot.lane.b32.xlu0 %v1438, 32
    %v1486 = vpop.permute.xlu0 %1485
    %1487 = vrot.lane.b32.xlu0 %v1440, 32
    %v1488 = vpop.permute.xlu0 %1487
    %1489 = vrot.lane.b32.xlu0 %v1442, 32
    %v1490 = vpop.permute.xlu0 %1489
    %1491 = vrot.lane.b32.xlu0 %v1444, 32
    %v1492 = vpop.permute.xlu0 %1491
    %1493 = vrot.lane.b32.xlu0 %v1446, 32
    %v1494 = vpop.permute.xlu0 %1493
    %1495 = vrot.lane.b32.xlu0 %v1448, 32
    %v1496 = vpop.permute.xlu0 %1495
    %1497 = vrot.lane.b32.xlu0 %v1450, 32
    %v1498 = vpop.permute.xlu0 %1497
    %vm1515 = vcmask 326912
    %1516 = vst.msk [vmem:[#allocation3] sm:$0xff] %vm1515, %v1468
    %1517 = vst.msk [vmem:[#allocation3 + $0x8] sm:$0xff] %vm1515, %v1470
    %1518 = vst.msk [vmem:[#allocation3 + $0x10] sm:$0xff] %vm1515, %v1472
    %1519 = vst.msk [vmem:[#allocation3 + $0x18] sm:$0xff] %vm1515, %v1474
    %1520 = vst.msk [vmem:[#allocation3 + $0x20] sm:$0xff] %vm1515, %v1476
    %1521 = vst.msk [vmem:[#allocation3 + $0x28] sm:$0xff] %vm1515, %v1478
    %1522 = vst.msk [vmem:[#allocation3 + $0x30] sm:$0xff] %vm1515, %v1480
    %1523 = vst.msk [vmem:[#allocation3 + $0x38] sm:$0xff] %vm1515, %v1482
    %1524 = vst.msk [vmem:[#allocation3 + $0x40] sm:$0xff] %vm1515, %v1484
    %1525 = vst.msk [vmem:[#allocation3 + $0x48] sm:$0xff] %vm1515, %v1486
    %1526 = vst.msk [vmem:[#allocation3 + $0x50] sm:$0xff] %vm1515, %v1488
    %1527 = vst.msk [vmem:[#allocation3 + $0x58] sm:$0xff] %vm1515, %v1490
    %1528 = vst.msk [vmem:[#allocation3 + $0x60] sm:$0xff] %vm1515, %v1492
    %1529 = vst.msk [vmem:[#allocation3 + $0x68] sm:$0xff] %vm1515, %v1494
    %1530 = vst.msk [vmem:[#allocation3 + $0x70] sm:$0xff] %vm1515, %v1496
    %1531 = vst.msk [vmem:[#allocation3 + $0x78] sm:$0xff] %vm1515, %v1498
    %s1532 = scalar_lea.vmem %s456, 2 [#allocation2]
    %v1533 = vld [vmem:[%s1532] ss:$2 sm:$0xff]
    %s1534 = scalar_lea.vmem %s456, 50 [#allocation2]
    %v1535 = vld [vmem:[%s1534] ss:$2 sm:$0xff]
    %s1536 = scalar_lea.vmem %s456, 98 [#allocation2]
    %v1537 = vld [vmem:[%s1536] ss:$2 sm:$0xff]
    %s1538 = scalar_lea.vmem %s456, 146 [#allocation2]
    %v1539 = vld [vmem:[%s1538] ss:$2 sm:$0xff]
    %s1540 = scalar_lea.vmem %s456, 194 [#allocation2]
    %v1541 = vld [vmem:[%s1540] ss:$2 sm:$0xff]
    %s1542 = scalar_lea.vmem %s456, 242 [#allocation2]
    %v1543 = vld [vmem:[%s1542] ss:$2 sm:$0xff]
    %s1544 = scalar_lea.vmem %s456, 290 [#allocation2]
    %v1545 = vld [vmem:[%s1544] ss:$2 sm:$0xff]
    %s1546 = scalar_lea.vmem %s456, 338 [#allocation2]
    %v1547 = vld [vmem:[%s1546] ss:$2 sm:$0xff]
    %s1548 = scalar_lea.vmem %s456, 434 [#allocation2]
    %v1549 = vld [vmem:[%s1548] ss:$2 sm:$0xff]
    %s1550 = scalar_lea.vmem %s456, 482 [#allocation2]
    %v1551 = vld [vmem:[%s1550] ss:$2 sm:$0xff]
    %s1552 = scalar_lea.vmem %s456, 530 [#allocation2]
    %v1553 = vld [vmem:[%s1552] ss:$2 sm:$0xff]
    %s1554 = scalar_lea.vmem %s456, 578 [#allocation2]
    %v1555 = vld [vmem:[%s1554] ss:$2 sm:$0xff]
    %s1556 = scalar_lea.vmem %s456, 626 [#allocation2]
    %v1557 = vld [vmem:[%s1556] ss:$2 sm:$0xff]
    %s1558 = scalar_lea.vmem %s456, 674 [#allocation2]
    %v1559 = vld [vmem:[%s1558] ss:$2 sm:$0xff]
    %s1560 = scalar_lea.vmem %s456, 722 [#allocation2]
    %v1561 = vld [vmem:[%s1560] ss:$2 sm:$0xff]
    %s1562 = scalar_lea.vmem %s456, 770 [#allocation2]
    %v1563 = vld [vmem:[%s1562] ss:$2 sm:$0xff]
    %1580 = vrot.lane.b32.xlu0 %v1533, 40
    %v1581 = vpop.permute.xlu0 %1580
    %1582 = vrot.lane.b32.xlu0 %v1535, 40
    %v1583 = vpop.permute.xlu0 %1582
    %1584 = vrot.lane.b32.xlu0 %v1537, 40
    %v1585 = vpop.permute.xlu0 %1584
    %1586 = vrot.lane.b32.xlu0 %v1539, 40
    %v1587 = vpop.permute.xlu0 %1586
    %1588 = vrot.lane.b32.xlu0 %v1541, 40
    %v1589 = vpop.permute.xlu0 %1588
    %1590 = vrot.lane.b32.xlu0 %v1543, 40
    %v1591 = vpop.permute.xlu0 %1590
    %1592 = vrot.lane.b32.xlu0 %v1545, 40
    %v1593 = vpop.permute.xlu0 %1592
    %1594 = vrot.lane.b32.xlu0 %v1547, 40
    %v1595 = vpop.permute.xlu0 %1594
    %1596 = vrot.lane.b32.xlu0 %v1549, 40
    %v1597 = vpop.permute.xlu0 %1596
    %1598 = vrot.lane.b32.xlu0 %v1551, 40
    %v1599 = vpop.permute.xlu0 %1598
    %1600 = vrot.lane.b32.xlu0 %v1553, 40
    %v1601 = vpop.permute.xlu0 %1600
    %1602 = vrot.lane.b32.xlu0 %v1555, 40
    %v1603 = vpop.permute.xlu0 %1602
    %1604 = vrot.lane.b32.xlu0 %v1557, 40
    %v1605 = vpop.permute.xlu0 %1604
    %1606 = vrot.lane.b32.xlu0 %v1559, 40
    %v1607 = vpop.permute.xlu0 %1606
    %1608 = vrot.lane.b32.xlu0 %v1561, 40
    %v1609 = vpop.permute.xlu0 %1608
    %1610 = vrot.lane.b32.xlu0 %v1563, 40
    %v1611 = vpop.permute.xlu0 %1610
    %vm1628 = vcmask 392512
    %1629 = vst.msk [vmem:[#allocation3] sm:$0xff] %vm1628, %v1581
    %1630 = vst.msk [vmem:[#allocation3 + $0x8] sm:$0xff] %vm1628, %v1583
    %1631 = vst.msk [vmem:[#allocation3 + $0x10] sm:$0xff] %vm1628, %v1585
    %1632 = vst.msk [vmem:[#allocation3 + $0x18] sm:$0xff] %vm1628, %v1587
    %1633 = vst.msk [vmem:[#allocation3 + $0x20] sm:$0xff] %vm1628, %v1589
    %1634 = vst.msk [vmem:[#allocation3 + $0x28] sm:$0xff] %vm1628, %v1591
    %1635 = vst.msk [vmem:[#allocation3 + $0x30] sm:$0xff] %vm1628, %v1593
    %1636 = vst.msk [vmem:[#allocation3 + $0x38] sm:$0xff] %vm1628, %v1595
    %1637 = vst.msk [vmem:[#allocation3 + $0x40] sm:$0xff] %vm1628, %v1597
    %1638 = vst.msk [vmem:[#allocation3 + $0x48] sm:$0xff] %vm1628, %v1599
    %1639 = vst.msk [vmem:[#allocation3 + $0x50] sm:$0xff] %vm1628, %v1601
    %1640 = vst.msk [vmem:[#allocation3 + $0x58] sm:$0xff] %vm1628, %v1603
    %1641 = vst.msk [vmem:[#allocation3 + $0x60] sm:$0xff] %vm1628, %v1605
    %1642 = vst.msk [vmem:[#allocation3 + $0x68] sm:$0xff] %vm1628, %v1607
    %1643 = vst.msk [vmem:[#allocation3 + $0x70] sm:$0xff] %vm1628, %v1609
    %1644 = vst.msk [vmem:[#allocation3 + $0x78] sm:$0xff] %vm1628, %v1611
    %s1645 = scalar_lea.vmem [#allocation2], 48
    %v1646 = vld [vmem:[%s1645] ss:$2 sm:$0xff]
    %s1647 = scalar_lea.vmem %s1645, 48 [#allocation2]
    %v1648 = vld [vmem:[%s1647] ss:$2 sm:$0xff]
    %s1649 = scalar_lea.vmem %s1645, 96 [#allocation2]
    %v1650 = vld [vmem:[%s1649] ss:$2 sm:$0xff]
    %s1651 = scalar_lea.vmem %s1645, 144 [#allocation2]
    %v1652 = vld [vmem:[%s1651] ss:$2 sm:$0xff]
    %s1653 = scalar_lea.vmem %s1645, 192 [#allocation2]
    %v1654 = vld [vmem:[%s1653] ss:$2 sm:$0xff]
    %s1655 = scalar_lea.vmem %s1645, 240 [#allocation2]
    %v1656 = vld [vmem:[%s1655] ss:$2 sm:$0xff]
    %s1657 = scalar_lea.vmem %s1645, 288 [#allocation2]
    %v1658 = vld [vmem:[%s1657] ss:$2 sm:$0xff]
    %s1659 = scalar_lea.vmem %s1645, 336 [#allocation2]
    %v1660 = vld [vmem:[%s1659] ss:$2 sm:$0xff]
    %s1661 = scalar_lea.vmem %s1645, 432 [#allocation2]
    %v1662 = vld [vmem:[%s1661] ss:$2 sm:$0xff]
    %s1663 = scalar_lea.vmem %s1645, 480 [#allocation2]
    %v1664 = vld [vmem:[%s1663] ss:$2 sm:$0xff]
    %s1665 = scalar_lea.vmem %s1645, 528 [#allocation2]
    %v1666 = vld [vmem:[%s1665] ss:$2 sm:$0xff]
    %s1667 = scalar_lea.vmem %s1645, 576 [#allocation2]
    %v1668 = vld [vmem:[%s1667] ss:$2 sm:$0xff]
    %s1669 = scalar_lea.vmem %s1645, 624 [#allocation2]
    %v1670 = vld [vmem:[%s1669] ss:$2 sm:$0xff]
    %s1671 = scalar_lea.vmem %s1645, 672 [#allocation2]
    %v1672 = vld [vmem:[%s1671] ss:$2 sm:$0xff]
    %s1673 = scalar_lea.vmem %s1645, 720 [#allocation2]
    %v1674 = vld [vmem:[%s1673] ss:$2 sm:$0xff]
    %s1675 = scalar_lea.vmem %s1645, 768 [#allocation2]
    %v1676 = vld [vmem:[%s1675] ss:$2 sm:$0xff]
    %1693 = vrot.lane.b32.xlu0 %v1646, 48
    %v1694 = vpop.permute.xlu0 %1693
    %1695 = vrot.lane.b32.xlu0 %v1648, 48
    %v1696 = vpop.permute.xlu0 %1695
    %1697 = vrot.lane.b32.xlu0 %v1650, 48
    %v1698 = vpop.permute.xlu0 %1697
    %1699 = vrot.lane.b32.xlu0 %v1652, 48
    %v1700 = vpop.permute.xlu0 %1699
    %1701 = vrot.lane.b32.xlu0 %v1654, 48
    %v1702 = vpop.permute.xlu0 %1701
    %1703 = vrot.lane.b32.xlu0 %v1656, 48
    %v1704 = vpop.permute.xlu0 %1703
    %1705 = vrot.lane.b32.xlu0 %v1658, 48
    %v1706 = vpop.permute.xlu0 %1705
    %1707 = vrot.lane.b32.xlu0 %v1660, 48
    %v1708 = vpop.permute.xlu0 %1707
    %1709 = vrot.lane.b32.xlu0 %v1662, 48
    %v1710 = vpop.permute.xlu0 %1709
    %1711 = vrot.lane.b32.xlu0 %v1664, 48
    %v1712 = vpop.permute.xlu0 %1711
    %1713 = vrot.lane.b32.xlu0 %v1666, 48
    %v1714 = vpop.permute.xlu0 %1713
    %1715 = vrot.lane.b32.xlu0 %v1668, 48
    %v1716 = vpop.permute.xlu0 %1715
    %1717 = vrot.lane.b32.xlu0 %v1670, 48
    %v1718 = vpop.permute.xlu0 %1717
    %1719 = vrot.lane.b32.xlu0 %v1672, 48
    %v1720 = vpop.permute.xlu0 %1719
    %1721 = vrot.lane.b32.xlu0 %v1674, 48
    %v1722 = vpop.permute.xlu0 %1721
    %1723 = vrot.lane.b32.xlu0 %v1676, 48
    %v1724 = vpop.permute.xlu0 %1723
    %vm1741 = vcmask 458112
    %1742 = vst.msk [vmem:[#allocation3] sm:$0xff] %vm1741, %v1694
    %1743 = vst.msk [vmem:[#allocation3 + $0x8] sm:$0xff] %vm1741, %v1696
    %1744 = vst.msk [vmem:[#allocation3 + $0x10] sm:$0xff] %vm1741, %v1698
    %1745 = vst.msk [vmem:[#allocation3 + $0x18] sm:$0xff] %vm1741, %v1700
    %1746 = vst.msk [vmem:[#allocation3 + $0x20] sm:$0xff] %vm1741, %v1702
    %1747 = vst.msk [vmem:[#allocation3 + $0x28] sm:$0xff] %vm1741, %v1704
    %1748 = vst.msk [vmem:[#allocation3 + $0x30] sm:$0xff] %vm1741, %v1706
    %1749 = vst.msk [vmem:[#allocation3 + $0x38] sm:$0xff] %vm1741, %v1708
    %1750 = vst.msk [vmem:[#allocation3 + $0x40] sm:$0xff] %vm1741, %v1710
    %1751 = vst.msk [vmem:[#allocation3 + $0x48] sm:$0xff] %vm1741, %v1712
    %1752 = vst.msk [vmem:[#allocation3 + $0x50] sm:$0xff] %vm1741, %v1714
    %1753 = vst.msk [vmem:[#allocation3 + $0x58] sm:$0xff] %vm1741, %v1716
    %1754 = vst.msk [vmem:[#allocation3 + $0x60] sm:$0xff] %vm1741, %v1718
    %1755 = vst.msk [vmem:[#allocation3 + $0x68] sm:$0xff] %vm1741, %v1720
    %1756 = vst.msk [vmem:[#allocation3 + $0x70] sm:$0xff] %vm1741, %v1722
    %1757 = vst.msk [vmem:[#allocation3 + $0x78] sm:$0xff] %vm1741, %v1724
    %s1758 = scalar_lea.vmem %s1645, 1 [#allocation2]
    %v1759 = vld [vmem:[%s1758] ss:$2 sm:$0xff]
    %s1760 = scalar_lea.vmem %s1645, 49 [#allocation2]
    %v1761 = vld [vmem:[%s1760] ss:$2 sm:$0xff]
    %s1762 = scalar_lea.vmem %s1645, 97 [#allocation2]
    %v1763 = vld [vmem:[%s1762] ss:$2 sm:$0xff]
    %s1764 = scalar_lea.vmem %s1645, 145 [#allocation2]
    %v1765 = vld [vmem:[%s1764] ss:$2 sm:$0xff]
    %s1766 = scalar_lea.vmem %s1645, 193 [#allocation2]
    %v1767 = vld [vmem:[%s1766] ss:$2 sm:$0xff]
    %s1768 = scalar_lea.vmem %s1645, 241 [#allocation2]
    %v1769 = vld [vmem:[%s1768] ss:$2 sm:$0xff]
    %s1770 = scalar_lea.vmem %s1645, 289 [#allocation2]
    %v1771 = vld [vmem:[%s1770] ss:$2 sm:$0xff]
    %s1772 = scalar_lea.vmem %s1645, 337 [#allocation2]
    %v1773 = vld [vmem:[%s1772] ss:$2 sm:$0xff]
    %s1774 = scalar_lea.vmem %s1645, 433 [#allocation2]
    %v1775 = vld [vmem:[%s1774] ss:$2 sm:$0xff]
    %s1776 = scalar_lea.vmem %s1645, 481 [#allocation2]
    %v1777 = vld [vmem:[%s1776] ss:$2 sm:$0xff]
    %s1778 = scalar_lea.vmem %s1645, 529 [#allocation2]
    %v1779 = vld [vmem:[%s1778] ss:$2 sm:$0xff]
    %s1780 = scalar_lea.vmem %s1645, 577 [#allocation2]
    %v1781 = vld [vmem:[%s1780] ss:$2 sm:$0xff]
    %s1782 = scalar_lea.vmem %s1645, 625 [#allocation2]
    %v1783 = vld [vmem:[%s1782] ss:$2 sm:$0xff]
    %s1784 = scalar_lea.vmem %s1645, 673 [#allocation2]
    %v1785 = vld [vmem:[%s1784] ss:$2 sm:$0xff]
    %s1786 = scalar_lea.vmem %s1645, 721 [#allocation2]
    %v1787 = vld [vmem:[%s1786] ss:$2 sm:$0xff]
    %s1788 = scalar_lea.vmem %s1645, 769 [#allocation2]
    %v1789 = vld [vmem:[%s1788] ss:$2 sm:$0xff]
    %1806 = vrot.lane.b32.xlu0 %v1759, 56
    %v1807 = vpop.permute.xlu0 %1806
    %1808 = vrot.lane.b32.xlu0 %v1761, 56
    %v1809 = vpop.permute.xlu0 %1808
    %1810 = vrot.lane.b32.xlu0 %v1763, 56
    %v1811 = vpop.permute.xlu0 %1810
    %1812 = vrot.lane.b32.xlu0 %v1765, 56
    %v1813 = vpop.permute.xlu0 %1812
    %1814 = vrot.lane.b32.xlu0 %v1767, 56
    %v1815 = vpop.permute.xlu0 %1814
    %1816 = vrot.lane.b32.xlu0 %v1769, 56
    %v1817 = vpop.permute.xlu0 %1816
    %1818 = vrot.lane.b32.xlu0 %v1771, 56
    %v1819 = vpop.permute.xlu0 %1818
    %1820 = vrot.lane.b32.xlu0 %v1773, 56
    %v1821 = vpop.permute.xlu0 %1820
    %1822 = vrot.lane.b32.xlu0 %v1775, 56
    %v1823 = vpop.permute.xlu0 %1822
    %1824 = vrot.lane.b32.xlu0 %v1777, 56
    %v1825 = vpop.permute.xlu0 %1824
    %1826 = vrot.lane.b32.xlu0 %v1779, 56
    %v1827 = vpop.permute.xlu0 %1826
    %1828 = vrot.lane.b32.xlu0 %v1781, 56
    %v1829 = vpop.permute.xlu0 %1828
    %1830 = vrot.lane.b32.xlu0 %v1783, 56
    %v1831 = vpop.permute.xlu0 %1830
    %1832 = vrot.lane.b32.xlu0 %v1785, 56
    %v1833 = vpop.permute.xlu0 %1832
    %1834 = vrot.lane.b32.xlu0 %v1787, 56
    %v1835 = vpop.permute.xlu0 %1834
    %1836 = vrot.lane.b32.xlu0 %v1789, 56
    %v1837 = vpop.permute.xlu0 %1836
    %vm1854 = vcmask 523712
    %1855 = vst.msk [vmem:[#allocation3] sm:$0xff] %vm1854, %v1807
    %1856 = vst.msk [vmem:[#allocation3 + $0x8] sm:$0xff] %vm1854, %v1809
    %1857 = vst.msk [vmem:[#allocation3 + $0x10] sm:$0xff] %vm1854, %v1811
    %1858 = vst.msk [vmem:[#allocation3 + $0x18] sm:$0xff] %vm1854, %v1813
    %1859 = vst.msk [vmem:[#allocation3 + $0x20] sm:$0xff] %vm1854, %v1815
    %1860 = vst.msk [vmem:[#allocation3 + $0x28] sm:$0xff] %vm1854, %v1817
    %1861 = vst.msk [vmem:[#allocation3 + $0x30] sm:$0xff] %vm1854, %v1819
    %1862 = vst.msk [vmem:[#allocation3 + $0x38] sm:$0xff] %vm1854, %v1821
    %1863 = vst.msk [vmem:[#allocation3 + $0x40] sm:$0xff] %vm1854, %v1823
    %1864 = vst.msk [vmem:[#allocation3 + $0x48] sm:$0xff] %vm1854, %v1825
    %1865 = vst.msk [vmem:[#allocation3 + $0x50] sm:$0xff] %vm1854, %v1827
    %1866 = vst.msk [vmem:[#allocation3 + $0x58] sm:$0xff] %vm1854, %v1829
    %1867 = vst.msk [vmem:[#allocation3 + $0x60] sm:$0xff] %vm1854, %v1831
    %1868 = vst.msk [vmem:[#allocation3 + $0x68] sm:$0xff] %vm1854, %v1833
    %1869 = vst.msk [vmem:[#allocation3 + $0x70] sm:$0xff] %vm1854, %v1835
    %1870 = vst.msk [vmem:[#allocation3 + $0x78] sm:$0xff] %vm1854, %v1837
    %s1871 = scalar_lea.vmem %s1645, 2 [#allocation2]
    %v1872 = vld [vmem:[%s1871] ss:$2 sm:$0xff]
    %s1873 = scalar_lea.vmem %s1645, 50 [#allocation2]
    %v1874 = vld [vmem:[%s1873] ss:$2 sm:$0xff]
    %s1875 = scalar_lea.vmem %s1645, 98 [#allocation2]
    %v1876 = vld [vmem:[%s1875] ss:$2 sm:$0xff]
    %s1877 = scalar_lea.vmem %s1645, 146 [#allocation2]
    %v1878 = vld [vmem:[%s1877] ss:$2 sm:$0xff]
    %s1879 = scalar_lea.vmem %s1645, 194 [#allocation2]
    %v1880 = vld [vmem:[%s1879] ss:$2 sm:$0xff]
    %s1881 = scalar_lea.vmem %s1645, 242 [#allocation2]
    %v1882 = vld [vmem:[%s1881] ss:$2 sm:$0xff]
    %s1883 = scalar_lea.vmem %s1645, 290 [#allocation2]
    %v1884 = vld [vmem:[%s1883] ss:$2 sm:$0xff]
    %s1885 = scalar_lea.vmem %s1645, 338 [#allocation2]
    %v1886 = vld [vmem:[%s1885] ss:$2 sm:$0xff]
    %s1887 = scalar_lea.vmem %s1645, 434 [#allocation2]
    %v1888 = vld [vmem:[%s1887] ss:$2 sm:$0xff]
    %s1889 = scalar_lea.vmem %s1645, 482 [#allocation2]
    %v1890 = vld [vmem:[%s1889] ss:$2 sm:$0xff]
    %s1891 = scalar_lea.vmem %s1645, 530 [#allocation2]
    %v1892 = vld [vmem:[%s1891] ss:$2 sm:$0xff]
    %s1893 = scalar_lea.vmem %s1645, 578 [#allocation2]
    %v1894 = vld [vmem:[%s1893] ss:$2 sm:$0xff]
    %s1895 = scalar_lea.vmem %s1645, 626 [#allocation2]
    %v1896 = vld [vmem:[%s1895] ss:$2 sm:$0xff]
    %s1897 = scalar_lea.vmem %s1645, 674 [#allocation2]
    %v1898 = vld [vmem:[%s1897] ss:$2 sm:$0xff]
    %s1899 = scalar_lea.vmem %s1645, 722 [#allocation2]
    %v1900 = vld [vmem:[%s1899] ss:$2 sm:$0xff]
    %s1901 = scalar_lea.vmem %s1645, 770 [#allocation2]
    %v1902 = vld [vmem:[%s1901] ss:$2 sm:$0xff]
    %1919 = vrot.lane.b32.xlu0 %v1872, 64
    %v1920 = vpop.permute.xlu0 %1919
    %1921 = vrot.lane.b32.xlu0 %v1874, 64
    %v1922 = vpop.permute.xlu0 %1921
    %1923 = vrot.lane.b32.xlu0 %v1876, 64
    %v1924 = vpop.permute.xlu0 %1923
    %1925 = vrot.lane.b32.xlu0 %v1878, 64
    %v1926 = vpop.permute.xlu0 %1925
    %1927 = vrot.lane.b32.xlu0 %v1880, 64
    %v1928 = vpop.permute.xlu0 %1927
    %1929 = vrot.lane.b32.xlu0 %v1882, 64
    %v1930 = vpop.permute.xlu0 %1929
    %1931 = vrot.lane.b32.xlu0 %v1884, 64
    %v1932 = vpop.permute.xlu0 %1931
    %1933 = vrot.lane.b32.xlu0 %v1886, 64
    %v1934 = vpop.permute.xlu0 %1933
    %1935 = vrot.lane.b32.xlu0 %v1888, 64
    %v1936 = vpop.permute.xlu0 %1935
    %1937 = vrot.lane.b32.xlu0 %v1890, 64
    %v1938 = vpop.permute.xlu0 %1937
    %1939 = vrot.lane.b32.xlu0 %v1892, 64
    %v1940 = vpop.permute.xlu0 %1939
    %1941 = vrot.lane.b32.xlu0 %v1894, 64
    %v1942 = vpop.permute.xlu0 %1941
    %1943 = vrot.lane.b32.xlu0 %v1896, 64
    %v1944 = vpop.permute.xlu0 %1943
    %1945 = vrot.lane.b32.xlu0 %v1898, 64
    %v1946 = vpop.permute.xlu0 %1945
    %1947 = vrot.lane.b32.xlu0 %v1900, 64
    %v1948 = vpop.permute.xlu0 %1947
    %1949 = vrot.lane.b32.xlu0 %v1902, 64
    %v1950 = vpop.permute.xlu0 %1949
    %vm1967 = vcmask 589312
    %1968 = vst.msk [vmem:[#allocation3] sm:$0xff] %vm1967, %v1920
    %1969 = vst.msk [vmem:[#allocation3 + $0x8] sm:$0xff] %vm1967, %v1922
    %1970 = vst.msk [vmem:[#allocation3 + $0x10] sm:$0xff] %vm1967, %v1924
    %1971 = vst.msk [vmem:[#allocation3 + $0x18] sm:$0xff] %vm1967, %v1926
    %1972 = vst.msk [vmem:[#allocation3 + $0x20] sm:$0xff] %vm1967, %v1928
    %1973 = vst.msk [vmem:[#allocation3 + $0x28] sm:$0xff] %vm1967, %v1930
    %1974 = vst.msk [vmem:[#allocation3 + $0x30] sm:$0xff] %vm1967, %v1932
    %1975 = vst.msk [vmem:[#allocation3 + $0x38] sm:$0xff] %vm1967, %v1934
    %1976 = vst.msk [vmem:[#allocation3 + $0x40] sm:$0xff] %vm1967, %v1936
    %1977 = vst.msk [vmem:[#allocation3 + $0x48] sm:$0xff] %vm1967, %v1938
    %1978 = vst.msk [vmem:[#allocation3 + $0x50] sm:$0xff] %vm1967, %v1940
    %1979 = vst.msk [vmem:[#allocation3 + $0x58] sm:$0xff] %vm1967, %v1942
    %1980 = vst.msk [vmem:[#allocation3 + $0x60] sm:$0xff] %vm1967, %v1944
    %1981 = vst.msk [vmem:[#allocation3 + $0x68] sm:$0xff] %vm1967, %v1946
    %1982 = vst.msk [vmem:[#allocation3 + $0x70] sm:$0xff] %vm1967, %v1948
    %1983 = vst.msk [vmem:[#allocation3 + $0x78] sm:$0xff] %vm1967, %v1950
    %v1984 = vld [vmem:[#allocation3] sm:$0xff]
    %v1985 = vld [vmem:[#allocation3 + $0x8] sm:$0xff]
    %v1986 = vld [vmem:[#allocation3 + $0x10] sm:$0xff]
    %v1987 = vld [vmem:[#allocation3 + $0x18] sm:$0xff]
    %v1988 = vld [vmem:[#allocation3 + $0x20] sm:$0xff]
    %v1989 = vld [vmem:[#allocation3 + $0x28] sm:$0xff]
    %v1990 = vld [vmem:[#allocation3 + $0x30] sm:$0xff]
    %v1991 = vld [vmem:[#allocation3 + $0x38] sm:$0xff]
    %v1992 = vld [vmem:[#allocation3 + $0x40] sm:$0xff]
    %v1993 = vld [vmem:[#allocation3 + $0x48] sm:$0xff]
    %v1994 = vld [vmem:[#allocation3 + $0x50] sm:$0xff]
    %v1995 = vld [vmem:[#allocation3 + $0x58] sm:$0xff]
    %v1996 = vld [vmem:[#allocation3 + $0x60] sm:$0xff]
    %v1997 = vld [vmem:[#allocation3 + $0x68] sm:$0xff]
    %v1998 = vld [vmem:[#allocation3 + $0x70] sm:$0xff]
    %v1999 = vld [vmem:[#allocation3 + $0x78] sm:$0xff]
    %v2000 = vpack.c.bf16 %v1985, %v1984
    %v2001 = vpack.c.bf16 %v1987, %v1986
    %v2002 = vpack.c.bf16 %v1989, %v1988
    %v2003 = vpack.c.bf16 %v1991, %v1990
    %v2004 = vpack.c.bf16 %v1993, %v1992
    %v2005 = vpack.c.bf16 %v1995, %v1994
    %v2006 = vpack.c.bf16 %v1997, %v1996
    %v2007 = vpack.c.bf16 %v1999, %v1998
    %v2008 = vld [vmem:[%s4] sm:$0xf]
    %v2009 = vld [vmem:[%s4 + $0x4] sm:$0xf]
    %v2010 = vld [vmem:[%s4 + $0x8] sm:$0xf]
    %v2011 = vld [vmem:[%s4 + $0xc] sm:$0xf]
    %v2012 = vld [vmem:[%s4 + $0x10] sm:$0xf]
    %v2013 = vld [vmem:[%s4 + $0x14] sm:$0xf]
    %v2014 = vld [vmem:[%s4 + $0x18] sm:$0xf]
    %v2015 = vld [vmem:[%s4 + $0x1c] sm:$0xf]
    %v2016 = vld [vmem:[%s4 + $0x20] sm:$0xf]
    %v2026 = vunpack.c.l.b16 %v2008
    %v2027 = vunpack.c.l.b16 %v2009
    %v2028 = vunpack.c.l.b16 %v2010
    %v2029 = vunpack.c.l.b16 %v2011
    %v2030 = vunpack.c.l.b16 %v2012
    %v2031 = vunpack.c.l.b16 %v2013
    %v2032 = vunpack.c.l.b16 %v2014
    %v2033 = vunpack.c.l.b16 %v2015
    %v2034 = vunpack.c.l.b16 %v2016
    %v2035 = vpack.c.b16 %v2027, %v2026
    %v2036 = vpack.c.b16 %v2029, %v2028
    %v2037 = vpack.c.b16 %v2031, %v2030
    %v2038 = vpack.c.b16 %v2033, %v2032
    %v2039 = vpack.c.b16 %v2034, %v2034
    %vm2044 = vcmask 588800
    %v2046 = vsel %vm2044, %v2000, 0
    %v2049 = vsel %vm2044, %v2001, 0
    %v2052 = vsel %vm2044, %v2002, 0
    %v2055 = vsel %vm2044, %v2003, 0
    %v2058 = vsel %vm2044, %v2004, 0
    %v2061 = vsel %vm2044, %v2005, 0
    %v2064 = vsel %vm2044, %v2006, 0
    %v2067 = vsel %vm2044, %v2007, 0
    %vm2069 = vcmask 1043456
    %v2071 = vsel %vm2069, %v2039, 0
    %2073 = vmatprep.subr.bf16.mxu0 0
    %2074 = vmatpush1.bf16.msra.mxu0 %v2035
    %2075 = vmatprep.subr.bf16.mxu0 0
    %2076 = vmatpush1.bf16.msra.mxu0 %v2036
    %2077 = vmatprep.subr.bf16.mxu0 0
    %2078 = vmatpush1.bf16.msra.mxu0 %v2037
    %2079 = vmatprep.subr.bf16.mxu0 0
    %2080 = vmatpush1.bf16.msra.mxu0 %v2038
    %2081 = vmatprep.subr.bf16.mxu0 0
    %2082 = vmatpush1.bf16.msra.mxu0 %v2071
    %2083 = vmatprep.subr.bf16.mxu0 0
    %2084 = vmatpush1.bf16.msra.mxu0 0
    %2085 = vmatprep.subr.bf16.mxu0 0
    %2086 = vmatpush1.bf16.msra.mxu0 0
    %2087 = vmatprep.subr.bf16.mxu0 0
    %2088 = vmatpush1.bf16.msra.mxu0 0
    %2089 = vmatprep.subr.bf16.mxu0 0
    %2090 = vmatpush1.bf16.msra.mxu0 0
    %2091 = vmatprep.subr.bf16.mxu0 0
    %2092 = vmatpush1.bf16.msra.mxu0 0
    %2093 = vmatprep.subr.bf16.mxu0 0
    %2094 = vmatpush1.bf16.msra.mxu0 0
    %2095 = vmatprep.subr.bf16.mxu0 0
    %2096 = vmatpush1.bf16.msra.mxu0 0
    %2097 = vmatprep.subr.bf16.mxu0 0
    %2098 = vmatpush1.bf16.msra.mxu0 0
    %2099 = vmatprep.subr.bf16.mxu0 0
    %2100 = vmatpush1.bf16.msra.mxu0 0
    %2101 = vmatprep.subr.bf16.mxu0 0
    %2102 = vmatpush1.bf16.msra.mxu0 0
    %2103 = vmatprep.subr.bf16.mxu0 0
    %2104 = vmatpush1.bf16.msra.mxu0 0
    %2105 = vmatprep.mubr.bf16.mxu0 0
    %2106 = vmatmul.mubr.bf16.gmra.mrb[0].mxu0 %v2046
    %v2107 = vpop.f32.mrb[0].mxu0
    %v2108 = vadd.f32 0.0, %v2107
    %v2109 = vpop.f32.mrb[0].mxu0
    %v2110 = vpop.f32.mrb[0].mxu0
    %v2111 = vadd.f32 0.0, %v2110
    %v2112 = vpop.f32.mrb[0].mxu0
    %2113 = vmatprep.mubr.bf16.mxu0 0
    %2114 = vmatmul.mubr.bf16.gmra.mrb[0].mxu0 %v2049
    %v2115 = vpop.f32.mrb[0].mxu0
    %v2116 = vadd.f32 0.0, %v2115
    %v2117 = vpop.f32.mrb[0].mxu0
    %v2118 = vpop.f32.mrb[0].mxu0
    %v2119 = vadd.f32 0.0, %v2118
    %v2120 = vpop.f32.mrb[0].mxu0
    %2121 = vmatprep.mubr.bf16.mxu0 0
    %2122 = vmatmul.mubr.bf16.gmra.mrb[0].mxu0 %v2052
    %v2123 = vpop.f32.mrb[0].mxu0
    %v2124 = vadd.f32 0.0, %v2123
    %v2125 = vpop.f32.mrb[0].mxu0
    %v2126 = vpop.f32.mrb[0].mxu0
    %v2127 = vadd.f32 0.0, %v2126
    %v2128 = vpop.f32.mrb[0].mxu0
    %2129 = vmatprep.mubr.bf16.mxu0 0
    %2130 = vmatmul.mubr.bf16.gmra.mrb[0].mxu0 %v2055
    %v2131 = vpop.f32.mrb[0].mxu0
    %v2132 = vadd.f32 0.0, %v2131
    %v2133 = vpop.f32.mrb[0].mxu0
    %v2134 = vpop.f32.mrb[0].mxu0
    %v2135 = vadd.f32 0.0, %v2134
    %v2136 = vpop.f32.mrb[0].mxu0
    %2137 = vmatprep.mubr.bf16.mxu0 0
    %2138 = vmatmul.mubr.bf16.gmra.mrb[0].mxu0 %v2058
    %v2139 = vpop.f32.mrb[0].mxu0
    %v2140 = vadd.f32 0.0, %v2139
    %v2141 = vpop.f32.mrb[0].mxu0
    %v2142 = vpop.f32.mrb[0].mxu0
    %v2143 = vadd.f32 0.0, %v2142
    %v2144 = vpop.f32.mrb[0].mxu0
    %2145 = vmatprep.mubr.bf16.mxu0 0
    %2146 = vmatmul.mubr.bf16.gmra.mrb[0].mxu0 %v2061
    %v2147 = vpop.f32.mrb[0].mxu0
    %v2148 = vadd.f32 0.0, %v2147
    %v2149 = vpop.f32.mrb[0].mxu0
    %v2150 = vpop.f32.mrb[0].mxu0
    %v2151 = vadd.f32 0.0, %v2150
    %v2152 = vpop.f32.mrb[0].mxu0
    %2153 = vmatprep.mubr.bf16.mxu0 0
    %2154 = vmatmul.mubr.bf16.gmra.mrb[0].mxu0 %v2064
    %v2155 = vpop.f32.mrb[0].mxu0
    %v2156 = vadd.f32 0.0, %v2155
    %v2157 = vpop.f32.mrb[0].mxu0
    %v2158 = vpop.f32.mrb[0].mxu0
    %v2159 = vadd.f32 0.0, %v2158
    %v2160 = vpop.f32.mrb[0].mxu0
    %2161 = vmatprep.mubr.bf16.mxu0 0
    %2162 = vmatmul.mubr.bf16.gmra.mrb[0].mxu0 %v2067
    %v2163 = vpop.f32.mrb[0].mxu0
    %v2164 = vadd.f32 0.0, %v2163
    %v2165 = vpop.f32.mrb[0].mxu0
    %v2166 = vpop.f32.mrb[0].mxu0
    %v2167 = vadd.f32 0.0, %v2166
    %v2168 = vpop.f32.mrb[0].mxu0
    %2169 = vdwg.mxu0
    %v2170 = vld [vmem:[%s5] sm:$0x1]
    %v2172 = vlaneseq
    %v2173 = vshrl.u32 %v2172, 7
    %v2174 = vsub.s32 0, %v2173
    %v2175 = vrot.slane %v2170, %v2174
    %v2177 = vmul.f32 %v2108, %v2175
    %v2178 = vmul.f32 %v2111, %v2175
    %v2179 = vmul.f32 %v2116, %v2175
    %v2180 = vmul.f32 %v2119, %v2175
    %v2181 = vmul.f32 %v2124, %v2175
    %v2182 = vmul.f32 %v2127, %v2175
    %v2183 = vmul.f32 %v2132, %v2175
    %v2184 = vmul.f32 %v2135, %v2175
    %v2185 = vmul.f32 %v2140, %v2175
    %v2186 = vmul.f32 %v2143, %v2175
    %v2187 = vmul.f32 %v2148, %v2175
    %v2188 = vmul.f32 %v2151, %v2175
    %v2189 = vmul.f32 %v2156, %v2175
    %v2190 = vmul.f32 %v2159, %v2175
    %v2191 = vmul.f32 %v2164, %v2175
    %v2192 = vmul.f32 %v2167, %v2175
    %v2193 = vld [vmem:[%s6] sm:$0x1]
    %v2195 = vlaneseq
    %v2196 = vshrl.u32 %v2195, 7
    %v2197 = vsub.s32 0, %v2196
    %v2198 = vrot.slane %v2193, %v2197
    %v2200 = vadd.f32 %v2177, %v2198
    %v2201 = vadd.f32 %v2178, %v2198
    %v2202 = vadd.f32 %v2179, %v2198
    %v2203 = vadd.f32 %v2180, %v2198
    %v2204 = vadd.f32 %v2181, %v2198
    %v2205 = vadd.f32 %v2182, %v2198
    %v2206 = vadd.f32 %v2183, %v2198
    %v2207 = vadd.f32 %v2184, %v2198
    %v2208 = vadd.f32 %v2185, %v2198
    %v2209 = vadd.f32 %v2186, %v2198
    %v2210 = vadd.f32 %v2187, %v2198
    %v2211 = vadd.f32 %v2188, %v2198
    %v2212 = vadd.f32 %v2189, %v2198
    %v2213 = vadd.f32 %v2190, %v2198
    %v2214 = vadd.f32 %v2191, %v2198
    %v2215 = vadd.f32 %v2192, %v2198
    %v2216 = vmax.f32 %v2200, 0.0
    %v2217 = vmax.f32 %v2201, 0.0
    %v2218 = vmax.f32 %v2202, 0.0
    %v2219 = vmax.f32 %v2203, 0.0
    %v2220 = vmax.f32 %v2204, 0.0
    %v2221 = vmax.f32 %v2205, 0.0
    %v2222 = vmax.f32 %v2206, 0.0
    %v2223 = vmax.f32 %v2207, 0.0
    %v2224 = vmax.f32 %v2208, 0.0
    %v2225 = vmax.f32 %v2209, 0.0
    %v2226 = vmax.f32 %v2210, 0.0
    %v2227 = vmax.f32 %v2211, 0.0
    %v2228 = vmax.f32 %v2212, 0.0
    %v2229 = vmax.f32 %v2213, 0.0
    %v2230 = vmax.f32 %v2214, 0.0
    %v2231 = vmax.f32 %v2215, 0.0
    %v2232 = vpack.c.bf16 %v2217, %v2216
    %v2233 = vpack.c.bf16 %v2219, %v2218
    %v2234 = vpack.c.bf16 %v2221, %v2220
    %v2235 = vpack.c.bf16 %v2223, %v2222
    %v2236 = vpack.c.bf16 %v2225, %v2224
    %v2237 = vpack.c.bf16 %v2227, %v2226
    %v2238 = vpack.c.bf16 %v2229, %v2228
    %v2239 = vpack.c.bf16 %v2231, %v2230
    %v2240 = vld [vmem:[%s7] sm:$0xf]
    %v2242 = vsel %vm99, %v2232, 0
    %v2245 = vsel %vm99, %v2233, 0
    %v2248 = vsel %vm99, %v2234, 0
    %v2251 = vsel %vm99, %v2235, 0
    %v2254 = vsel %vm99, %v2236, 0
    %v2257 = vsel %vm99, %v2237, 0
    %v2260 = vsel %vm99, %v2238, 0
    %v2263 = vsel %vm99, %v2239, 0
    %v2266 = vsel %vm2069, %v2240, 0
    %2268 = vmatprep.subr.bf16.mxu0 0
    %2269 = vmatpush1.bf16.msra.mxu0 %v2266
    %2270 = vmatprep.subr.bf16.mxu0 0
    %2271 = vmatpush1.bf16.msra.mxu0 0
    %2272 = vmatprep.subr.bf16.mxu0 0
    %2273 = vmatpush1.bf16.msra.mxu0 0
    %2274 = vmatprep.subr.bf16.mxu0 0
    %2275 = vmatpush1.bf16.msra.mxu0 0
    %2276 = vmatprep.subr.bf16.mxu0 0
    %2277 = vmatpush1.bf16.msra.mxu0 0
    %2278 = vmatprep.subr.bf16.mxu0 0
    %2279 = vmatpush1.bf16.msra.mxu0 0
    %2280 = vmatprep.subr.bf16.mxu0 0
    %2281 = vmatpush1.bf16.msra.mxu0 0
    %2282 = vmatprep.subr.bf16.mxu0 0
    %2283 = vmatpush1.bf16.msra.mxu0 0
    %2284 = vmatprep.subr.bf16.mxu0 0
    %2285 = vmatpush1.bf16.msra.mxu0 0
    %2286 = vmatprep.subr.bf16.mxu0 0
    %2287 = vmatpush1.bf16.msra.mxu0 0
    %2288 = vmatprep.subr.bf16.mxu0 0
    %2289 = vmatpush1.bf16.msra.mxu0 0
    %2290 = vmatprep.subr.bf16.mxu0 0
    %2291 = vmatpush1.bf16.msra.mxu0 0
    %2292 = vmatprep.subr.bf16.mxu0 0
    %2293 = vmatpush1.bf16.msra.mxu0 0
    %2294 = vmatprep.subr.bf16.mxu0 0
    %2295 = vmatpush1.bf16.msra.mxu0 0
    %2296 = vmatprep.subr.bf16.mxu0 0
    %2297 = vmatpush1.bf16.msra.mxu0 0
    %2298 = vmatprep.subr.bf16.mxu0 0
    %2299 = vmatpush1.bf16.msra.mxu0 0
    %2300 = vmatprep.mubr.bf16.mxu0 0
    %2301 = vmatmul.mubr.bf16.gmra.mrb[0].mxu0 %v2242
    %v2302 = vpop.f32.mrb[0].mxu0
    %v2303 = vadd.f32 0.0, %v2302
    %v2304 = vpop.f32.mrb[0].mxu0
    %v2305 = vpop.f32.mrb[0].mxu0
    %v2306 = vadd.f32 0.0, %v2305
    %v2307 = vpop.f32.mrb[0].mxu0
    %2308 = vmatprep.mubr.bf16.mxu0 0
    %2309 = vmatmul.mubr.bf16.gmra.mrb[0].mxu0 %v2245
    %v2310 = vpop.f32.mrb[0].mxu0
    %v2311 = vadd.f32 0.0, %v2310
    %v2312 = vpop.f32.mrb[0].mxu0
    %v2313 = vpop.f32.mrb[0].mxu0
    %v2314 = vadd.f32 0.0, %v2313
    %v2315 = vpop.f32.mrb[0].mxu0
    %2316 = vmatprep.mubr.bf16.mxu0 0
    %2317 = vmatmul.mubr.bf16.gmra.mrb[0].mxu0 %v2248
    %v2318 = vpop.f32.mrb[0].mxu0
    %v2319 = vadd.f32 0.0, %v2318
    %v2320 = vpop.f32.mrb[0].mxu0
    %v2321 = vpop.f32.mrb[0].mxu0
    %v2322 = vadd.f32 0.0, %v2321
    %v2323 = vpop.f32.mrb[0].mxu0
    %2324 = vmatprep.mubr.bf16.mxu0 0
    %2325 = vmatmul.mubr.bf16.gmra.mrb[0].mxu0 %v2251
    %v2326 = vpop.f32.mrb[0].mxu0
    %v2327 = vadd.f32 0.0, %v2326
    %v2328 = vpop.f32.mrb[0].mxu0
    %v2329 = vpop.f32.mrb[0].mxu0
    %v2330 = vadd.f32 0.0, %v2329
    %v2331 = vpop.f32.mrb[0].mxu0
    %2332 = vmatprep.mubr.bf16.mxu0 0
    %2333 = vmatmul.mubr.bf16.gmra.mrb[0].mxu0 %v2254
    %v2334 = vpop.f32.mrb[0].mxu0
    %v2335 = vadd.f32 0.0, %v2334
    %v2336 = vpop.f32.mrb[0].mxu0
    %v2337 = vpop.f32.mrb[0].mxu0
    %v2338 = vadd.f32 0.0, %v2337
    %v2339 = vpop.f32.mrb[0].mxu0
    %2340 = vmatprep.mubr.bf16.mxu0 0
    %2341 = vmatmul.mubr.bf16.gmra.mrb[0].mxu0 %v2257
    %v2342 = vpop.f32.mrb[0].mxu0
    %v2343 = vadd.f32 0.0, %v2342
    %v2344 = vpop.f32.mrb[0].mxu0
    %v2345 = vpop.f32.mrb[0].mxu0
    %v2346 = vadd.f32 0.0, %v2345
    %v2347 = vpop.f32.mrb[0].mxu0
    %2348 = vmatprep.mubr.bf16.mxu0 0
    %2349 = vmatmul.mubr.bf16.gmra.mrb[0].mxu0 %v2260
    %v2350 = vpop.f32.mrb[0].mxu0
    %v2351 = vadd.f32 0.0, %v2350
    %v2352 = vpop.f32.mrb[0].mxu0
    %v2353 = vpop.f32.mrb[0].mxu0
    %v2354 = vadd.f32 0.0, %v2353
    %v2355 = vpop.f32.mrb[0].mxu0
    %2356 = vmatprep.mubr.bf16.mxu0 0
    %2357 = vmatmul.mubr.bf16.gmra.mrb[0].mxu0 %v2263
    %v2358 = vpop.f32.mrb[0].mxu0
    %v2359 = vadd.f32 0.0, %v2358
    %v2360 = vpop.f32.mrb[0].mxu0
    %v2361 = vpop.f32.mrb[0].mxu0
    %v2362 = vadd.f32 0.0, %v2361
    %v2363 = vpop.f32.mrb[0].mxu0
    %2364 = vdwg.mxu0
    %v2365 = vld [vmem:[%s8] sm:$0x1]
    %v2367 = vlaneseq
    %v2368 = vshrl.u32 %v2367, 7
    %v2369 = vsub.s32 0, %v2368
    %v2370 = vrot.slane %v2365, %v2369
    %v2372 = vmul.f32 %v2303, %v2370
    %v2373 = vmul.f32 %v2306, %v2370
    %v2374 = vmul.f32 %v2311, %v2370
    %v2375 = vmul.f32 %v2314, %v2370
    %v2376 = vmul.f32 %v2319, %v2370
    %v2377 = vmul.f32 %v2322, %v2370
    %v2378 = vmul.f32 %v2327, %v2370
    %v2379 = vmul.f32 %v2330, %v2370
    %v2380 = vmul.f32 %v2335, %v2370
    %v2381 = vmul.f32 %v2338, %v2370
    %v2382 = vmul.f32 %v2343, %v2370
    %v2383 = vmul.f32 %v2346, %v2370
    %v2384 = vmul.f32 %v2351, %v2370
    %v2385 = vmul.f32 %v2354, %v2370
    %v2386 = vmul.f32 %v2359, %v2370
    %v2387 = vmul.f32 %v2362, %v2370
    %v2388 = vld [vmem:[%s9] sm:$0x1]
    %v2390 = vlaneseq
    %v2391 = vshrl.u32 %v2390, 7
    %v2392 = vsub.s32 0, %v2391
    %v2393 = vrot.slane %v2388, %v2392
    %v2395 = vadd.f32 %v2372, %v2393
    %v2396 = vadd.f32 %v2373, %v2393
    %v2397 = vadd.f32 %v2374, %v2393
    %v2398 = vadd.f32 %v2375, %v2393
    %v2399 = vadd.f32 %v2376, %v2393
    %v2400 = vadd.f32 %v2377, %v2393
    %v2401 = vadd.f32 %v2378, %v2393
    %v2402 = vadd.f32 %v2379, %v2393
    %v2403 = vadd.f32 %v2380, %v2393
    %v2404 = vadd.f32 %v2381, %v2393
    %v2405 = vadd.f32 %v2382, %v2393
    %v2406 = vadd.f32 %v2383, %v2393
    %v2407 = vadd.f32 %v2384, %v2393
    %v2408 = vadd.f32 %v2385, %v2393
    %v2409 = vadd.f32 %v2386, %v2393
    %v2410 = vadd.f32 %v2387, %v2393
    %v2411 = vadd.f32 %v2395, %v2396
    %v2412 = vadd.f32 %v2411, %v2397
    %v2413 = vadd.f32 %v2412, %v2398
    %v2414 = vadd.f32 %v2413, %v2399
    %v2415 = vadd.f32 %v2414, %v2400
    %v2416 = vadd.f32 %v2415, %v2401
    %v2417 = vadd.f32 %v2416, %v2402
    %v2418 = vrot.slane %v2417, 4
    %v2419 = vadd.f32 %v2417, %v2418
    %v2420 = vrot.slane %v2419, 2
    %v2421 = vadd.f32 %v2419, %v2420
    %v2422 = vrot.slane %v2421, 1
    %v2423 = vadd.f32 %v2421, %v2422
    %v2424 = vadd.f32 %v2403, %v2404
    %v2425 = vadd.f32 %v2424, %v2405
    %v2426 = vadd.f32 %v2425, %v2406
    %v2427 = vadd.f32 %v2426, %v2407
    %v2428 = vadd.f32 %v2427, %v2408
    %v2429 = vadd.f32 %v2428, %v2409
    %v2430 = vadd.f32 %v2429, %v2410
    %v2431 = vrot.slane %v2430, 4
    %v2432 = vadd.f32 %v2430, %v2431
    %v2433 = vrot.slane %v2432, 2
    %v2434 = vadd.f32 %v2432, %v2433
    %v2435 = vrot.slane %v2434, 1
    %v2436 = vadd.f32 %v2434, %v2435
    %v2437 = vrcp.pop 64.0
    %v2438 = vmul.f32 %v2423, %v2437
    %v2439 = vmul.f32 %v2436, %v2437
    %v2440 = vpack.c.bf16 %v2438, %v2438
    %v2441 = vpack.c.bf16 %v2439, %v2439
    %v2442 = vld [vmem:[%s10] sm:$0xf]
    %v2443 = vld [vmem:[%s10 + $0x4] sm:$0xf]
    %v2444 = vld [vmem:[%s10 + $0x8] sm:$0xf]
    %v2445 = vld [vmem:[%s10 + $0xc] sm:$0xf]
    %v2446 = vld [vmem:[%s10 + $0x10] sm:$0xf]
    %v2447 = vld [vmem:[%s10 + $0x14] sm:$0xf]
    %v2448 = vld [vmem:[%s10 + $0x18] sm:$0xf]
    %v2449 = vld [vmem:[%s10 + $0x1c] sm:$0xf]
    %v2450 = vld [vmem:[%s10 + $0x20] sm:$0xf]
    %v2451 = vld [vmem:[%s10 + $0x24] sm:$0xf]
    %v2452 = vld [vmem:[%s10 + $0x28] sm:$0xf]
    %v2453 = vld [vmem:[%s10 + $0x2c] sm:$0xf]
    %v2454 = vld [vmem:[%s10 + $0x30] sm:$0xf]
    %v2455 = vld [vmem:[%s10 + $0x34] sm:$0xf]
    %v2456 = vld [vmem:[%s10 + $0x38] sm:$0xf]
    %v2457 = vld [vmem:[%s10 + $0x3c] sm:$0xf]
    %v2460 = vunpack.c.l.b16 %v2440
    %v2461 = vunpack.c.l.b16 %v2441
    %vm2462 = vcmask 1041409
    %v2463 = vsel %vm2462, %v2461, %v2460
    %v2464 = vpack.c.b16 %v2463, %v2463
    %v2482 = vunpack.c.l.b16 %v2442
    %v2483 = vunpack.c.l.b16 %v2443
    %v2484 = vunpack.c.l.b16 %v2444
    %v2485 = vunpack.c.l.b16 %v2445
    %v2486 = vunpack.c.l.b16 %v2446
    %v2487 = vunpack.c.l.b16 %v2447
    %v2488 = vunpack.c.l.b16 %v2448
    %v2489 = vunpack.c.l.b16 %v2449
    %v2490 = vunpack.c.l.b16 %v2450
    %v2491 = vunpack.c.l.b16 %v2451
    %v2492 = vunpack.c.l.b16 %v2452
    %v2493 = vunpack.c.l.b16 %v2453
    %v2494 = vunpack.c.l.b16 %v2454
    %v2495 = vunpack.c.l.b16 %v2455
    %v2496 = vunpack.c.l.b16 %v2456
    %v2497 = vunpack.c.l.b16 %v2457
    %v2498 = vpack.c.b16 %v2483, %v2482
    %v2499 = vpack.c.b16 %v2485, %v2484
    %v2500 = vpack.c.b16 %v2487, %v2486
    %v2501 = vpack.c.b16 %v2489, %v2488
    %v2502 = vpack.c.b16 %v2491, %v2490
    %v2503 = vpack.c.b16 %v2493, %v2492
    %v2504 = vpack.c.b16 %v2495, %v2494
    %v2505 = vpack.c.b16 %v2497, %v2496
    %2514 = vmatprep.subr.bf16.mxu0 0
    %2515 = vmatpush1.bf16.msra.mxu0 %v2498
    %2516 = vmatprep.subr.bf16.mxu0 0
    %2517 = vmatpush1.bf16.msra.mxu0 %v2499
    %2518 = vmatprep.subr.bf16.mxu0 0
    %2519 = vmatpush1.bf16.msra.mxu0 %v2500
    %2520 = vmatprep.subr.bf16.mxu0 0
    %2521 = vmatpush1.bf16.msra.mxu0 %v2501
    %2522 = vmatprep.subr.bf16.mxu0 0
    %2523 = vmatpush1.bf16.msra.mxu0 %v2502
    %2524 = vmatprep.subr.bf16.mxu0 0
    %2525 = vmatpush1.bf16.msra.mxu0 %v2503
    %2526 = vmatprep.subr.bf16.mxu0 0
    %2527 = vmatpush1.bf16.msra.mxu0 %v2504
    %2528 = vmatprep.subr.bf16.mxu0 0
    %2529 = vmatpush1.bf16.msra.mxu0 %v2505
    %2530 = vmatprep.subr.bf16.mxu0 0
    %2531 = vmatpush1.bf16.msra.mxu0 0
    %2532 = vmatprep.subr.bf16.mxu0 0
    %2533 = vmatpush1.bf16.msra.mxu0 0
    %2534 = vmatprep.subr.bf16.mxu0 0
    %2535 = vmatpush1.bf16.msra.mxu0 0
    %2536 = vmatprep.subr.bf16.mxu0 0
    %2537 = vmatpush1.bf16.msra.mxu0 0
    %2538 = vmatprep.subr.bf16.mxu0 0
    %2539 = vmatpush1.bf16.msra.mxu0 0
    %2540 = vmatprep.subr.bf16.mxu0 0
    %2541 = vmatpush1.bf16.msra.mxu0 0
    %2542 = vmatprep.subr.bf16.mxu0 0
    %2543 = vmatpush1.bf16.msra.mxu0 0
    %2544 = vmatprep.subr.bf16.mxu0 0
    %2545 = vmatpush1.bf16.msra.mxu0 0
    %2546 = vmatprep.mubr.bf16.mxu0 0
    %2547 = vmatmul.mubr.bf16.gmra.mrb[0].mxu0 %v2464
    %v2548 = vpop.f32.mrb[0].mxu0
    %v2549 = vadd.f32 0.0, %v2548
    %v2550 = vpop.f32.mrb[0].mxu0
    %v2551 = vpop.f32.mrb[0].mxu0
    %v2552 = vpop.f32.mrb[0].mxu0
    %2553 = vdwg.mxu0
    %v2554 = vmax.f32 %v2549, 0.0
    %v2555 = vpack.c.bf16 %v2554, %v2554
    %v2556 = vld [vmem:[%s11] sm:$0x1]
    %vm2557 = vcmask 15360
    %v2559 = vsel %vm2557, %v2555, 0
    %vm2561 = vcmask 1040384
    %v2563 = vsel %vm2561, %v2556, 0
    %2565 = vmatprep.subr.bf16.mxu0 0
    %2566 = vmatpush1.bf16.msra.mxu0 %v2563
    %2567 = vmatprep.subr.bf16.mxu0 0
    %2568 = vmatpush1.bf16.msra.mxu0 0
    %2569 = vmatprep.subr.bf16.mxu0 0
    %2570 = vmatpush1.bf16.msra.mxu0 0
    %2571 = vmatprep.subr.bf16.mxu0 0
    %2572 = vmatpush1.bf16.msra.mxu0 0
    %2573 = vmatprep.subr.bf16.mxu0 0
    %2574 = vmatpush1.bf16.msra.mxu0 0
    %2575 = vmatprep.subr.bf16.mxu0 0
    %2576 = vmatpush1.bf16.msra.mxu0 0
    %2577 = vmatprep.subr.bf16.mxu0 0
    %2578 = vmatpush1.bf16.msra.mxu0 0
    %2579 = vmatprep.subr.bf16.mxu0 0
    %2580 = vmatpush1.bf16.msra.mxu0 0
    %2581 = vmatprep.subr.bf16.mxu0 0
    %2582 = vmatpush1.bf16.msra.mxu0 0
    %2583 = vmatprep.subr.bf16.mxu0 0
    %2584 = vmatpush1.bf16.msra.mxu0 0
    %2585 = vmatprep.subr.bf16.mxu0 0
    %2586 = vmatpush1.bf16.msra.mxu0 0
    %2587 = vmatprep.subr.bf16.mxu0 0
    %2588 = vmatpush1.bf16.msra.mxu0 0
    %2589 = vmatprep.subr.bf16.mxu0 0
    %2590 = vmatpush1.bf16.msra.mxu0 0
    %2591 = vmatprep.subr.bf16.mxu0 0
    %2592 = vmatpush1.bf16.msra.mxu0 0
    %2593 = vmatprep.subr.bf16.mxu0 0
    %2594 = vmatpush1.bf16.msra.mxu0 0
    %2595 = vmatprep.subr.bf16.mxu0 0
    %2596 = vmatpush1.bf16.msra.mxu0 0
    %2597 = vmatprep.mubr.bf16.mxu0 0
    %2598 = vmatmul.mubr.bf16.gmra.mrb[0].mxu0 %v2559
    %v2599 = vpop.f32.mrb[0].mxu0
    %v2600 = vadd.f32 0.0, %v2599
    %v2601 = vpop.f32.mrb[0].mxu0
    %v2602 = vpop.f32.mrb[0].mxu0
    %v2603 = vpop.f32.mrb[0].mxu0
    %2604 = vdwg.mxu0
    %v2605 = vxor.u32 %v2600, 2147483648
    %v2606 = vmul.f32 %v2605, 1.442695
    %v2607 = vpow.pop %v2606
    %v2608 = vadd.f32 %v2607, 1.0
    %v2609 = vrcp.pop %v2608
    %v2610 = vmul.f32 1.0, %v2609
    %v2613 = vunpack.c.l.s4 1966171168
    %v2614 = vunpack.c.0.s8 %v2613
    %v2615 = vlaneseq
    %v2616 = vshrl.u32 %v2615, 7
    %v2617 = vsub.s32 %v2614, %v2616
    %v2618 = vrot.slane %v2610, %v2617
    %v2619 = vcombine.high %v2618, %v2618
    %v2621 = vunpack.c.l.s4 1966171168
    %v2622 = vunpack.c.0.s8 %v2621
    %v2623 = vlaneseq
    %v2624 = vshrl.u32 %v2623, 7
    %v2625 = vsub.s32 %v2622, %v2624
    %v2626 = vrot.slane %v2618, %v2625
    %v2628 = vunpack.c.l.s4 1966171168
    %v2629 = vunpack.c.0.s8 %v2628
    %v2630 = vlaneseq
    %v2631 = vshrl.u32 %v2630, 7
    %v2632 = vsub.s32 %v2629, %v2631
    %v2633 = vrot.slane %v2619, %v2632
    %v2634 = vlaneseq
    %v2635 = vshrl.u32 %v2634, 7
    %v2636 = vsub.s32 0, %v2635
    %v2637 = vrot.slane %v2626, %v2636
    %v2638 = vlaneseq
    %v2639 = vshrl.u32 %v2638, 7
    %v2640 = vsub.s32 0, %v2639
    %v2641 = vrot.slane %v2633, %v2640
    %v2644 = vmul.f32 %v2395, %v2637
    %v2645 = vmul.f32 %v2396, %v2637
    %v2646 = vmul.f32 %v2397, %v2637
    %v2647 = vmul.f32 %v2398, %v2637
    %v2648 = vmul.f32 %v2399, %v2637
    %v2649 = vmul.f32 %v2400, %v2637
    %v2650 = vmul.f32 %v2401, %v2637
    %v2651 = vmul.f32 %v2402, %v2637
    %v2652 = vmul.f32 %v2403, %v2641
    %v2653 = vmul.f32 %v2404, %v2641
    %v2654 = vmul.f32 %v2405, %v2641
    %v2655 = vmul.f32 %v2406, %v2641
    %v2656 = vmul.f32 %v2407, %v2641
    %v2657 = vmul.f32 %v2408, %v2641
    %v2658 = vmul.f32 %v2409, %v2641
    %v2659 = vmul.f32 %v2410, %v2641
    %v2660 = vld [vmem:[#allocation7] ss:$2 sm:$0xff]
    %s2661 = scalar_lea.vmem [#allocation7], 32
    %v2662 = vld [vmem:[%s2661] ss:$2 sm:$0xff]
    %s2663 = scalar_lea.vmem [#allocation7], 64
    %v2664 = vld [vmem:[%s2663] ss:$2 sm:$0xff]
    %s2665 = scalar_lea.vmem [#allocation7], 96
    %v2666 = vld [vmem:[%s2665] ss:$2 sm:$0xff]
    %s2667 = scalar_lea.vmem [#allocation7], 128
    %v2668 = vld [vmem:[%s2667] ss:$2 sm:$0xff]
    %s2669 = scalar_lea.vmem [#allocation7], 160
    %v2670 = vld [vmem:[%s2669] ss:$2 sm:$0xff]
    %s2671 = scalar_lea.vmem [#allocation7], 192
    %v2672 = vld [vmem:[%s2671] ss:$2 sm:$0xff]
    %s2673 = scalar_lea.vmem [#allocation7], 224
    %v2674 = vld [vmem:[%s2673] ss:$2 sm:$0xff]
    %s2675 = scalar_lea.vmem [#allocation7], 256
    %v2676 = vld [vmem:[%s2675] ss:$2 sm:$0xff]
    %s2677 = scalar_lea.vmem [#allocation7], 288
    %v2678 = vld [vmem:[%s2677] ss:$2 sm:$0xff]
    %s2679 = scalar_lea.vmem [#allocation7], 320
    %v2680 = vld [vmem:[%s2679] ss:$2 sm:$0xff]
    %s2681 = scalar_lea.vmem [#allocation7], 352
    %v2682 = vld [vmem:[%s2681] ss:$2 sm:$0xff]
    %s2683 = scalar_lea.vmem [#allocation7], 384
    %v2684 = vld [vmem:[%s2683] ss:$2 sm:$0xff]
    %s2685 = scalar_lea.vmem [#allocation7], 416
    %v2686 = vld [vmem:[%s2685] ss:$2 sm:$0xff]
    %s2687 = scalar_lea.vmem [#allocation7], 448
    %v2688 = vld [vmem:[%s2687] ss:$2 sm:$0xff]
    %s2689 = scalar_lea.vmem [#allocation7], 480
    %v2690 = vld [vmem:[%s2689] ss:$2 sm:$0xff]
    %v2691 = vpack.c.bf16 %v2662, %v2660
    %v2692 = vpack.c.bf16 %v2666, %v2664
    %v2693 = vpack.c.bf16 %v2670, %v2668
    %v2694 = vpack.c.bf16 %v2674, %v2672
    %v2695 = vpack.c.bf16 %v2678, %v2676
    %v2696 = vpack.c.bf16 %v2682, %v2680
    %v2697 = vpack.c.bf16 %v2686, %v2684
    %v2698 = vpack.c.bf16 %v2690, %v2688
    %v2699 = vld [vmem:[%s12] sm:$0xf]
    %v2700 = vld [vmem:[%s12 + $0x4] sm:$0xf]
    %v2701 = vld [vmem:[%s12 + $0x8] sm:$0xf]
    %v2702 = vld [vmem:[%s12 + $0xc] sm:$0xf]
    %v2703 = vld [vmem:[%s12 + $0x10] sm:$0xf]
    %v2704 = vld [vmem:[%s12 + $0x14] sm:$0xf]
    %v2705 = vld [vmem:[%s12 + $0x18] sm:$0xf]
    %v2706 = vld [vmem:[%s12 + $0x1c] sm:$0xf]
    %v2707 = vld [vmem:[%s12 + $0x20] sm:$0xf]
    %v2708 = vld [vmem:[%s12 + $0x24] sm:$0xf]
    %v2709 = vld [vmem:[%s12 + $0x28] sm:$0xf]
    %v2710 = vld [vmem:[%s12 + $0x2c] sm:$0xf]
    %v2711 = vld [vmem:[%s12 + $0x30] sm:$0xf]
    %v2712 = vld [vmem:[%s12 + $0x34] sm:$0xf]
    %v2713 = vld [vmem:[%s12 + $0x38] sm:$0xf]
    %v2714 = vld [vmem:[%s12 + $0x3c] sm:$0xf]
    %v2731 = vunpack.c.l.b16 %v2699
    %v2732 = vunpack.c.l.b16 %v2700
    %v2733 = vunpack.c.l.b16 %v2701
    %v2734 = vunpack.c.l.b16 %v2702
    %v2735 = vunpack.c.l.b16 %v2703
    %v2736 = vunpack.c.l.b16 %v2704
    %v2737 = vunpack.c.l.b16 %v2705
    %v2738 = vunpack.c.l.b16 %v2706
    %v2739 = vunpack.c.l.b16 %v2707
    %v2740 = vunpack.c.l.b16 %v2708
    %v2741 = vunpack.c.l.b16 %v2709
    %v2742 = vunpack.c.l.b16 %v2710
    %v2743 = vunpack.c.l.b16 %v2711
    %v2744 = vunpack.c.l.b16 %v2712
    %v2745 = vunpack.c.l.b16 %v2713
    %v2746 = vunpack.c.l.b16 %v2714
    %v2747 = vpack.c.b16 %v2732, %v2731
    %v2748 = vpack.c.b16 %v2734, %v2733
    %v2749 = vpack.c.b16 %v2736, %v2735
    %v2750 = vpack.c.b16 %v2738, %v2737
    %v2751 = vpack.c.b16 %v2740, %v2739
    %v2752 = vpack.c.b16 %v2742, %v2741
    %v2753 = vpack.c.b16 %v2744, %v2743
    %v2754 = vpack.c.b16 %v2746, %v2745
    %2763 = vmatprep.subr.bf16.mxu0 0
    %2764 = vmatpush1.bf16.msra.mxu0 %v2747
    %2765 = vmatprep.subr.bf16.mxu0 0
    %2766 = vmatpush1.bf16.msra.mxu0 %v2748
    %2767 = vmatprep.subr.bf16.mxu0 0
    %2768 = vmatpush1.bf16.msra.mxu0 %v2749
    %2769 = vmatprep.subr.bf16.mxu0 0
    %2770 = vmatpush1.bf16.msra.mxu0 %v2750
    %2771 = vmatprep.subr.bf16.mxu0 0
    %2772 = vmatpush1.bf16.msra.mxu0 %v2751
    %2773 = vmatprep.subr.bf16.mxu0 0
    %2774 = vmatpush1.bf16.msra.mxu0 %v2752
    %2775 = vmatprep.subr.bf16.mxu0 0
    %2776 = vmatpush1.bf16.msra.mxu0 %v2753
    %2777 = vmatprep.subr.bf16.mxu0 0
    %2778 = vmatpush1.bf16.msra.mxu0 %v2754
    %2779 = vmatprep.subr.bf16.mxu0 0
    %2780 = vmatpush1.bf16.msra.mxu0 0
    %2781 = vmatprep.subr.bf16.mxu0 0
    %2782 = vmatpush1.bf16.msra.mxu0 0
    %2783 = vmatprep.subr.bf16.mxu0 0
    %2784 = vmatpush1.bf16.msra.mxu0 0
    %2785 = vmatprep.subr.bf16.mxu0 0
    %2786 = vmatpush1.bf16.msra.mxu0 0
    %2787 = vmatprep.subr.bf16.mxu0 0
    %2788 = vmatpush1.bf16.msra.mxu0 0
    %2789 = vmatprep.subr.bf16.mxu0 0
    %2790 = vmatpush1.bf16.msra.mxu0 0
    %2791 = vmatprep.subr.bf16.mxu0 0
    %2792 = vmatpush1.bf16.msra.mxu0 0
    %2793 = vmatprep.subr.bf16.mxu0 0
    %2794 = vmatpush1.bf16.msra.mxu0 0
    %2795 = vmatprep.mubr.bf16.mxu0 0
    %2796 = vmatmul.mubr.bf16.gmra.mrb[0].mxu0 %v2691
    %v2797 = vpop.f32.mrb[0].mxu0
    %v2798 = vadd.f32 0.0, %v2797
    %v2799 = vpop.f32.mrb[0].mxu0
    %v2800 = vpop.f32.mrb[0].mxu0
    %v2801 = vadd.f32 0.0, %v2800
    %v2802 = vpop.f32.mrb[0].mxu0
    %2803 = vmatprep.mubr.bf16.mxu0 0
    %2804 = vmatmul.mubr.bf16.gmra.mrb[0].mxu0 %v2692
    %v2805 = vpop.f32.mrb[0].mxu0
    %v2806 = vadd.f32 0.0, %v2805
    %v2807 = vpop.f32.mrb[0].mxu0
    %v2808 = vpop.f32.mrb[0].mxu0
    %v2809 = vadd.f32 0.0, %v2808
    %v2810 = vpop.f32.mrb[0].mxu0
    %2811 = vmatprep.mubr.bf16.mxu0 0
    %2812 = vmatmul.mubr.bf16.gmra.mrb[0].mxu0 %v2693
    %v2813 = vpop.f32.mrb[0].mxu0
    %v2814 = vadd.f32 0.0, %v2813
    %v2815 = vpop.f32.mrb[0].mxu0
    %v2816 = vpop.f32.mrb[0].mxu0
    %v2817 = vadd.f32 0.0, %v2816
    %v2818 = vpop.f32.mrb[0].mxu0
    %2819 = vmatprep.mubr.bf16.mxu0 0
    %2820 = vmatmul.mubr.bf16.gmra.mrb[0].mxu0 %v2694
    %v2821 = vpop.f32.mrb[0].mxu0
    %v2822 = vadd.f32 0.0, %v2821
    %v2823 = vpop.f32.mrb[0].mxu0
    %v2824 = vpop.f32.mrb[0].mxu0
    %v2825 = vadd.f32 0.0, %v2824
    %v2826 = vpop.f32.mrb[0].mxu0
    %2827 = vmatprep.mubr.bf16.mxu0 0
    %2828 = vmatmul.mubr.bf16.gmra.mrb[0].mxu0 %v2695
    %v2829 = vpop.f32.mrb[0].mxu0
    %v2830 = vadd.f32 0.0, %v2829
    %v2831 = vpop.f32.mrb[0].mxu0
    %v2832 = vpop.f32.mrb[0].mxu0
    %v2833 = vadd.f32 0.0, %v2832
    %v2834 = vpop.f32.mrb[0].mxu0
    %2835 = vmatprep.mubr.bf16.mxu0 0
    %2836 = vmatmul.mubr.bf16.gmra.mrb[0].mxu0 %v2696
    %v2837 = vpop.f32.mrb[0].mxu0
    %v2838 = vadd.f32 0.0, %v2837
    %v2839 = vpop.f32.mrb[0].mxu0
    %v2840 = vpop.f32.mrb[0].mxu0
    %v2841 = vadd.f32 0.0, %v2840
    %v2842 = vpop.f32.mrb[0].mxu0
    %2843 = vmatprep.mubr.bf16.mxu0 0
    %2844 = vmatmul.mubr.bf16.gmra.mrb[0].mxu0 %v2697
    %v2845 = vpop.f32.mrb[0].mxu0
    %v2846 = vadd.f32 0.0, %v2845
    %v2847 = vpop.f32.mrb[0].mxu0
    %v2848 = vpop.f32.mrb[0].mxu0
    %v2849 = vadd.f32 0.0, %v2848
    %v2850 = vpop.f32.mrb[0].mxu0
    %2851 = vmatprep.mubr.bf16.mxu0 0
    %2852 = vmatmul.mubr.bf16.gmra.mrb[0].mxu0 %v2698
    %v2853 = vpop.f32.mrb[0].mxu0
    %v2854 = vadd.f32 0.0, %v2853
    %v2855 = vpop.f32.mrb[0].mxu0
    %v2856 = vpop.f32.mrb[0].mxu0
    %v2857 = vadd.f32 0.0, %v2856
    %v2858 = vpop.f32.mrb[0].mxu0
    %2859 = vdwg.mxu0
    %v2860 = vld [vmem:[%s13] sm:$0x1]
    %v2862 = vlaneseq
    %v2863 = vshrl.u32 %v2862, 7
    %v2864 = vsub.s32 0, %v2863
    %v2865 = vrot.slane %v2860, %v2864
    %v2867 = vmul.f32 %v2798, %v2865
    %v2868 = vmul.f32 %v2801, %v2865
    %v2869 = vmul.f32 %v2806, %v2865
    %v2870 = vmul.f32 %v2809, %v2865
    %v2871 = vmul.f32 %v2814, %v2865
    %v2872 = vmul.f32 %v2817, %v2865
    %v2873 = vmul.f32 %v2822, %v2865
    %v2874 = vmul.f32 %v2825, %v2865
    %v2875 = vmul.f32 %v2830, %v2865
    %v2876 = vmul.f32 %v2833, %v2865
    %v2877 = vmul.f32 %v2838, %v2865
    %v2878 = vmul.f32 %v2841, %v2865
    %v2879 = vmul.f32 %v2846, %v2865
    %v2880 = vmul.f32 %v2849, %v2865
    %v2881 = vmul.f32 %v2854, %v2865
    %v2882 = vmul.f32 %v2857, %v2865
    %v2883 = vld [vmem:[%s14] sm:$0x1]
    %v2885 = vlaneseq
    %v2886 = vshrl.u32 %v2885, 7
    %v2887 = vsub.s32 0, %v2886
    %v2888 = vrot.slane %v2883, %v2887
    %v2890 = vadd.f32 %v2867, %v2888
    %v2891 = vadd.f32 %v2868, %v2888
    %v2892 = vadd.f32 %v2869, %v2888
    %v2893 = vadd.f32 %v2870, %v2888
    %v2894 = vadd.f32 %v2871, %v2888
    %v2895 = vadd.f32 %v2872, %v2888
    %v2896 = vadd.f32 %v2873, %v2888
    %v2897 = vadd.f32 %v2874, %v2888
    %v2898 = vadd.f32 %v2875, %v2888
    %v2899 = vadd.f32 %v2876, %v2888
    %v2900 = vadd.f32 %v2877, %v2888
    %v2901 = vadd.f32 %v2878, %v2888
    %v2902 = vadd.f32 %v2879, %v2888
    %v2903 = vadd.f32 %v2880, %v2888
    %v2904 = vadd.f32 %v2881, %v2888
    %v2905 = vadd.f32 %v2882, %v2888
    %v2906 = vadd.f32 %v2644, %v2890
    %v2907 = vadd.f32 %v2645, %v2891
    %v2908 = vadd.f32 %v2646, %v2892
    %v2909 = vadd.f32 %v2647, %v2893
    %v2910 = vadd.f32 %v2648, %v2894
    %v2911 = vadd.f32 %v2649, %v2895
    %v2912 = vadd.f32 %v2650, %v2896
    %v2913 = vadd.f32 %v2651, %v2897
    %v2914 = vadd.f32 %v2652, %v2898
    %v2915 = vadd.f32 %v2653, %v2899
    %v2916 = vadd.f32 %v2654, %v2900
    %v2917 = vadd.f32 %v2655, %v2901
    %v2918 = vadd.f32 %v2656, %v2902
    %v2919 = vadd.f32 %v2657, %v2903
    %v2920 = vadd.f32 %v2658, %v2904
    %v2921 = vadd.f32 %v2659, %v2905
    %v2922 = vmax.f32 %v2906, 0.0
    %v2923 = vmax.f32 %v2907, 0.0
    %v2924 = vmax.f32 %v2908, 0.0
    %v2925 = vmax.f32 %v2909, 0.0
    %v2926 = vmax.f32 %v2910, 0.0
    %v2927 = vmax.f32 %v2911, 0.0
    %v2928 = vmax.f32 %v2912, 0.0
    %v2929 = vmax.f32 %v2913, 0.0
    %v2930 = vmax.f32 %v2914, 0.0
    %v2931 = vmax.f32 %v2915, 0.0
    %v2932 = vmax.f32 %v2916, 0.0
    %v2933 = vmax.f32 %v2917, 0.0
    %v2934 = vmax.f32 %v2918, 0.0
    %v2935 = vmax.f32 %v2919, 0.0
    %v2936 = vmax.f32 %v2920, 0.0
    %v2937 = vmax.f32 %v2921, 0.0
    %2938 = vst [vmem:[#allocation6] sm:$0xff] %v2922
    %2939 = vst [vmem:[#allocation6 + $0x8] sm:$0xff] %v2923
    %2940 = vst [vmem:[#allocation6 + $0x10] sm:$0xff] %v2924
    %2941 = vst [vmem:[#allocation6 + $0x18] sm:$0xff] %v2925
    %2942 = vst [vmem:[#allocation6 + $0x20] sm:$0xff] %v2926
    %2943 = vst [vmem:[#allocation6 + $0x28] sm:$0xff] %v2927
    %2944 = vst [vmem:[#allocation6 + $0x30] sm:$0xff] %v2928
    %2945 = vst [vmem:[#allocation6 + $0x38] sm:$0xff] %v2929
    %2946 = vst [vmem:[#allocation6 + $0x40] sm:$0xff] %v2930
    %2947 = vst [vmem:[#allocation6 + $0x48] sm:$0xff] %v2931
    %2948 = vst [vmem:[#allocation6 + $0x50] sm:$0xff] %v2932
    %2949 = vst [vmem:[#allocation6 + $0x58] sm:$0xff] %v2933
    %2950 = vst [vmem:[#allocation6 + $0x60] sm:$0xff] %v2934
    %2951 = vst [vmem:[#allocation6 + $0x68] sm:$0xff] %v2935
    %2952 = vst [vmem:[#allocation6 + $0x70] sm:$0xff] %v2936
    %2953 = vst [vmem:[#allocation6 + $0x78] sm:$0xff] %v2937
    %2954 = vst.msk [vmem:[#allocation4] sm:$0xff] %vm99, 0.0
    %2955 = vst.msk [vmem:[#allocation4 + $0x8] sm:$0x3] %vm102, 0.0
    %2956 = vst.msk [vmem:[#allocation4 + $0x10] sm:$0xff] %vm99, 0.0
    %2957 = vst.msk [vmem:[#allocation4 + $0x18] sm:$0x3] %vm102, 0.0
    %2958 = vst.msk [vmem:[#allocation4 + $0x20] sm:$0xff] %vm99, 0.0
    %2959 = vst.msk [vmem:[#allocation4 + $0x28] sm:$0x3] %vm102, 0.0
    %2960 = vst.msk [vmem:[#allocation4 + $0x30] sm:$0xff] %vm99, 0.0
    %2961 = vst.msk [vmem:[#allocation4 + $0x38] sm:$0x3] %vm102, 0.0
    %2962 = vst.msk [vmem:[#allocation4 + $0x40] sm:$0xff] %vm99, 0.0
    %2963 = vst.msk [vmem:[#allocation4 + $0x48] sm:$0x3] %vm102, 0.0
    %2964 = vst.msk [vmem:[#allocation4 + $0x50] sm:$0xff] %vm99, 0.0
    %2965 = vst.msk [vmem:[#allocation4 + $0x58] sm:$0x3] %vm102, 0.0
    %2966 = vst.msk [vmem:[#allocation4 + $0x60] sm:$0xff] %vm99, 0.0
    %2967 = vst.msk [vmem:[#allocation4 + $0x68] sm:$0x3] %vm102, 0.0
    %2968 = vst.msk [vmem:[#allocation4 + $0x70] sm:$0xff] %vm99, 0.0
    %2969 = vst.msk [vmem:[#allocation4 + $0x78] sm:$0x3] %vm102, 0.0
    %2970 = vst.msk [vmem:[#allocation4 + $0x80] sm:$0xff] %vm99, 0.0
    %2971 = vst.msk [vmem:[#allocation4 + $0x88] sm:$0x3] %vm102, 0.0
    %2972 = vst.msk [vmem:[#allocation4 + $0x90] sm:$0xff] %vm99, 0.0
    %2973 = vst.msk [vmem:[#allocation4 + $0x98] sm:$0x3] %vm102, 0.0
    %2974 = vst.msk [vmem:[#allocation4 + $0xa0] sm:$0xff] %vm99, 0.0
    %2975 = vst.msk [vmem:[#allocation4 + $0xa8] sm:$0x3] %vm102, 0.0
    %2976 = vst.msk [vmem:[#allocation4 + $0xb0] sm:$0xff] %vm99, 0.0
    %2977 = vst.msk [vmem:[#allocation4 + $0xb8] sm:$0x3] %vm102, 0.0
    %2978 = vst.msk [vmem:[#allocation4 + $0xc0] sm:$0xff] %vm99, 0.0
    %2979 = vst.msk [vmem:[#allocation4 + $0xc8] sm:$0x3] %vm102, 0.0
    %2980 = vst.msk [vmem:[#allocation4 + $0xd0] sm:$0xff] %vm99, 0.0
    %2981 = vst.msk [vmem:[#allocation4 + $0xd8] sm:$0x3] %vm102, 0.0
    %2982 = vst.msk [vmem:[#allocation4 + $0xe0] sm:$0xff] %vm99, 0.0
    %2983 = vst.msk [vmem:[#allocation4 + $0xe8] sm:$0x3] %vm102, 0.0
    %2984 = vst.msk [vmem:[#allocation4 + $0xf0] sm:$0xff] %vm99, 0.0
    %2985 = vst.msk [vmem:[#allocation4 + $0xf8] sm:$0x3] %vm102, 0.0
    %2986 = vst.msk [vmem:[#allocation4 + $0x100] sm:$0xff] %vm99, 0.0
    %2987 = vst.msk [vmem:[#allocation4 + $0x108] sm:$0x3] %vm102, 0.0
    %2988 = vst.msk [vmem:[#allocation4 + $0x110] sm:$0xff] %vm99, 0.0
    %2989 = vst.msk [vmem:[#allocation4 + $0x118] sm:$0x3] %vm102, 0.0
    %2990 = vst.msk [vmem:[#allocation4 + $0x120] sm:$0xff] %vm99, 0.0
    %2991 = vst.msk [vmem:[#allocation4 + $0x128] sm:$0x3] %vm102, 0.0
    %2992 = vst.msk [vmem:[#allocation4 + $0x130] sm:$0xff] %vm99, 0.0
    %2993 = vst.msk [vmem:[#allocation4 + $0x138] sm:$0x3] %vm102, 0.0
    %v2994 = vld [vmem:[%s15] sm:$0xf]
    %v2995 = vld [vmem:[%s15 + $0x4] sm:$0xf]
    %v2996 = vld [vmem:[%s15 + $0x8] sm:$0xf]
    %v2997 = vld [vmem:[%s15 + $0xc] sm:$0xf]
    %v2998 = vld [vmem:[%s15 + $0x10] sm:$0xf]
    %v2999 = vld [vmem:[%s15 + $0x14] sm:$0xf]
    %v3000 = vld [vmem:[%s15 + $0x18] sm:$0xf]
    %v3001 = vld [vmem:[%s15 + $0x1c] sm:$0xf]
    %v3002 = vld [vmem:[%s15 + $0x20] sm:$0xf]
    %v3003 = vld [vmem:[%s15 + $0x24] sm:$0xf]
    %v3004 = vld [vmem:[%s15 + $0x28] sm:$0xf]
    %v3005 = vld [vmem:[%s15 + $0x2c] sm:$0xf]
    %v3006 = vld [vmem:[%s15 + $0x30] sm:$0xf]
    %v3007 = vld [vmem:[%s15 + $0x34] sm:$0xf]
    %v3008 = vld [vmem:[%s15 + $0x38] sm:$0xf]
    %v3009 = vld [vmem:[%s15 + $0x3c] sm:$0xf]
    %v3010 = vld [vmem:[%s16] sm:$0x1]
    %v3011 = vld [vmem:[%s17] sm:$0x1]
    %v3012 = vld [vmem:[#allocation6] sm:$0xff]
    %v3013 = vld [vmem:[#allocation6 + $0x8] sm:$0xff]
    %v3014 = vld [vmem:[#allocation6 + $0x10] sm:$0xff]
    %v3015 = vld [vmem:[#allocation6 + $0x18] sm:$0xff]
    %v3016 = vld [vmem:[#allocation6 + $0x20] sm:$0xff]
    %v3017 = vld [vmem:[#allocation6 + $0x28] sm:$0xff]
    %v3018 = vld [vmem:[#allocation6 + $0x30] sm:$0xff]
    %v3019 = vld [vmem:[#allocation6 + $0x38] sm:$0xff]
    %v3020 = vpack.c.bf16 %v3013, %v3012
    %v3021 = vpack.c.bf16 %v3015, %v3014
    %v3022 = vpack.c.bf16 %v3017, %v3016
    %v3023 = vpack.c.bf16 %v3019, %v3018
    %v3040 = vunpack.c.l.b16 %v2994
    %v3041 = vunpack.c.l.b16 %v2995
    %v3042 = vunpack.c.l.b16 %v2996
    %v3043 = vunpack.c.l.b16 %v2997
    %v3044 = vunpack.c.l.b16 %v2998
    %v3045 = vunpack.c.l.b16 %v2999
    %v3046 = vunpack.c.l.b16 %v3000
    %v3047 = vunpack.c.l.b16 %v3001
    %v3048 = vunpack.c.l.b16 %v3002
    %v3049 = vunpack.c.l.b16 %v3003
    %v3050 = vunpack.c.l.b16 %v3004
    %v3051 = vunpack.c.l.b16 %v3005
    %v3052 = vunpack.c.l.b16 %v3006
    %v3053 = vunpack.c.l.b16 %v3007
    %v3054 = vunpack.c.l.b16 %v3008
    %v3055 = vunpack.c.l.b16 %v3009
    %v3056 = vpack.c.b16 %v3041, %v3040
    %v3057 = vpack.c.b16 %v3043, %v3042
    %v3058 = vpack.c.b16 %v3045, %v3044
    %v3059 = vpack.c.b16 %v3047, %v3046
    %v3060 = vpack.c.b16 %v3049, %v3048
    %v3061 = vpack.c.b16 %v3051, %v3050
    %v3062 = vpack.c.b16 %v3053, %v3052
    %v3063 = vpack.c.b16 %v3055, %v3054
    %3072 = vmatprep.subr.bf16.mxu0 0
    %3073 = vmatpush1.bf16.msra.mxu0 %v3056
    %3074 = vmatprep.subr.bf16.mxu0 0
    %3075 = vmatpush1.bf16.msra.mxu0 %v3057
    %3076 = vmatprep.subr.bf16.mxu0 0
    %3077 = vmatpush1.bf16.msra.mxu0 %v3058
    %3078 = vmatprep.subr.bf16.mxu0 0
    %3079 = vmatpush1.bf16.msra.mxu0 %v3059
    %3080 = vmatprep.subr.bf16.mxu0 0
    %3081 = vmatpush1.bf16.msra.mxu0 %v3060
    %3082 = vmatprep.subr.bf16.mxu0 0
    %3083 = vmatpush1.bf16.msra.mxu0 %v3061
    %3084 = vmatprep.subr.bf16.mxu0 0
    %3085 = vmatpush1.bf16.msra.mxu0 %v3062
    %3086 = vmatprep.subr.bf16.mxu0 0
    %3087 = vmatpush1.bf16.msra.mxu0 %v3063
    %3088 = vmatprep.subr.bf16.mxu0 0
    %3089 = vmatpush1.bf16.msra.mxu0 0
    %3090 = vmatprep.subr.bf16.mxu0 0
    %3091 = vmatpush1.bf16.msra.mxu0 0
    %3092 = vmatprep.subr.bf16.mxu0 0
    %3093 = vmatpush1.bf16.msra.mxu0 0
    %3094 = vmatprep.subr.bf16.mxu0 0
    %3095 = vmatpush1.bf16.msra.mxu0 0
    %3096 = vmatprep.subr.bf16.mxu0 0
    %3097 = vmatpush1.bf16.msra.mxu0 0
    %3098 = vmatprep.subr.bf16.mxu0 0
    %3099 = vmatpush1.bf16.msra.mxu0 0
    %3100 = vmatprep.subr.bf16.mxu0 0
    %3101 = vmatpush1.bf16.msra.mxu0 0
    %3102 = vmatprep.subr.bf16.mxu0 0
    %3103 = vmatpush1.bf16.msra.mxu0 0
    %3104 = vmatprep.mubr.bf16.mxu0 0
    %3105 = vmatmul.mubr.bf16.gmra.mrb[0].mxu0 %v3020
    %v3106 = vpop.f32.mrb[0].mxu0
    %v3107 = vadd.f32 0.0, %v3106
    %v3108 = vpop.f32.mrb[0].mxu0
    %v3109 = vpop.f32.mrb[0].mxu0
    %v3110 = vadd.f32 0.0, %v3109
    %v3111 = vpop.f32.mrb[0].mxu0
    %3112 = vmatprep.mubr.bf16.mxu0 0
    %3113 = vmatmul.mubr.bf16.gmra.mrb[0].mxu0 %v3021
    %v3114 = vpop.f32.mrb[0].mxu0
    %v3115 = vadd.f32 0.0, %v3114
    %v3116 = vpop.f32.mrb[0].mxu0
    %v3117 = vpop.f32.mrb[0].mxu0
    %v3118 = vadd.f32 0.0, %v3117
    %v3119 = vpop.f32.mrb[0].mxu0
    %3120 = vmatprep.mubr.bf16.mxu0 0
    %3121 = vmatmul.mubr.bf16.gmra.mrb[0].mxu0 %v3022
    %v3122 = vpop.f32.mrb[0].mxu0
    %v3123 = vadd.f32 0.0, %v3122
    %v3124 = vpop.f32.mrb[0].mxu0
    %v3125 = vpop.f32.mrb[0].mxu0
    %v3126 = vadd.f32 0.0, %v3125
    %v3127 = vpop.f32.mrb[0].mxu0
    %3128 = vmatprep.mubr.bf16.mxu0 0
    %3129 = vmatmul.mubr.bf16.gmra.mrb[0].mxu0 %v3023
    %v3130 = vpop.f32.mrb[0].mxu0
    %v3131 = vadd.f32 0.0, %v3130
    %v3132 = vpop.f32.mrb[0].mxu0
    %v3133 = vpop.f32.mrb[0].mxu0
    %v3134 = vadd.f32 0.0, %v3133
    %v3135 = vpop.f32.mrb[0].mxu0
    %3136 = vdwg.mxu0
    %v3138 = vlaneseq
    %v3139 = vshrl.u32 %v3138, 7
    %v3140 = vsub.s32 0, %v3139
    %v3141 = vrot.slane %v3010, %v3140
    %v3143 = vmul.f32 %v3107, %v3141
    %v3144 = vmul.f32 %v3110, %v3141
    %v3145 = vmul.f32 %v3115, %v3141
    %v3146 = vmul.f32 %v3118, %v3141
    %v3147 = vmul.f32 %v3123, %v3141
    %v3148 = vmul.f32 %v3126, %v3141
    %v3149 = vmul.f32 %v3131, %v3141
    %v3150 = vmul.f32 %v3134, %v3141
    %v3152 = vlaneseq
    %v3153 = vshrl.u32 %v3152, 7
    %v3154 = vsub.s32 0, %v3153
    %v3155 = vrot.slane %v3011, %v3154
    %v3157 = vadd.f32 %v3143, %v3155
    %v3158 = vadd.f32 %v3144, %v3155
    %v3159 = vadd.f32 %v3145, %v3155
    %v3160 = vadd.f32 %v3146, %v3155
    %v3161 = vadd.f32 %v3147, %v3155
    %v3162 = vadd.f32 %v3148, %v3155
    %v3163 = vadd.f32 %v3149, %v3155
    %v3164 = vadd.f32 %v3150, %v3155
    %v3165 = vmax.f32 %v3157, 0.0
    %v3166 = vmax.f32 %v3158, 0.0
    %v3167 = vmax.f32 %v3159, 0.0
    %v3168 = vmax.f32 %v3160, 0.0
    %v3169 = vmax.f32 %v3161, 0.0
    %v3170 = vmax.f32 %v3162, 0.0
    %v3171 = vmax.f32 %v3163, 0.0
    %v3172 = vmax.f32 %v3164, 0.0
    %s3173 = scalar_lea.vmem [#allocation4], 16
    %3174 = vst.msk [vmem:[%s3173 + $0x1] sm:$0xff] %vm99, %v3165
    %3175 = vst.msk [vmem:[%s3173 + $0x11] sm:$0xff] %vm99, %v3166
    %3176 = vst.msk [vmem:[%s3173 + $0x21] sm:$0xff] %vm99, %v3167
    %3177 = vst.msk [vmem:[%s3173 + $0x31] sm:$0xff] %vm99, %v3168
    %3178 = vst.msk [vmem:[%s3173 + $0x41] sm:$0xff] %vm99, %v3169
    %3179 = vst.msk [vmem:[%s3173 + $0x51] sm:$0xff] %vm99, %v3170
    %3180 = vst.msk [vmem:[%s3173 + $0x61] sm:$0xff] %vm99, %v3171
    %3181 = vst.msk [vmem:[%s3173 + $0x71] sm:$0xff] %vm99, %v3172
    %s3182 = scalar_lea.vmem [#allocation6], 64
    %v3183 = vld [vmem:[%s3182] sm:$0xff]
    %v3184 = vld [vmem:[%s3182 + $0x8] sm:$0xff]
    %v3185 = vld [vmem:[%s3182 + $0x10] sm:$0xff]
    %v3186 = vld [vmem:[%s3182 + $0x18] sm:$0xff]
    %v3187 = vld [vmem:[%s3182 + $0x20] sm:$0xff]
    %v3188 = vld [vmem:[%s3182 + $0x28] sm:$0xff]
    %v3189 = vld [vmem:[%s3182 + $0x30] sm:$0xff]
    %v3190 = vld [vmem:[%s3182 + $0x38] sm:$0xff]
    %v3191 = vpack.c.bf16 %v3184, %v3183
    %v3192 = vpack.c.bf16 %v3186, %v3185
    %v3193 = vpack.c.bf16 %v3188, %v3187
    %v3194 = vpack.c.bf16 %v3190, %v3189
    %3195 = vmatprep.subr.bf16.mxu0 0
    %3196 = vmatpush1.bf16.msra.mxu0 %v3056
    %3197 = vmatprep.subr.bf16.mxu0 0
    %3198 = vmatpush1.bf16.msra.mxu0 %v3057
    %3199 = vmatprep.subr.bf16.mxu0 0
    %3200 = vmatpush1.bf16.msra.mxu0 %v3058
    %3201 = vmatprep.subr.bf16.mxu0 0
    %3202 = vmatpush1.bf16.msra.mxu0 %v3059
    %3203 = vmatprep.subr.bf16.mxu0 0
    %3204 = vmatpush1.bf16.msra.mxu0 %v3060
    %3205 = vmatprep.subr.bf16.mxu0 0
    %3206 = vmatpush1.bf16.msra.mxu0 %v3061
    %3207 = vmatprep.subr.bf16.mxu0 0
    %3208 = vmatpush1.bf16.msra.mxu0 %v3062
    %3209 = vmatprep.subr.bf16.mxu0 0
    %3210 = vmatpush1.bf16.msra.mxu0 %v3063
    %3211 = vmatprep.subr.bf16.mxu0 0
    %3212 = vmatpush1.bf16.msra.mxu0 0
    %3213 = vmatprep.subr.bf16.mxu0 0
    %3214 = vmatpush1.bf16.msra.mxu0 0
    %3215 = vmatprep.subr.bf16.mxu0 0
    %3216 = vmatpush1.bf16.msra.mxu0 0
    %3217 = vmatprep.subr.bf16.mxu0 0
    %3218 = vmatpush1.bf16.msra.mxu0 0
    %3219 = vmatprep.subr.bf16.mxu0 0
    %3220 = vmatpush1.bf16.msra.mxu0 0
    %3221 = vmatprep.subr.bf16.mxu0 0
    %3222 = vmatpush1.bf16.msra.mxu0 0
    %3223 = vmatprep.subr.bf16.mxu0 0
    %3224 = vmatpush1.bf16.msra.mxu0 0
    %3225 = vmatprep.subr.bf16.mxu0 0
    %3226 = vmatpush1.bf16.msra.mxu0 0
    %3227 = vmatprep.mubr.bf16.mxu0 0
    %3228 = vmatmul.mubr.bf16.gmra.mrb[0].mxu0 %v3191
    %v3229 = vpop.f32.mrb[0].mxu0
    %v3230 = vadd.f32 0.0, %v3229
    %v3231 = vpop.f32.mrb[0].mxu0
    %v3232 = vpop.f32.mrb[0].mxu0
    %v3233 = vadd.f32 0.0, %v3232
    %v3234 = vpop.f32.mrb[0].mxu0
    %3235 = vmatprep.mubr.bf16.mxu0 0
    %3236 = vmatmul.mubr.bf16.gmra.mrb[0].mxu0 %v3192
    %v3237 = vpop.f32.mrb[0].mxu0
    %v3238 = vadd.f32 0.0, %v3237
    %v3239 = vpop.f32.mrb[0].mxu0
    %v3240 = vpop.f32.mrb[0].mxu0
    %v3241 = vadd.f32 0.0, %v3240
    %v3242 = vpop.f32.mrb[0].mxu0
    %3243 = vmatprep.mubr.bf16.mxu0 0
    %3244 = vmatmul.mubr.bf16.gmra.mrb[0].mxu0 %v3193
    %v3245 = vpop.f32.mrb[0].mxu0
    %v3246 = vadd.f32 0.0, %v3245
    %v3247 = vpop.f32.mrb[0].mxu0
    %v3248 = vpop.f32.mrb[0].mxu0
    %v3249 = vadd.f32 0.0, %v3248
    %v3250 = vpop.f32.mrb[0].mxu0
    %3251 = vmatprep.mubr.bf16.mxu0 0
    %3252 = vmatmul.mubr.bf16.gmra.mrb[0].mxu0 %v3194
    %v3253 = vpop.f32.mrb[0].mxu0
    %v3254 = vadd.f32 0.0, %v3253
    %v3255 = vpop.f32.mrb[0].mxu0
    %v3256 = vpop.f32.mrb[0].mxu0
    %v3257 = vadd.f32 0.0, %v3256
    %v3258 = vpop.f32.mrb[0].mxu0
    %3259 = vdwg.mxu0
    %v3260 = vmul.f32 %v3230, %v3141
    %v3261 = vmul.f32 %v3233, %v3141
    %v3262 = vmul.f32 %v3238, %v3141
    %v3263 = vmul.f32 %v3241, %v3141
    %v3264 = vmul.f32 %v3246, %v3141
    %v3265 = vmul.f32 %v3249, %v3141
    %v3266 = vmul.f32 %v3254, %v3141
    %v3267 = vmul.f32 %v3257, %v3141
    %v3268 = vadd.f32 %v3260, %v3155
    %v3269 = vadd.f32 %v3261, %v3155
    %v3270 = vadd.f32 %v3262, %v3155
    %v3271 = vadd.f32 %v3263, %v3155
    %v3272 = vadd.f32 %v3264, %v3155
    %v3273 = vadd.f32 %v3265, %v3155
    %v3274 = vadd.f32 %v3266, %v3155
    %v3275 = vadd.f32 %v3267, %v3155
    %v3276 = vmax.f32 %v3268, 0.0
    %v3277 = vmax.f32 %v3269, 0.0
    %v3278 = vmax.f32 %v3270, 0.0
    %v3279 = vmax.f32 %v3271, 0.0
    %v3280 = vmax.f32 %v3272, 0.0
    %v3281 = vmax.f32 %v3273, 0.0
    %v3282 = vmax.f32 %v3274, 0.0
    %v3283 = vmax.f32 %v3275, 0.0
    %s3284 = scalar_lea.vmem [#allocation4], 176
    %3285 = vst.msk [vmem:[%s3284 + $0x1] sm:$0xff] %vm99, %v3276
    %3286 = vst.msk [vmem:[%s3284 + $0x11] sm:$0xff] %vm99, %v3277
    %3287 = vst.msk [vmem:[%s3284 + $0x21] sm:$0xff] %vm99, %v3278
    %3288 = vst.msk [vmem:[%s3284 + $0x31] sm:$0xff] %vm99, %v3279
    %3289 = vst.msk [vmem:[%s3284 + $0x41] sm:$0xff] %vm99, %v3280
    %3290 = vst.msk [vmem:[%s3284 + $0x51] sm:$0xff] %vm99, %v3281
    %3291 = vst.msk [vmem:[%s3284 + $0x61] sm:$0xff] %vm99, %v3282
    %3292 = vst.msk [vmem:[%s3284 + $0x71] sm:$0xff] %vm99, %v3283
    %v3293 = vld [vmem:[#allocation4] sm:$0xff]
    %v3294 = vld [vmem:[#allocation4 + $0x10] sm:$0xff]
    %v3295 = vld [vmem:[#allocation4 + $0x20] sm:$0xff]
    %v3296 = vld [vmem:[#allocation4 + $0x30] sm:$0xff]
    %v3297 = vld [vmem:[#allocation4 + $0x40] sm:$0xff]
    %v3298 = vld [vmem:[#allocation4 + $0x50] sm:$0xff]
    %v3299 = vld [vmem:[#allocation4 + $0x60] sm:$0xff]
    %v3300 = vld [vmem:[#allocation4 + $0x70] sm:$0xff]
    %v3301 = vld [vmem:[#allocation4 + $0xa0] sm:$0xff]
    %v3302 = vld [vmem:[#allocation4 + $0xb0] sm:$0xff]
    %v3303 = vld [vmem:[#allocation4 + $0xc0] sm:$0xff]
    %v3304 = vld [vmem:[#allocation4 + $0xd0] sm:$0xff]
    %v3305 = vld [vmem:[#allocation4 + $0xe0] sm:$0xff]
    %v3306 = vld [vmem:[#allocation4 + $0xf0] sm:$0xff]
    %v3307 = vld [vmem:[#allocation4 + $0x100] sm:$0xff]
    %v3308 = vld [vmem:[#allocation4 + $0x110] sm:$0xff]
    %3309 = vst.msk [vmem:[#allocation5] sm:$0xff] %vm99, %v3293
    %3310 = vst.msk [vmem:[#allocation5 + $0x8] sm:$0xff] %vm99, %v3294
    %3311 = vst.msk [vmem:[#allocation5 + $0x10] sm:$0xff] %vm99, %v3295
    %3312 = vst.msk [vmem:[#allocation5 + $0x18] sm:$0xff] %vm99, %v3296
    %3313 = vst.msk [vmem:[#allocation5 + $0x20] sm:$0xff] %vm99, %v3297
    %3314 = vst.msk [vmem:[#allocation5 + $0x28] sm:$0xff] %vm99, %v3298
    %3315 = vst.msk [vmem:[#allocation5 + $0x30] sm:$0xff] %vm99, %v3299
    %3316 = vst.msk [vmem:[#allocation5 + $0x38] sm:$0xff] %vm99, %v3300
    %3317 = vst.msk [vmem:[#allocation5 + $0x40] sm:$0xff] %vm99, %v3301
    %3318 = vst.msk [vmem:[#allocation5 + $0x48] sm:$0xff] %vm99, %v3302
    %3319 = vst.msk [vmem:[#allocation5 + $0x50] sm:$0xff] %vm99, %v3303
    %3320 = vst.msk [vmem:[#allocation5 + $0x58] sm:$0xff] %vm99, %v3304
    %3321 = vst.msk [vmem:[#allocation5 + $0x60] sm:$0xff] %vm99, %v3305
    %3322 = vst.msk [vmem:[#allocation5 + $0x68] sm:$0xff] %vm99, %v3306
    %3323 = vst.msk [vmem:[#allocation5 + $0x70] sm:$0xff] %vm99, %v3307
    %3324 = vst.msk [vmem:[#allocation5 + $0x78] sm:$0xff] %vm99, %v3308
    %v3325 = vld [vmem:[#allocation4 + $0x1] sm:$0xff]
    %v3326 = vld [vmem:[#allocation4 + $0x11] sm:$0xff]
    %v3327 = vld [vmem:[#allocation4 + $0x21] sm:$0xff]
    %v3328 = vld [vmem:[#allocation4 + $0x31] sm:$0xff]
    %v3329 = vld [vmem:[#allocation4 + $0x41] sm:$0xff]
    %v3330 = vld [vmem:[#allocation4 + $0x51] sm:$0xff]
    %v3331 = vld [vmem:[#allocation4 + $0x61] sm:$0xff]
    %v3332 = vld [vmem:[#allocation4 + $0x71] sm:$0xff]
    %v3333 = vld [vmem:[#allocation4 + $0xa1] sm:$0xff]
    %v3334 = vld [vmem:[#allocation4 + $0xb1] sm:$0xff]
    %v3335 = vld [vmem:[#allocation4 + $0xc1] sm:$0xff]
    %v3336 = vld [vmem:[#allocation4 + $0xd1] sm:$0xff]
    %v3337 = vld [vmem:[#allocation4 + $0xe1] sm:$0xff]
    %v3338 = vld [vmem:[#allocation4 + $0xf1] sm:$0xff]
    %v3339 = vld [vmem:[#allocation4 + $0x101] sm:$0xff]
    %v3340 = vld [vmem:[#allocation4 + $0x111] sm:$0xff]
    %3357 = vrot.lane.b32.xlu0 %v3325, 8
    %v3358 = vpop.permute.xlu0 %3357
    %3359 = vrot.lane.b32.xlu0 %v3326, 8
    %v3360 = vpop.permute.xlu0 %3359
    %3361 = vrot.lane.b32.xlu0 %v3327, 8
    %v3362 = vpop.permute.xlu0 %3361
    %3363 = vrot.lane.b32.xlu0 %v3328, 8
    %v3364 = vpop.permute.xlu0 %3363
    %3365 = vrot.lane.b32.xlu0 %v3329, 8
    %v3366 = vpop.permute.xlu0 %3365
    %3367 = vrot.lane.b32.xlu0 %v3330, 8
    %v3368 = vpop.permute.xlu0 %3367
    %3369 = vrot.lane.b32.xlu0 %v3331, 8
    %v3370 = vpop.permute.xlu0 %3369
    %3371 = vrot.lane.b32.xlu0 %v3332, 8
    %v3372 = vpop.permute.xlu0 %3371
    %3373 = vrot.lane.b32.xlu0 %v3333, 8
    %v3374 = vpop.permute.xlu0 %3373
    %3375 = vrot.lane.b32.xlu0 %v3334, 8
    %v3376 = vpop.permute.xlu0 %3375
    %3377 = vrot.lane.b32.xlu0 %v3335, 8
    %v3378 = vpop.permute.xlu0 %3377
    %3379 = vrot.lane.b32.xlu0 %v3336, 8
    %v3380 = vpop.permute.xlu0 %3379
    %3381 = vrot.lane.b32.xlu0 %v3337, 8
    %v3382 = vpop.permute.xlu0 %3381
    %3383 = vrot.lane.b32.xlu0 %v3338, 8
    %v3384 = vpop.permute.xlu0 %3383
    %3385 = vrot.lane.b32.xlu0 %v3339, 8
    %v3386 = vpop.permute.xlu0 %3385
    %3387 = vrot.lane.b32.xlu0 %v3340, 8
    %v3388 = vpop.permute.xlu0 %3387
    %3405 = vst.msk [vmem:[#allocation5] sm:$0xff] %vm1177, %v3358
    %3406 = vst.msk [vmem:[#allocation5 + $0x8] sm:$0xff] %vm1177, %v3360
    %3407 = vst.msk [vmem:[#allocation5 + $0x10] sm:$0xff] %vm1177, %v3362
    %3408 = vst.msk [vmem:[#allocation5 + $0x18] sm:$0xff] %vm1177, %v3364
    %3409 = vst.msk [vmem:[#allocation5 + $0x20] sm:$0xff] %vm1177, %v3366
    %3410 = vst.msk [vmem:[#allocation5 + $0x28] sm:$0xff] %vm1177, %v3368
    %3411 = vst.msk [vmem:[#allocation5 + $0x30] sm:$0xff] %vm1177, %v3370
    %3412 = vst.msk [vmem:[#allocation5 + $0x38] sm:$0xff] %vm1177, %v3372
    %3413 = vst.msk [vmem:[#allocation5 + $0x40] sm:$0xff] %vm1177, %v3374
    %3414 = vst.msk [vmem:[#allocation5 + $0x48] sm:$0xff] %vm1177, %v3376
    %3415 = vst.msk [vmem:[#allocation5 + $0x50] sm:$0xff] %vm1177, %v3378
    %3416 = vst.msk [vmem:[#allocation5 + $0x58] sm:$0xff] %vm1177, %v3380
    %3417 = vst.msk [vmem:[#allocation5 + $0x60] sm:$0xff] %vm1177, %v3382
    %3418 = vst.msk [vmem:[#allocation5 + $0x68] sm:$0xff] %vm1177, %v3384
    %3419 = vst.msk [vmem:[#allocation5 + $0x70] sm:$0xff] %vm1177, %v3386
    %3420 = vst.msk [vmem:[#allocation5 + $0x78] sm:$0xff] %vm1177, %v3388
    %v3421 = vld [vmem:[#allocation4 + $0x2] sm:$0xff]
    %v3422 = vld [vmem:[#allocation4 + $0x12] sm:$0xff]
    %v3423 = vld [vmem:[#allocation4 + $0x22] sm:$0xff]
    %v3424 = vld [vmem:[#allocation4 + $0x32] sm:$0xff]
    %v3425 = vld [vmem:[#allocation4 + $0x42] sm:$0xff]
    %v3426 = vld [vmem:[#allocation4 + $0x52] sm:$0xff]
    %v3427 = vld [vmem:[#allocation4 + $0x62] sm:$0xff]
    %v3428 = vld [vmem:[#allocation4 + $0x72] sm:$0xff]
    %v3429 = vld [vmem:[#allocation4 + $0xa2] sm:$0xff]
    %v3430 = vld [vmem:[#allocation4 + $0xb2] sm:$0xff]
    %v3431 = vld [vmem:[#allocation4 + $0xc2] sm:$0xff]
    %v3432 = vld [vmem:[#allocation4 + $0xd2] sm:$0xff]
    %v3433 = vld [vmem:[#allocation4 + $0xe2] sm:$0xff]
    %v3434 = vld [vmem:[#allocation4 + $0xf2] sm:$0xff]
    %v3435 = vld [vmem:[#allocation4 + $0x102] sm:$0xff]
    %v3436 = vld [vmem:[#allocation4 + $0x112] sm:$0xff]
    %3453 = vrot.lane.b32.xlu0 %v3421, 16
    %v3454 = vpop.permute.xlu0 %3453
    %3455 = vrot.lane.b32.xlu0 %v3422, 16
    %v3456 = vpop.permute.xlu0 %3455
    %3457 = vrot.lane.b32.xlu0 %v3423, 16
    %v3458 = vpop.permute.xlu0 %3457
    %3459 = vrot.lane.b32.xlu0 %v3424, 16
    %v3460 = vpop.permute.xlu0 %3459
    %3461 = vrot.lane.b32.xlu0 %v3425, 16
    %v3462 = vpop.permute.xlu0 %3461
    %3463 = vrot.lane.b32.xlu0 %v3426, 16
    %v3464 = vpop.permute.xlu0 %3463
    %3465 = vrot.lane.b32.xlu0 %v3427, 16
    %v3466 = vpop.permute.xlu0 %3465
    %3467 = vrot.lane.b32.xlu0 %v3428, 16
    %v3468 = vpop.permute.xlu0 %3467
    %3469 = vrot.lane.b32.xlu0 %v3429, 16
    %v3470 = vpop.permute.xlu0 %3469
    %3471 = vrot.lane.b32.xlu0 %v3430, 16
    %v3472 = vpop.permute.xlu0 %3471
    %3473 = vrot.lane.b32.xlu0 %v3431, 16
    %v3474 = vpop.permute.xlu0 %3473
    %3475 = vrot.lane.b32.xlu0 %v3432, 16
    %v3476 = vpop.permute.xlu0 %3475
    %3477 = vrot.lane.b32.xlu0 %v3433, 16
    %v3478 = vpop.permute.xlu0 %3477
    %3479 = vrot.lane.b32.xlu0 %v3434, 16
    %v3480 = vpop.permute.xlu0 %3479
    %3481 = vrot.lane.b32.xlu0 %v3435, 16
    %v3482 = vpop.permute.xlu0 %3481
    %3483 = vrot.lane.b32.xlu0 %v3436, 16
    %v3484 = vpop.permute.xlu0 %3483
    %3501 = vst.msk [vmem:[#allocation5] sm:$0xff] %vm1290, %v3454
    %3502 = vst.msk [vmem:[#allocation5 + $0x8] sm:$0xff] %vm1290, %v3456
    %3503 = vst.msk [vmem:[#allocation5 + $0x10] sm:$0xff] %vm1290, %v3458
    %3504 = vst.msk [vmem:[#allocation5 + $0x18] sm:$0xff] %vm1290, %v3460
    %3505 = vst.msk [vmem:[#allocation5 + $0x20] sm:$0xff] %vm1290, %v3462
    %3506 = vst.msk [vmem:[#allocation5 + $0x28] sm:$0xff] %vm1290, %v3464
    %3507 = vst.msk [vmem:[#allocation5 + $0x30] sm:$0xff] %vm1290, %v3466
    %3508 = vst.msk [vmem:[#allocation5 + $0x38] sm:$0xff] %vm1290, %v3468
    %3509 = vst.msk [vmem:[#allocation5 + $0x40] sm:$0xff] %vm1290, %v3470
    %3510 = vst.msk [vmem:[#allocation5 + $0x48] sm:$0xff] %vm1290, %v3472
    %3511 = vst.msk [vmem:[#allocation5 + $0x50] sm:$0xff] %vm1290, %v3474
    %3512 = vst.msk [vmem:[#allocation5 + $0x58] sm:$0xff] %vm1290, %v3476
    %3513 = vst.msk [vmem:[#allocation5 + $0x60] sm:$0xff] %vm1290, %v3478
    %3514 = vst.msk [vmem:[#allocation5 + $0x68] sm:$0xff] %vm1290, %v3480
    %3515 = vst.msk [vmem:[#allocation5 + $0x70] sm:$0xff] %vm1290, %v3482
    %3516 = vst.msk [vmem:[#allocation5 + $0x78] sm:$0xff] %vm1290, %v3484
    %v3517 = vld [vmem:[%s3173] sm:$0xff]
    %v3518 = vld [vmem:[%s3173 + $0x10] sm:$0xff]
    %v3519 = vld [vmem:[%s3173 + $0x20] sm:$0xff]
    %v3520 = vld [vmem:[%s3173 + $0x30] sm:$0xff]
    %v3521 = vld [vmem:[%s3173 + $0x40] sm:$0xff]
    %v3522 = vld [vmem:[%s3173 + $0x50] sm:$0xff]
    %v3523 = vld [vmem:[%s3173 + $0x60] sm:$0xff]
    %v3524 = vld [vmem:[%s3173 + $0x70] sm:$0xff]
    %v3525 = vld [vmem:[%s3173 + $0xa0] sm:$0xff]
    %v3526 = vld [vmem:[%s3173 + $0xb0] sm:$0xff]
    %v3527 = vld [vmem:[%s3173 + $0xc0] sm:$0xff]
    %v3528 = vld [vmem:[%s3173 + $0xd0] sm:$0xff]
    %v3529 = vld [vmem:[%s3173 + $0xe0] sm:$0xff]
    %v3530 = vld [vmem:[%s3173 + $0xf0] sm:$0xff]
    %v3531 = vld [vmem:[%s3173 + $0x100] sm:$0xff]
    %v3532 = vld [vmem:[%s3173 + $0x110] sm:$0xff]
    %3549 = vrot.lane.b32.xlu0 %v3517, 24
    %v3550 = vpop.permute.xlu0 %3549
    %3551 = vrot.lane.b32.xlu0 %v3518, 24
    %v3552 = vpop.permute.xlu0 %3551
    %3553 = vrot.lane.b32.xlu0 %v3519, 24
    %v3554 = vpop.permute.xlu0 %3553
    %3555 = vrot.lane.b32.xlu0 %v3520, 24
    %v3556 = vpop.permute.xlu0 %3555
    %3557 = vrot.lane.b32.xlu0 %v3521, 24
    %v3558 = vpop.permute.xlu0 %3557
    %3559 = vrot.lane.b32.xlu0 %v3522, 24
    %v3560 = vpop.permute.xlu0 %3559
    %3561 = vrot.lane.b32.xlu0 %v3523, 24
    %v3562 = vpop.permute.xlu0 %3561
    %3563 = vrot.lane.b32.xlu0 %v3524, 24
    %v3564 = vpop.permute.xlu0 %3563
    %3565 = vrot.lane.b32.xlu0 %v3525, 24
    %v3566 = vpop.permute.xlu0 %3565
    %3567 = vrot.lane.b32.xlu0 %v3526, 24
    %v3568 = vpop.permute.xlu0 %3567
    %3569 = vrot.lane.b32.xlu0 %v3527, 24
    %v3570 = vpop.permute.xlu0 %3569
    %3571 = vrot.lane.b32.xlu0 %v3528, 24
    %v3572 = vpop.permute.xlu0 %3571
    %3573 = vrot.lane.b32.xlu0 %v3529, 24
    %v3574 = vpop.permute.xlu0 %3573
    %3575 = vrot.lane.b32.xlu0 %v3530, 24
    %v3576 = vpop.permute.xlu0 %3575
    %3577 = vrot.lane.b32.xlu0 %v3531, 24
    %v3578 = vpop.permute.xlu0 %3577
    %3579 = vrot.lane.b32.xlu0 %v3532, 24
    %v3580 = vpop.permute.xlu0 %3579
    %3597 = vst.msk [vmem:[#allocation5] sm:$0xff] %vm1402, %v3550
    %3598 = vst.msk [vmem:[#allocation5 + $0x8] sm:$0xff] %vm1402, %v3552
    %3599 = vst.msk [vmem:[#allocation5 + $0x10] sm:$0xff] %vm1402, %v3554
    %3600 = vst.msk [vmem:[#allocation5 + $0x18] sm:$0xff] %vm1402, %v3556
    %3601 = vst.msk [vmem:[#allocation5 + $0x20] sm:$0xff] %vm1402, %v3558
    %3602 = vst.msk [vmem:[#allocation5 + $0x28] sm:$0xff] %vm1402, %v3560
    %3603 = vst.msk [vmem:[#allocation5 + $0x30] sm:$0xff] %vm1402, %v3562
    %3604 = vst.msk [vmem:[#allocation5 + $0x38] sm:$0xff] %vm1402, %v3564
    %3605 = vst.msk [vmem:[#allocation5 + $0x40] sm:$0xff] %vm1402, %v3566
    %3606 = vst.msk [vmem:[#allocation5 + $0x48] sm:$0xff] %vm1402, %v3568
    %3607 = vst.msk [vmem:[#allocation5 + $0x50] sm:$0xff] %vm1402, %v3570
    %3608 = vst.msk [vmem:[#allocation5 + $0x58] sm:$0xff] %vm1402, %v3572
    %3609 = vst.msk [vmem:[#allocation5 + $0x60] sm:$0xff] %vm1402, %v3574
    %3610 = vst.msk [vmem:[#allocation5 + $0x68] sm:$0xff] %vm1402, %v3576
    %3611 = vst.msk [vmem:[#allocation5 + $0x70] sm:$0xff] %vm1402, %v3578
    %3612 = vst.msk [vmem:[#allocation5 + $0x78] sm:$0xff] %vm1402, %v3580
    %v3613 = vld [vmem:[%s3173 + $0x1] sm:$0xff]
    %v3614 = vld [vmem:[%s3173 + $0x11] sm:$0xff]
    %v3615 = vld [vmem:[%s3173 + $0x21] sm:$0xff]
    %v3616 = vld [vmem:[%s3173 + $0x31] sm:$0xff]
    %v3617 = vld [vmem:[%s3173 + $0x41] sm:$0xff]
    %v3618 = vld [vmem:[%s3173 + $0x51] sm:$0xff]
    %v3619 = vld [vmem:[%s3173 + $0x61] sm:$0xff]
    %v3620 = vld [vmem:[%s3173 + $0x71] sm:$0xff]
    %v3621 = vld [vmem:[%s3173 + $0xa1] sm:$0xff]
    %v3622 = vld [vmem:[%s3173 + $0xb1] sm:$0xff]
    %v3623 = vld [vmem:[%s3173 + $0xc1] sm:$0xff]
    %v3624 = vld [vmem:[%s3173 + $0xd1] sm:$0xff]
    %v3625 = vld [vmem:[%s3173 + $0xe1] sm:$0xff]
    %v3626 = vld [vmem:[%s3173 + $0xf1] sm:$0xff]
    %v3627 = vld [vmem:[%s3173 + $0x101] sm:$0xff]
    %v3628 = vld [vmem:[%s3173 + $0x111] sm:$0xff]
    %3645 = vrot.lane.b32.xlu0 %v3613, 32
    %v3646 = vpop.permute.xlu0 %3645
    %3647 = vrot.lane.b32.xlu0 %v3614, 32
    %v3648 = vpop.permute.xlu0 %3647
    %3649 = vrot.lane.b32.xlu0 %v3615, 32
    %v3650 = vpop.permute.xlu0 %3649
    %3651 = vrot.lane.b32.xlu0 %v3616, 32
    %v3652 = vpop.permute.xlu0 %3651
    %3653 = vrot.lane.b32.xlu0 %v3617, 32
    %v3654 = vpop.permute.xlu0 %3653
    %3655 = vrot.lane.b32.xlu0 %v3618, 32
    %v3656 = vpop.permute.xlu0 %3655
    %3657 = vrot.lane.b32.xlu0 %v3619, 32
    %v3658 = vpop.permute.xlu0 %3657
    %3659 = vrot.lane.b32.xlu0 %v3620, 32
    %v3660 = vpop.permute.xlu0 %3659
    %3661 = vrot.lane.b32.xlu0 %v3621, 32
    %v3662 = vpop.permute.xlu0 %3661
    %3663 = vrot.lane.b32.xlu0 %v3622, 32
    %v3664 = vpop.permute.xlu0 %3663
    %3665 = vrot.lane.b32.xlu0 %v3623, 32
    %v3666 = vpop.permute.xlu0 %3665
    %3667 = vrot.lane.b32.xlu0 %v3624, 32
    %v3668 = vpop.permute.xlu0 %3667
    %3669 = vrot.lane.b32.xlu0 %v3625, 32
    %v3670 = vpop.permute.xlu0 %3669
    %3671 = vrot.lane.b32.xlu0 %v3626, 32
    %v3672 = vpop.permute.xlu0 %3671
    %3673 = vrot.lane.b32.xlu0 %v3627, 32
    %v3674 = vpop.permute.xlu0 %3673
    %3675 = vrot.lane.b32.xlu0 %v3628, 32
    %v3676 = vpop.permute.xlu0 %3675
    %3693 = vst.msk [vmem:[#allocation5] sm:$0xff] %vm1515, %v3646
    %3694 = vst.msk [vmem:[#allocation5 + $0x8] sm:$0xff] %vm1515, %v3648
    %3695 = vst.msk [vmem:[#allocation5 + $0x10] sm:$0xff] %vm1515, %v3650
    %3696 = vst.msk [vmem:[#allocation5 + $0x18] sm:$0xff] %vm1515, %v3652
    %3697 = vst.msk [vmem:[#allocation5 + $0x20] sm:$0xff] %vm1515, %v3654
    %3698 = vst.msk [vmem:[#allocation5 + $0x28] sm:$0xff] %vm1515, %v3656
    %3699 = vst.msk [vmem:[#allocation5 + $0x30] sm:$0xff] %vm1515, %v3658
    %3700 = vst.msk [vmem:[#allocation5 + $0x38] sm:$0xff] %vm1515, %v3660
    %3701 = vst.msk [vmem:[#allocation5 + $0x40] sm:$0xff] %vm1515, %v3662
    %3702 = vst.msk [vmem:[#allocation5 + $0x48] sm:$0xff] %vm1515, %v3664
    %3703 = vst.msk [vmem:[#allocation5 + $0x50] sm:$0xff] %vm1515, %v3666
    %3704 = vst.msk [vmem:[#allocation5 + $0x58] sm:$0xff] %vm1515, %v3668
    %3705 = vst.msk [vmem:[#allocation5 + $0x60] sm:$0xff] %vm1515, %v3670
    %3706 = vst.msk [vmem:[#allocation5 + $0x68] sm:$0xff] %vm1515, %v3672
    %3707 = vst.msk [vmem:[#allocation5 + $0x70] sm:$0xff] %vm1515, %v3674
    %3708 = vst.msk [vmem:[#allocation5 + $0x78] sm:$0xff] %vm1515, %v3676
    %v3709 = vld [vmem:[%s3173 + $0x2] sm:$0xff]
    %v3710 = vld [vmem:[%s3173 + $0x12] sm:$0xff]
    %v3711 = vld [vmem:[%s3173 + $0x22] sm:$0xff]
    %v3712 = vld [vmem:[%s3173 + $0x32] sm:$0xff]
    %v3713 = vld [vmem:[%s3173 + $0x42] sm:$0xff]
    %v3714 = vld [vmem:[%s3173 + $0x52] sm:$0xff]
    %v3715 = vld [vmem:[%s3173 + $0x62] sm:$0xff]
    %v3716 = vld [vmem:[%s3173 + $0x72] sm:$0xff]
    %v3717 = vld [vmem:[%s3173 + $0xa2] sm:$0xff]
    %v3718 = vld [vmem:[%s3173 + $0xb2] sm:$0xff]
    %v3719 = vld [vmem:[%s3173 + $0xc2] sm:$0xff]
    %v3720 = vld [vmem:[%s3173 + $0xd2] sm:$0xff]
    %v3721 = vld [vmem:[%s3173 + $0xe2] sm:$0xff]
    %v3722 = vld [vmem:[%s3173 + $0xf2] sm:$0xff]
    %v3723 = vld [vmem:[%s3173 + $0x102] sm:$0xff]
    %v3724 = vld [vmem:[%s3173 + $0x112] sm:$0xff]
    %3741 = vrot.lane.b32.xlu0 %v3709, 40
    %v3742 = vpop.permute.xlu0 %3741
    %3743 = vrot.lane.b32.xlu0 %v3710, 40
    %v3744 = vpop.permute.xlu0 %3743
    %3745 = vrot.lane.b32.xlu0 %v3711, 40
    %v3746 = vpop.permute.xlu0 %3745
    %3747 = vrot.lane.b32.xlu0 %v3712, 40
    %v3748 = vpop.permute.xlu0 %3747
    %3749 = vrot.lane.b32.xlu0 %v3713, 40
    %v3750 = vpop.permute.xlu0 %3749
    %3751 = vrot.lane.b32.xlu0 %v3714, 40
    %v3752 = vpop.permute.xlu0 %3751
    %3753 = vrot.lane.b32.xlu0 %v3715, 40
    %v3754 = vpop.permute.xlu0 %3753
    %3755 = vrot.lane.b32.xlu0 %v3716, 40
    %v3756 = vpop.permute.xlu0 %3755
    %3757 = vrot.lane.b32.xlu0 %v3717, 40
    %v3758 = vpop.permute.xlu0 %3757
    %3759 = vrot.lane.b32.xlu0 %v3718, 40
    %v3760 = vpop.permute.xlu0 %3759
    %3761 = vrot.lane.b32.xlu0 %v3719, 40
    %v3762 = vpop.permute.xlu0 %3761
    %3763 = vrot.lane.b32.xlu0 %v3720, 40
    %v3764 = vpop.permute.xlu0 %3763
    %3765 = vrot.lane.b32.xlu0 %v3721, 40
    %v3766 = vpop.permute.xlu0 %3765
    %3767 = vrot.lane.b32.xlu0 %v3722, 40
    %v3768 = vpop.permute.xlu0 %3767
    %3769 = vrot.lane.b32.xlu0 %v3723, 40
    %v3770 = vpop.permute.xlu0 %3769
    %3771 = vrot.lane.b32.xlu0 %v3724, 40
    %v3772 = vpop.permute.xlu0 %3771
    %3789 = vst.msk [vmem:[#allocation5] sm:$0xff] %vm1628, %v3742
    %3790 = vst.msk [vmem:[#allocation5 + $0x8] sm:$0xff] %vm1628, %v3744
    %3791 = vst.msk [vmem:[#allocation5 + $0x10] sm:$0xff] %vm1628, %v3746
    %3792 = vst.msk [vmem:[#allocation5 + $0x18] sm:$0xff] %vm1628, %v3748
    %3793 = vst.msk [vmem:[#allocation5 + $0x20] sm:$0xff] %vm1628, %v3750
    %3794 = vst.msk [vmem:[#allocation5 + $0x28] sm:$0xff] %vm1628, %v3752
    %3795 = vst.msk [vmem:[#allocation5 + $0x30] sm:$0xff] %vm1628, %v3754
    %3796 = vst.msk [vmem:[#allocation5 + $0x38] sm:$0xff] %vm1628, %v3756
    %3797 = vst.msk [vmem:[#allocation5 + $0x40] sm:$0xff] %vm1628, %v3758
    %3798 = vst.msk [vmem:[#allocation5 + $0x48] sm:$0xff] %vm1628, %v3760
    %3799 = vst.msk [vmem:[#allocation5 + $0x50] sm:$0xff] %vm1628, %v3762
    %3800 = vst.msk [vmem:[#allocation5 + $0x58] sm:$0xff] %vm1628, %v3764
    %3801 = vst.msk [vmem:[#allocation5 + $0x60] sm:$0xff] %vm1628, %v3766
    %3802 = vst.msk [vmem:[#allocation5 + $0x68] sm:$0xff] %vm1628, %v3768
    %3803 = vst.msk [vmem:[#allocation5 + $0x70] sm:$0xff] %vm1628, %v3770
    %3804 = vst.msk [vmem:[#allocation5 + $0x78] sm:$0xff] %vm1628, %v3772
    %s3805 = scalar_lea.vmem [#allocation4], 32
    %v3806 = vld [vmem:[%s3805] sm:$0xff]
    %v3807 = vld [vmem:[%s3805 + $0x10] sm:$0xff]
    %v3808 = vld [vmem:[%s3805 + $0x20] sm:$0xff]
    %v3809 = vld [vmem:[%s3805 + $0x30] sm:$0xff]
    %v3810 = vld [vmem:[%s3805 + $0x40] sm:$0xff]
    %v3811 = vld [vmem:[%s3805 + $0x50] sm:$0xff]
    %v3812 = vld [vmem:[%s3805 + $0x60] sm:$0xff]
    %v3813 = vld [vmem:[%s3805 + $0x70] sm:$0xff]
    %v3814 = vld [vmem:[%s3805 + $0xa0] sm:$0xff]
    %v3815 = vld [vmem:[%s3805 + $0xb0] sm:$0xff]
    %v3816 = vld [vmem:[%s3805 + $0xc0] sm:$0xff]
    %v3817 = vld [vmem:[%s3805 + $0xd0] sm:$0xff]
    %v3818 = vld [vmem:[%s3805 + $0xe0] sm:$0xff]
    %v3819 = vld [vmem:[%s3805 + $0xf0] sm:$0xff]
    %v3820 = vld [vmem:[%s3805 + $0x100] sm:$0xff]
    %v3821 = vld [vmem:[%s3805 + $0x110] sm:$0xff]
    %3838 = vrot.lane.b32.xlu0 %v3806, 48
    %v3839 = vpop.permute.xlu0 %3838
    %3840 = vrot.lane.b32.xlu0 %v3807, 48
    %v3841 = vpop.permute.xlu0 %3840
    %3842 = vrot.lane.b32.xlu0 %v3808, 48
    %v3843 = vpop.permute.xlu0 %3842
    %3844 = vrot.lane.b32.xlu0 %v3809, 48
    %v3845 = vpop.permute.xlu0 %3844
    %3846 = vrot.lane.b32.xlu0 %v3810, 48
    %v3847 = vpop.permute.xlu0 %3846
    %3848 = vrot.lane.b32.xlu0 %v3811, 48
    %v3849 = vpop.permute.xlu0 %3848
    %3850 = vrot.lane.b32.xlu0 %v3812, 48
    %v3851 = vpop.permute.xlu0 %3850
    %3852 = vrot.lane.b32.xlu0 %v3813, 48
    %v3853 = vpop.permute.xlu0 %3852
    %3854 = vrot.lane.b32.xlu0 %v3814, 48
    %v3855 = vpop.permute.xlu0 %3854
    %3856 = vrot.lane.b32.xlu0 %v3815, 48
    %v3857 = vpop.permute.xlu0 %3856
    %3858 = vrot.lane.b32.xlu0 %v3816, 48
    %v3859 = vpop.permute.xlu0 %3858
    %3860 = vrot.lane.b32.xlu0 %v3817, 48
    %v3861 = vpop.permute.xlu0 %3860
    %3862 = vrot.lane.b32.xlu0 %v3818, 48
    %v3863 = vpop.permute.xlu0 %3862
    %3864 = vrot.lane.b32.xlu0 %v3819, 48
    %v3865 = vpop.permute.xlu0 %3864
    %3866 = vrot.lane.b32.xlu0 %v3820, 48
    %v3867 = vpop.permute.xlu0 %3866
    %3868 = vrot.lane.b32.xlu0 %v3821, 48
    %v3869 = vpop.permute.xlu0 %3868
    %3886 = vst.msk [vmem:[#allocation5] sm:$0xff] %vm1741, %v3839
    %3887 = vst.msk [vmem:[#allocation5 + $0x8] sm:$0xff] %vm1741, %v3841
    %3888 = vst.msk [vmem:[#allocation5 + $0x10] sm:$0xff] %vm1741, %v3843
    %3889 = vst.msk [vmem:[#allocation5 + $0x18] sm:$0xff] %vm1741, %v3845
    %3890 = vst.msk [vmem:[#allocation5 + $0x20] sm:$0xff] %vm1741, %v3847
    %3891 = vst.msk [vmem:[#allocation5 + $0x28] sm:$0xff] %vm1741, %v3849
    %3892 = vst.msk [vmem:[#allocation5 + $0x30] sm:$0xff] %vm1741, %v3851
    %3893 = vst.msk [vmem:[#allocation5 + $0x38] sm:$0xff] %vm1741, %v3853
    %3894 = vst.msk [vmem:[#allocation5 + $0x40] sm:$0xff] %vm1741, %v3855
    %3895 = vst.msk [vmem:[#allocation5 + $0x48] sm:$0xff] %vm1741, %v3857
    %3896 = vst.msk [vmem:[#allocation5 + $0x50] sm:$0xff] %vm1741, %v3859
    %3897 = vst.msk [vmem:[#allocation5 + $0x58] sm:$0xff] %vm1741, %v3861
    %3898 = vst.msk [vmem:[#allocation5 + $0x60] sm:$0xff] %vm1741, %v3863
    %3899 = vst.msk [vmem:[#allocation5 + $0x68] sm:$0xff] %vm1741, %v3865
    %3900 = vst.msk [vmem:[#allocation5 + $0x70] sm:$0xff] %vm1741, %v3867
    %3901 = vst.msk [vmem:[#allocation5 + $0x78] sm:$0xff] %vm1741, %v3869
    %v3902 = vld [vmem:[%s3805 + $0x1] sm:$0xff]
    %v3903 = vld [vmem:[%s3805 + $0x11] sm:$0xff]
    %v3904 = vld [vmem:[%s3805 + $0x21] sm:$0xff]
    %v3905 = vld [vmem:[%s3805 + $0x31] sm:$0xff]
    %v3906 = vld [vmem:[%s3805 + $0x41] sm:$0xff]
    %v3907 = vld [vmem:[%s3805 + $0x51] sm:$0xff]
    %v3908 = vld [vmem:[%s3805 + $0x61] sm:$0xff]
    %v3909 = vld [vmem:[%s3805 + $0x71] sm:$0xff]
    %v3910 = vld [vmem:[%s3805 + $0xa1] sm:$0xff]
    %v3911 = vld [vmem:[%s3805 + $0xb1] sm:$0xff]
    %v3912 = vld [vmem:[%s3805 + $0xc1] sm:$0xff]
    %v3913 = vld [vmem:[%s3805 + $0xd1] sm:$0xff]
    %v3914 = vld [vmem:[%s3805 + $0xe1] sm:$0xff]
    %v3915 = vld [vmem:[%s3805 + $0xf1] sm:$0xff]
    %v3916 = vld [vmem:[%s3805 + $0x101] sm:$0xff]
    %v3917 = vld [vmem:[%s3805 + $0x111] sm:$0xff]
    %3934 = vrot.lane.b32.xlu0 %v3902, 56
    %v3935 = vpop.permute.xlu0 %3934
    %3936 = vrot.lane.b32.xlu0 %v3903, 56
    %v3937 = vpop.permute.xlu0 %3936
    %3938 = vrot.lane.b32.xlu0 %v3904, 56
    %v3939 = vpop.permute.xlu0 %3938
    %3940 = vrot.lane.b32.xlu0 %v3905, 56
    %v3941 = vpop.permute.xlu0 %3940
    %3942 = vrot.lane.b32.xlu0 %v3906, 56
    %v3943 = vpop.permute.xlu0 %3942
    %3944 = vrot.lane.b32.xlu0 %v3907, 56
    %v3945 = vpop.permute.xlu0 %3944
    %3946 = vrot.lane.b32.xlu0 %v3908, 56
    %v3947 = vpop.permute.xlu0 %3946
    %3948 = vrot.lane.b32.xlu0 %v3909, 56
    %v3949 = vpop.permute.xlu0 %3948
    %3950 = vrot.lane.b32.xlu0 %v3910, 56
    %v3951 = vpop.permute.xlu0 %3950
    %3952 = vrot.lane.b32.xlu0 %v3911, 56
    %v3953 = vpop.permute.xlu0 %3952
    %3954 = vrot.lane.b32.xlu0 %v3912, 56
    %v3955 = vpop.permute.xlu0 %3954
    %3956 = vrot.lane.b32.xlu0 %v3913, 56
    %v3957 = vpop.permute.xlu0 %3956
    %3958 = vrot.lane.b32.xlu0 %v3914, 56
    %v3959 = vpop.permute.xlu0 %3958
    %3960 = vrot.lane.b32.xlu0 %v3915, 56
    %v3961 = vpop.permute.xlu0 %3960
    %3962 = vrot.lane.b32.xlu0 %v3916, 56
    %v3963 = vpop.permute.xlu0 %3962
    %3964 = vrot.lane.b32.xlu0 %v3917, 56
    %v3965 = vpop.permute.xlu0 %3964
    %3982 = vst.msk [vmem:[#allocation5] sm:$0xff] %vm1854, %v3935
    %3983 = vst.msk [vmem:[#allocation5 + $0x8] sm:$0xff] %vm1854, %v3937
    %3984 = vst.msk [vmem:[#allocation5 + $0x10] sm:$0xff] %vm1854, %v3939
    %3985 = vst.msk [vmem:[#allocation5 + $0x18] sm:$0xff] %vm1854, %v3941
    %3986 = vst.msk [vmem:[#allocation5 + $0x20] sm:$0xff] %vm1854, %v3943
    %3987 = vst.msk [vmem:[#allocation5 + $0x28] sm:$0xff] %vm1854, %v3945
    %3988 = vst.msk [vmem:[#allocation5 + $0x30] sm:$0xff] %vm1854, %v3947
    %3989 = vst.msk [vmem:[#allocation5 + $0x38] sm:$0xff] %vm1854, %v3949
    %3990 = vst.msk [vmem:[#allocation5 + $0x40] sm:$0xff] %vm1854, %v3951
    %3991 = vst.msk [vmem:[#allocation5 + $0x48] sm:$0xff] %vm1854, %v3953
    %3992 = vst.msk [vmem:[#allocation5 + $0x50] sm:$0xff] %vm1854, %v3955
    %3993 = vst.msk [vmem:[#allocation5 + $0x58] sm:$0xff] %vm1854, %v3957
    %3994 = vst.msk [vmem:[#allocation5 + $0x60] sm:$0xff] %vm1854, %v3959
    %3995 = vst.msk [vmem:[#allocation5 + $0x68] sm:$0xff] %vm1854, %v3961
    %3996 = vst.msk [vmem:[#allocation5 + $0x70] sm:$0xff] %vm1854, %v3963
    %3997 = vst.msk [vmem:[#allocation5 + $0x78] sm:$0xff] %vm1854, %v3965
    %v3998 = vld [vmem:[%s3805 + $0x2] sm:$0xff]
    %v3999 = vld [vmem:[%s3805 + $0x12] sm:$0xff]
    %v4000 = vld [vmem:[%s3805 + $0x22] sm:$0xff]
    %v4001 = vld [vmem:[%s3805 + $0x32] sm:$0xff]
    %v4002 = vld [vmem:[%s3805 + $0x42] sm:$0xff]
    %v4003 = vld [vmem:[%s3805 + $0x52] sm:$0xff]
    %v4004 = vld [vmem:[%s3805 + $0x62] sm:$0xff]
    %v4005 = vld [vmem:[%s3805 + $0x72] sm:$0xff]
    %v4006 = vld [vmem:[%s3805 + $0xa2] sm:$0xff]
    %v4007 = vld [vmem:[%s3805 + $0xb2] sm:$0xff]
    %v4008 = vld [vmem:[%s3805 + $0xc2] sm:$0xff]
    %v4009 = vld [vmem:[%s3805 + $0xd2] sm:$0xff]
    %v4010 = vld [vmem:[%s3805 + $0xe2] sm:$0xff]
    %v4011 = vld [vmem:[%s3805 + $0xf2] sm:$0xff]
    %v4012 = vld [vmem:[%s3805 + $0x102] sm:$0xff]
    %v4013 = vld [vmem:[%s3805 + $0x112] sm:$0xff]
    %4030 = vrot.lane.b32.xlu0 %v3998, 64
    %v4031 = vpop.permute.xlu0 %4030
    %4032 = vrot.lane.b32.xlu0 %v3999, 64
    %v4033 = vpop.permute.xlu0 %4032
    %4034 = vrot.lane.b32.xlu0 %v4000, 64
    %v4035 = vpop.permute.xlu0 %4034
    %4036 = vrot.lane.b32.xlu0 %v4001, 64
    %v4037 = vpop.permute.xlu0 %4036
    %4038 = vrot.lane.b32.xlu0 %v4002, 64
    %v4039 = vpop.permute.xlu0 %4038
    %4040 = vrot.lane.b32.xlu0 %v4003, 64
    %v4041 = vpop.permute.xlu0 %4040
    %4042 = vrot.lane.b32.xlu0 %v4004, 64
    %v4043 = vpop.permute.xlu0 %4042
    %4044 = vrot.lane.b32.xlu0 %v4005, 64
    %v4045 = vpop.permute.xlu0 %4044
    %4046 = vrot.lane.b32.xlu0 %v4006, 64
    %v4047 = vpop.permute.xlu0 %4046
    %4048 = vrot.lane.b32.xlu0 %v4007, 64
    %v4049 = vpop.permute.xlu0 %4048
    %4050 = vrot.lane.b32.xlu0 %v4008, 64
    %v4051 = vpop.permute.xlu0 %4050
    %4052 = vrot.lane.b32.xlu0 %v4009, 64
    %v4053 = vpop.permute.xlu0 %4052
    %4054 = vrot.lane.b32.xlu0 %v4010, 64
    %v4055 = vpop.permute.xlu0 %4054
    %4056 = vrot.lane.b32.xlu0 %v4011, 64
    %v4057 = vpop.permute.xlu0 %4056
    %4058 = vrot.lane.b32.xlu0 %v4012, 64
    %v4059 = vpop.permute.xlu0 %4058
    %4060 = vrot.lane.b32.xlu0 %v4013, 64
    %v4061 = vpop.permute.xlu0 %4060
    %4078 = vst.msk [vmem:[#allocation5] sm:$0xff] %vm1967, %v4031
    %4079 = vst.msk [vmem:[#allocation5 + $0x8] sm:$0xff] %vm1967, %v4033
    %4080 = vst.msk [vmem:[#allocation5 + $0x10] sm:$0xff] %vm1967, %v4035
    %4081 = vst.msk [vmem:[#allocation5 + $0x18] sm:$0xff] %vm1967, %v4037
    %4082 = vst.msk [vmem:[#allocation5 + $0x20] sm:$0xff] %vm1967, %v4039
    %4083 = vst.msk [vmem:[#allocation5 + $0x28] sm:$0xff] %vm1967, %v4041
    %4084 = vst.msk [vmem:[#allocation5 + $0x30] sm:$0xff] %vm1967, %v4043
    %4085 = vst.msk [vmem:[#allocation5 + $0x38] sm:$0xff] %vm1967, %v4045
    %4086 = vst.msk [vmem:[#allocation5 + $0x40] sm:$0xff] %vm1967, %v4047
    %4087 = vst.msk [vmem:[#allocation5 + $0x48] sm:$0xff] %vm1967, %v4049
    %4088 = vst.msk [vmem:[#allocation5 + $0x50] sm:$0xff] %vm1967, %v4051
    %4089 = vst.msk [vmem:[#allocation5 + $0x58] sm:$0xff] %vm1967, %v4053
    %4090 = vst.msk [vmem:[#allocation5 + $0x60] sm:$0xff] %vm1967, %v4055
    %4091 = vst.msk [vmem:[#allocation5 + $0x68] sm:$0xff] %vm1967, %v4057
    %4092 = vst.msk [vmem:[#allocation5 + $0x70] sm:$0xff] %vm1967, %v4059
    %4093 = vst.msk [vmem:[#allocation5 + $0x78] sm:$0xff] %vm1967, %v4061
    %v4094 = vld [vmem:[#allocation5] sm:$0xff]
    %v4095 = vld [vmem:[#allocation5 + $0x8] sm:$0xff]
    %v4096 = vld [vmem:[#allocation5 + $0x10] sm:$0xff]
    %v4097 = vld [vmem:[#allocation5 + $0x18] sm:$0xff]
    %v4098 = vld [vmem:[#allocation5 + $0x20] sm:$0xff]
    %v4099 = vld [vmem:[#allocation5 + $0x28] sm:$0xff]
    %v4100 = vld [vmem:[#allocation5 + $0x30] sm:$0xff]
    %v4101 = vld [vmem:[#allocation5 + $0x38] sm:$0xff]
    %v4102 = vld [vmem:[#allocation5 + $0x40] sm:$0xff]
    %v4103 = vld [vmem:[#allocation5 + $0x48] sm:$0xff]
    %v4104 = vld [vmem:[#allocation5 + $0x50] sm:$0xff]
    %v4105 = vld [vmem:[#allocation5 + $0x58] sm:$0xff]
    %v4106 = vld [vmem:[#allocation5 + $0x60] sm:$0xff]
    %v4107 = vld [vmem:[#allocation5 + $0x68] sm:$0xff]
    %v4108 = vld [vmem:[#allocation5 + $0x70] sm:$0xff]
    %v4109 = vld [vmem:[#allocation5 + $0x78] sm:$0xff]
    %v4110 = vpack.c.bf16 %v4095, %v4094
    %v4111 = vpack.c.bf16 %v4097, %v4096
    %v4112 = vpack.c.bf16 %v4099, %v4098
    %v4113 = vpack.c.bf16 %v4101, %v4100
    %v4114 = vpack.c.bf16 %v4103, %v4102
    %v4115 = vpack.c.bf16 %v4105, %v4104
    %v4116 = vpack.c.bf16 %v4107, %v4106
    %v4117 = vpack.c.bf16 %v4109, %v4108
    %v4118 = vld [vmem:[%s18] sm:$0xf]
    %v4119 = vld [vmem:[%s18 + $0x4] sm:$0xf]
    %v4120 = vld [vmem:[%s18 + $0x8] sm:$0xf]
    %v4121 = vld [vmem:[%s18 + $0xc] sm:$0xf]
    %v4122 = vld [vmem:[%s18 + $0x10] sm:$0xf]
    %v4123 = vld [vmem:[%s18 + $0x14] sm:$0xf]
    %v4124 = vld [vmem:[%s18 + $0x18] sm:$0xf]
    %v4125 = vld [vmem:[%s18 + $0x1c] sm:$0xf]
    %v4126 = vld [vmem:[%s18 + $0x20] sm:$0xf]
    %v4136 = vunpack.c.l.b16 %v4118
    %v4137 = vunpack.c.l.b16 %v4119
    %v4138 = vunpack.c.l.b16 %v4120
    %v4139 = vunpack.c.l.b16 %v4121
    %v4140 = vunpack.c.l.b16 %v4122
    %v4141 = vunpack.c.l.b16 %v4123
    %v4142 = vunpack.c.l.b16 %v4124
    %v4143 = vunpack.c.l.b16 %v4125
    %v4144 = vunpack.c.l.b16 %v4126
    %v4145 = vpack.c.b16 %v4137, %v4136
    %v4146 = vpack.c.b16 %v4139, %v4138
    %v4147 = vpack.c.b16 %v4141, %v4140
    %v4148 = vpack.c.b16 %v4143, %v4142
    %v4149 = vpack.c.b16 %v4144, %v4144
    %v4155 = vsel %vm2044, %v4110, 0
    %v4158 = vsel %vm2044, %v4111, 0
    %v4161 = vsel %vm2044, %v4112, 0
    %v4164 = vsel %vm2044, %v4113, 0
    %v4167 = vsel %vm2044, %v4114, 0
    %v4170 = vsel %vm2044, %v4115, 0
    %v4173 = vsel %vm2044, %v4116, 0
    %v4176 = vsel %vm2044, %v4117, 0
    %v4179 = vsel %vm2069, %v4149, 0
    %4181 = vmatprep.subr.bf16.mxu0 0
    %4182 = vmatpush1.bf16.msra.mxu0 %v4145
    %4183 = vmatprep.subr.bf16.mxu0 0
    %4184 = vmatpush1.bf16.msra.mxu0 %v4146
    %4185 = vmatprep.subr.bf16.mxu0 0
    %4186 = vmatpush1.bf16.msra.mxu0 %v4147
    %4187 = vmatprep.subr.bf16.mxu0 0
    %4188 = vmatpush1.bf16.msra.mxu0 %v4148
    %4189 = vmatprep.subr.bf16.mxu0 0
    %4190 = vmatpush1.bf16.msra.mxu0 %v4179
    %4191 = vmatprep.subr.bf16.mxu0 0
    %4192 = vmatpush1.bf16.msra.mxu0 0
    %4193 = vmatprep.subr.bf16.mxu0 0
    %4194 = vmatpush1.bf16.msra.mxu0 0
    %4195 = vmatprep.subr.bf16.mxu0 0
    %4196 = vmatpush1.bf16.msra.mxu0 0
    %4197 = vmatprep.subr.bf16.mxu0 0
    %4198 = vmatpush1.bf16.msra.mxu0 0
    %4199 = vmatprep.subr.bf16.mxu0 0
    %4200 = vmatpush1.bf16.msra.mxu0 0
    %4201 = vmatprep.subr.bf16.mxu0 0
    %4202 = vmatpush1.bf16.msra.mxu0 0
    %4203 = vmatprep.subr.bf16.mxu0 0
    %4204 = vmatpush1.bf16.msra.mxu0 0
    %4205 = vmatprep.subr.bf16.mxu0 0
    %4206 = vmatpush1.bf16.msra.mxu0 0
    %4207 = vmatprep.subr.bf16.mxu0 0
    %4208 = vmatpush1.bf16.msra.mxu0 0
    %4209 = vmatprep.subr.bf16.mxu0 0
    %4210 = vmatpush1.bf16.msra.mxu0 0
    %4211 = vmatprep.subr.bf16.mxu0 0
    %4212 = vmatpush1.bf16.msra.mxu0 0
    %4213 = vmatprep.mubr.bf16.mxu0 0
    %4214 = vmatmul.mubr.bf16.gmra.mrb[0].mxu0 %v4155
    %v4215 = vpop.f32.mrb[0].mxu0
    %v4216 = vadd.f32 0.0, %v4215
    %v4217 = vpop.f32.mrb[0].mxu0
    %v4218 = vpop.f32.mrb[0].mxu0
    %v4219 = vadd.f32 0.0, %v4218
    %v4220 = vpop.f32.mrb[0].mxu0
    %4221 = vmatprep.mubr.bf16.mxu0 0
    %4222 = vmatmul.mubr.bf16.gmra.mrb[0].mxu0 %v4158
    %v4223 = vpop.f32.mrb[0].mxu0
    %v4224 = vadd.f32 0.0, %v4223
    %v4225 = vpop.f32.mrb[0].mxu0
    %v4226 = vpop.f32.mrb[0].mxu0
    %v4227 = vadd.f32 0.0, %v4226
    %v4228 = vpop.f32.mrb[0].mxu0
    %4229 = vmatprep.mubr.bf16.mxu0 0
    %4230 = vmatmul.mubr.bf16.gmra.mrb[0].mxu0 %v4161
    %v4231 = vpop.f32.mrb[0].mxu0
    %v4232 = vadd.f32 0.0, %v4231
    %v4233 = vpop.f32.mrb[0].mxu0
    %v4234 = vpop.f32.mrb[0].mxu0
    %v4235 = vadd.f32 0.0, %v4234
    %v4236 = vpop.f32.mrb[0].mxu0
    %4237 = vmatprep.mubr.bf16.mxu0 0
    %4238 = vmatmul.mubr.bf16.gmra.mrb[0].mxu0 %v4164
    %v4239 = vpop.f32.mrb[0].mxu0
    %v4240 = vadd.f32 0.0, %v4239
    %v4241 = vpop.f32.mrb[0].mxu0
    %v4242 = vpop.f32.mrb[0].mxu0
    %v4243 = vadd.f32 0.0, %v4242
    %v4244 = vpop.f32.mrb[0].mxu0
    %4245 = vmatprep.mubr.bf16.mxu0 0
    %4246 = vmatmul.mubr.bf16.gmra.mrb[0].mxu0 %v4167
    %v4247 = vpop.f32.mrb[0].mxu0
    %v4248 = vadd.f32 0.0, %v4247
    %v4249 = vpop.f32.mrb[0].mxu0
    %v4250 = vpop.f32.mrb[0].mxu0
    %v4251 = vadd.f32 0.0, %v4250
    %v4252 = vpop.f32.mrb[0].mxu0
    %4253 = vmatprep.mubr.bf16.mxu0 0
    %4254 = vmatmul.mubr.bf16.gmra.mrb[0].mxu0 %v4170
    %v4255 = vpop.f32.mrb[0].mxu0
    %v4256 = vadd.f32 0.0, %v4255
    %v4257 = vpop.f32.mrb[0].mxu0
    %v4258 = vpop.f32.mrb[0].mxu0
    %v4259 = vadd.f32 0.0, %v4258
    %v4260 = vpop.f32.mrb[0].mxu0
    %4261 = vmatprep.mubr.bf16.mxu0 0
    %4262 = vmatmul.mubr.bf16.gmra.mrb[0].mxu0 %v4173
    %v4263 = vpop.f32.mrb[0].mxu0
    %v4264 = vadd.f32 0.0, %v4263
    %v4265 = vpop.f32.mrb[0].mxu0
    %v4266 = vpop.f32.mrb[0].mxu0
    %v4267 = vadd.f32 0.0, %v4266
    %v4268 = vpop.f32.mrb[0].mxu0
    %4269 = vmatprep.mubr.bf16.mxu0 0
    %4270 = vmatmul.mubr.bf16.gmra.mrb[0].mxu0 %v4176
    %v4271 = vpop.f32.mrb[0].mxu0
    %v4272 = vadd.f32 0.0, %v4271
    %v4273 = vpop.f32.mrb[0].mxu0
    %v4274 = vpop.f32.mrb[0].mxu0
    %v4275 = vadd.f32 0.0, %v4274
    %v4276 = vpop.f32.mrb[0].mxu0
    %4277 = vdwg.mxu0
    %v4278 = vld [vmem:[%s19] sm:$0x1]
    %v4280 = vlaneseq
    %v4281 = vshrl.u32 %v4280, 7
    %v4282 = vsub.s32 0, %v4281
    %v4283 = vrot.slane %v4278, %v4282
    %v4285 = vmul.f32 %v4216, %v4283
    %v4286 = vmul.f32 %v4219, %v4283
    %v4287 = vmul.f32 %v4224, %v4283
    %v4288 = vmul.f32 %v4227, %v4283
    %v4289 = vmul.f32 %v4232, %v4283
    %v4290 = vmul.f32 %v4235, %v4283
    %v4291 = vmul.f32 %v4240, %v4283
    %v4292 = vmul.f32 %v4243, %v4283
    %v4293 = vmul.f32 %v4248, %v4283
    %v4294 = vmul.f32 %v4251, %v4283
    %v4295 = vmul.f32 %v4256, %v4283
    %v4296 = vmul.f32 %v4259, %v4283
    %v4297 = vmul.f32 %v4264, %v4283
    %v4298 = vmul.f32 %v4267, %v4283
    %v4299 = vmul.f32 %v4272, %v4283
    %v4300 = vmul.f32 %v4275, %v4283
    %v4301 = vld [vmem:[%s20] sm:$0x1]
    %v4303 = vlaneseq
    %v4304 = vshrl.u32 %v4303, 7
    %v4305 = vsub.s32 0, %v4304
    %v4306 = vrot.slane %v4301, %v4305
    %v4308 = vadd.f32 %v4285, %v4306
    %v4309 = vadd.f32 %v4286, %v4306
    %v4310 = vadd.f32 %v4287, %v4306
    %v4311 = vadd.f32 %v4288, %v4306
    %v4312 = vadd.f32 %v4289, %v4306
    %v4313 = vadd.f32 %v4290, %v4306
    %v4314 = vadd.f32 %v4291, %v4306
    %v4315 = vadd.f32 %v4292, %v4306
    %v4316 = vadd.f32 %v4293, %v4306
    %v4317 = vadd.f32 %v4294, %v4306
    %v4318 = vadd.f32 %v4295, %v4306
    %v4319 = vadd.f32 %v4296, %v4306
    %v4320 = vadd.f32 %v4297, %v4306
    %v4321 = vadd.f32 %v4298, %v4306
    %v4322 = vadd.f32 %v4299, %v4306
    %v4323 = vadd.f32 %v4300, %v4306
    %v4324 = vmax.f32 %v4308, 0.0
    %v4325 = vmax.f32 %v4309, 0.0
    %v4326 = vmax.f32 %v4310, 0.0
    %v4327 = vmax.f32 %v4311, 0.0
    %v4328 = vmax.f32 %v4312, 0.0
    %v4329 = vmax.f32 %v4313, 0.0
    %v4330 = vmax.f32 %v4314, 0.0
    %v4331 = vmax.f32 %v4315, 0.0
    %v4332 = vmax.f32 %v4316, 0.0
    %v4333 = vmax.f32 %v4317, 0.0
    %v4334 = vmax.f32 %v4318, 0.0
    %v4335 = vmax.f32 %v4319, 0.0
    %v4336 = vmax.f32 %v4320, 0.0
    %v4337 = vmax.f32 %v4321, 0.0
    %v4338 = vmax.f32 %v4322, 0.0
    %v4339 = vmax.f32 %v4323, 0.0
    %v4340 = vpack.c.bf16 %v4325, %v4324
    %v4341 = vpack.c.bf16 %v4327, %v4326
    %v4342 = vpack.c.bf16 %v4329, %v4328
    %v4343 = vpack.c.bf16 %v4331, %v4330
    %v4344 = vpack.c.bf16 %v4333, %v4332
    %v4345 = vpack.c.bf16 %v4335, %v4334
    %v4346 = vpack.c.bf16 %v4337, %v4336
    %v4347 = vpack.c.bf16 %v4339, %v4338
    %v4348 = vld [vmem:[%s21] sm:$0xf]
    %v4350 = vsel %vm99, %v4340, 0
    %v4353 = vsel %vm99, %v4341, 0
    %v4356 = vsel %vm99, %v4342, 0
    %v4359 = vsel %vm99, %v4343, 0
    %v4362 = vsel %vm99, %v4344, 0
    %v4365 = vsel %vm99, %v4345, 0
    %v4368 = vsel %vm99, %v4346, 0
    %v4371 = vsel %vm99, %v4347, 0
    %v4374 = vsel %vm2069, %v4348, 0
    %4376 = vmatprep.subr.bf16.mxu0 0
    %4377 = vmatpush1.bf16.msra.mxu0 %v4374
    %4378 = vmatprep.subr.bf16.mxu0 0
    %4379 = vmatpush1.bf16.msra.mxu0 0
    %4380 = vmatprep.subr.bf16.mxu0 0
    %4381 = vmatpush1.bf16.msra.mxu0 0
    %4382 = vmatprep.subr.bf16.mxu0 0
    %4383 = vmatpush1.bf16.msra.mxu0 0
    %4384 = vmatprep.subr.bf16.mxu0 0
    %4385 = vmatpush1.bf16.msra.mxu0 0
    %4386 = vmatprep.subr.bf16.mxu0 0
    %4387 = vmatpush1.bf16.msra.mxu0 0
    %4388 = vmatprep.subr.bf16.mxu0 0
    %4389 = vmatpush1.bf16.msra.mxu0 0
    %4390 = vmatprep.subr.bf16.mxu0 0
    %4391 = vmatpush1.bf16.msra.mxu0 0
    %4392 = vmatprep.subr.bf16.mxu0 0
    %4393 = vmatpush1.bf16.msra.mxu0 0
    %4394 = vmatprep.subr.bf16.mxu0 0
    %4395 = vmatpush1.bf16.msra.mxu0 0
    %4396 = vmatprep.subr.bf16.mxu0 0
    %4397 = vmatpush1.bf16.msra.mxu0 0
    %4398 = vmatprep.subr.bf16.mxu0 0
    %4399 = vmatpush1.bf16.msra.mxu0 0
    %4400 = vmatprep.subr.bf16.mxu0 0
    %4401 = vmatpush1.bf16.msra.mxu0 0
    %4402 = vmatprep.subr.bf16.mxu0 0
    %4403 = vmatpush1.bf16.msra.mxu0 0
    %4404 = vmatprep.subr.bf16.mxu0 0
    %4405 = vmatpush1.bf16.msra.mxu0 0
    %4406 = vmatprep.subr.bf16.mxu0 0
    %4407 = vmatpush1.bf16.msra.mxu0 0
    %4408 = vmatprep.mubr.bf16.mxu0 0
    %4409 = vmatmul.mubr.bf16.gmra.mrb[0].mxu0 %v4350
    %v4410 = vpop.f32.mrb[0].mxu0
    %v4411 = vadd.f32 0.0, %v4410
    %v4412 = vpop.f32.mrb[0].mxu0
    %v4413 = vpop.f32.mrb[0].mxu0
    %v4414 = vadd.f32 0.0, %v4413
    %v4415 = vpop.f32.mrb[0].mxu0
    %4416 = vmatprep.mubr.bf16.mxu0 0
    %4417 = vmatmul.mubr.bf16.gmra.mrb[0].mxu0 %v4353
    %v4418 = vpop.f32.mrb[0].mxu0
    %v4419 = vadd.f32 0.0, %v4418
    %v4420 = vpop.f32.mrb[0].mxu0
    %v4421 = vpop.f32.mrb[0].mxu0
    %v4422 = vadd.f32 0.0, %v4421
    %v4423 = vpop.f32.mrb[0].mxu0
    %4424 = vmatprep.mubr.bf16.mxu0 0
    %4425 = vmatmul.mubr.bf16.gmra.mrb[0].mxu0 %v4356
    %v4426 = vpop.f32.mrb[0].mxu0
    %v4427 = vadd.f32 0.0, %v4426
    %v4428 = vpop.f32.mrb[0].mxu0
    %v4429 = vpop.f32.mrb[0].mxu0
    %v4430 = vadd.f32 0.0, %v4429
    %v4431 = vpop.f32.mrb[0].mxu0
    %4432 = vmatprep.mubr.bf16.mxu0 0
    %4433 = vmatmul.mubr.bf16.gmra.mrb[0].mxu0 %v4359
    %v4434 = vpop.f32.mrb[0].mxu0
    %v4435 = vadd.f32 0.0, %v4434
    %v4436 = vpop.f32.mrb[0].mxu0
    %v4437 = vpop.f32.mrb[0].mxu0
    %v4438 = vadd.f32 0.0, %v4437
    %v4439 = vpop.f32.mrb[0].mxu0
    %4440 = vmatprep.mubr.bf16.mxu0 0
    %4441 = vmatmul.mubr.bf16.gmra.mrb[0].mxu0 %v4362
    %v4442 = vpop.f32.mrb[0].mxu0
    %v4443 = vadd.f32 0.0, %v4442
    %v4444 = vpop.f32.mrb[0].mxu0
    %v4445 = vpop.f32.mrb[0].mxu0
    %v4446 = vadd.f32 0.0, %v4445
    %v4447 = vpop.f32.mrb[0].mxu0
    %4448 = vmatprep.mubr.bf16.mxu0 0
    %4449 = vmatmul.mubr.bf16.gmra.mrb[0].mxu0 %v4365
    %v4450 = vpop.f32.mrb[0].mxu0
    %v4451 = vadd.f32 0.0, %v4450
    %v4452 = vpop.f32.mrb[0].mxu0
    %v4453 = vpop.f32.mrb[0].mxu0
    %v4454 = vadd.f32 0.0, %v4453
    %v4455 = vpop.f32.mrb[0].mxu0
    %4456 = vmatprep.mubr.bf16.mxu0 0
    %4457 = vmatmul.mubr.bf16.gmra.mrb[0].mxu0 %v4368
    %v4458 = vpop.f32.mrb[0].mxu0
    %v4459 = vadd.f32 0.0, %v4458
    %v4460 = vpop.f32.mrb[0].mxu0
    %v4461 = vpop.f32.mrb[0].mxu0
    %v4462 = vadd.f32 0.0, %v4461
    %v4463 = vpop.f32.mrb[0].mxu0
    %4464 = vmatprep.mubr.bf16.mxu0 0
    %4465 = vmatmul.mubr.bf16.gmra.mrb[0].mxu0 %v4371
    %v4466 = vpop.f32.mrb[0].mxu0
    %v4467 = vadd.f32 0.0, %v4466
    %v4468 = vpop.f32.mrb[0].mxu0
    %v4469 = vpop.f32.mrb[0].mxu0
    %v4470 = vadd.f32 0.0, %v4469
    %v4471 = vpop.f32.mrb[0].mxu0
    %4472 = vdwg.mxu0
    %v4473 = vld [vmem:[%s22] sm:$0x1]
    %v4475 = vlaneseq
    %v4476 = vshrl.u32 %v4475, 7
    %v4477 = vsub.s32 0, %v4476
    %v4478 = vrot.slane %v4473, %v4477
    %v4480 = vmul.f32 %v4411, %v4478
    %v4481 = vmul.f32 %v4414, %v4478
    %v4482 = vmul.f32 %v4419, %v4478
    %v4483 = vmul.f32 %v4422, %v4478
    %v4484 = vmul.f32 %v4427, %v4478
    %v4485 = vmul.f32 %v4430, %v4478
    %v4486 = vmul.f32 %v4435, %v4478
    %v4487 = vmul.f32 %v4438, %v4478
    %v4488 = vmul.f32 %v4443, %v4478
    %v4489 = vmul.f32 %v4446, %v4478
    %v4490 = vmul.f32 %v4451, %v4478
    %v4491 = vmul.f32 %v4454, %v4478
    %v4492 = vmul.f32 %v4459, %v4478
    %v4493 = vmul.f32 %v4462, %v4478
    %v4494 = vmul.f32 %v4467, %v4478
    %v4495 = vmul.f32 %v4470, %v4478
    %v4496 = vld [vmem:[%s23] sm:$0x1]
    %v4498 = vlaneseq
    %v4499 = vshrl.u32 %v4498, 7
    %v4500 = vsub.s32 0, %v4499
    %v4501 = vrot.slane %v4496, %v4500
    %v4503 = vadd.f32 %v4480, %v4501
    %v4504 = vadd.f32 %v4481, %v4501
    %v4505 = vadd.f32 %v4482, %v4501
    %v4506 = vadd.f32 %v4483, %v4501
    %v4507 = vadd.f32 %v4484, %v4501
    %v4508 = vadd.f32 %v4485, %v4501
    %v4509 = vadd.f32 %v4486, %v4501
    %v4510 = vadd.f32 %v4487, %v4501
    %v4511 = vadd.f32 %v4488, %v4501
    %v4512 = vadd.f32 %v4489, %v4501
    %v4513 = vadd.f32 %v4490, %v4501
    %v4514 = vadd.f32 %v4491, %v4501
    %v4515 = vadd.f32 %v4492, %v4501
    %v4516 = vadd.f32 %v4493, %v4501
    %v4517 = vadd.f32 %v4494, %v4501
    %v4518 = vadd.f32 %v4495, %v4501
    %v4519 = vadd.f32 %v4503, %v4504
    %v4520 = vadd.f32 %v4519, %v4505
    %v4521 = vadd.f32 %v4520, %v4506
    %v4522 = vadd.f32 %v4521, %v4507
    %v4523 = vadd.f32 %v4522, %v4508
    %v4524 = vadd.f32 %v4523, %v4509
    %v4525 = vadd.f32 %v4524, %v4510
    %v4526 = vrot.slane %v4525, 4
    %v4527 = vadd.f32 %v4525, %v4526
    %v4528 = vrot.slane %v4527, 2
    %v4529 = vadd.f32 %v4527, %v4528
    %v4530 = vrot.slane %v4529, 1
    %v4531 = vadd.f32 %v4529, %v4530
    %v4532 = vadd.f32 %v4511, %v4512
    %v4533 = vadd.f32 %v4532, %v4513
    %v4534 = vadd.f32 %v4533, %v4514
    %v4535 = vadd.f32 %v4534, %v4515
    %v4536 = vadd.f32 %v4535, %v4516
    %v4537 = vadd.f32 %v4536, %v4517
    %v4538 = vadd.f32 %v4537, %v4518
    %v4539 = vrot.slane %v4538, 4
    %v4540 = vadd.f32 %v4538, %v4539
    %v4541 = vrot.slane %v4540, 2
    %v4542 = vadd.f32 %v4540, %v4541
    %v4543 = vrot.slane %v4542, 1
    %v4544 = vadd.f32 %v4542, %v4543
    %v4545 = vmul.f32 %v4531, %v2437
    %v4546 = vmul.f32 %v4544, %v2437
    %v4547 = vpack.c.bf16 %v4545, %v4545
    %v4548 = vpack.c.bf16 %v4546, %v4546
    %v4549 = vld [vmem:[%s24] sm:$0xf]
    %v4550 = vld [vmem:[%s24 + $0x4] sm:$0xf]
    %v4551 = vld [vmem:[%s24 + $0x8] sm:$0xf]
    %v4552 = vld [vmem:[%s24 + $0xc] sm:$0xf]
    %v4553 = vld [vmem:[%s24 + $0x10] sm:$0xf]
    %v4554 = vld [vmem:[%s24 + $0x14] sm:$0xf]
    %v4555 = vld [vmem:[%s24 + $0x18] sm:$0xf]
    %v4556 = vld [vmem:[%s24 + $0x1c] sm:$0xf]
    %v4557 = vld [vmem:[%s24 + $0x20] sm:$0xf]
    %v4558 = vld [vmem:[%s24 + $0x24] sm:$0xf]
    %v4559 = vld [vmem:[%s24 + $0x28] sm:$0xf]
    %v4560 = vld [vmem:[%s24 + $0x2c] sm:$0xf]
    %v4561 = vld [vmem:[%s24 + $0x30] sm:$0xf]
    %v4562 = vld [vmem:[%s24 + $0x34] sm:$0xf]
    %v4563 = vld [vmem:[%s24 + $0x38] sm:$0xf]
    %v4564 = vld [vmem:[%s24 + $0x3c] sm:$0xf]
    %v4567 = vunpack.c.l.b16 %v4547
    %v4568 = vunpack.c.l.b16 %v4548
    %v4569 = vsel %vm2462, %v4568, %v4567
    %v4570 = vpack.c.b16 %v4569, %v4569
    %v4588 = vunpack.c.l.b16 %v4549
    %v4589 = vunpack.c.l.b16 %v4550
    %v4590 = vunpack.c.l.b16 %v4551
    %v4591 = vunpack.c.l.b16 %v4552
    %v4592 = vunpack.c.l.b16 %v4553
    %v4593 = vunpack.c.l.b16 %v4554
    %v4594 = vunpack.c.l.b16 %v4555
    %v4595 = vunpack.c.l.b16 %v4556
    %v4596 = vunpack.c.l.b16 %v4557
    %v4597 = vunpack.c.l.b16 %v4558
    %v4598 = vunpack.c.l.b16 %v4559
    %v4599 = vunpack.c.l.b16 %v4560
    %v4600 = vunpack.c.l.b16 %v4561
    %v4601 = vunpack.c.l.b16 %v4562
    %v4602 = vunpack.c.l.b16 %v4563
    %v4603 = vunpack.c.l.b16 %v4564
    %v4604 = vpack.c.b16 %v4589, %v4588
    %v4605 = vpack.c.b16 %v4591, %v4590
    %v4606 = vpack.c.b16 %v4593, %v4592
    %v4607 = vpack.c.b16 %v4595, %v4594
    %v4608 = vpack.c.b16 %v4597, %v4596
    %v4609 = vpack.c.b16 %v4599, %v4598
    %v4610 = vpack.c.b16 %v4601, %v4600
    %v4611 = vpack.c.b16 %v4603, %v4602
    %4620 = vmatprep.subr.bf16.mxu0 0
    %4621 = vmatpush1.bf16.msra.mxu0 %v4604
    %4622 = vmatprep.subr.bf16.mxu0 0
    %4623 = vmatpush1.bf16.msra.mxu0 %v4605
    %4624 = vmatprep.subr.bf16.mxu0 0
    %4625 = vmatpush1.bf16.msra.mxu0 %v4606
    %4626 = vmatprep.subr.bf16.mxu0 0
    %4627 = vmatpush1.bf16.msra.mxu0 %v4607
    %4628 = vmatprep.subr.bf16.mxu0 0
    %4629 = vmatpush1.bf16.msra.mxu0 %v4608
    %4630 = vmatprep.subr.bf16.mxu0 0
    %4631 = vmatpush1.bf16.msra.mxu0 %v4609
    %4632 = vmatprep.subr.bf16.mxu0 0
    %4633 = vmatpush1.bf16.msra.mxu0 %v4610
    %4634 = vmatprep.subr.bf16.mxu0 0
    %4635 = vmatpush1.bf16.msra.mxu0 %v4611
    %4636 = vmatprep.subr.bf16.mxu0 0
    %4637 = vmatpush1.bf16.msra.mxu0 0
    %4638 = vmatprep.subr.bf16.mxu0 0
    %4639 = vmatpush1.bf16.msra.mxu0 0
    %4640 = vmatprep.subr.bf16.mxu0 0
    %4641 = vmatpush1.bf16.msra.mxu0 0
    %4642 = vmatprep.subr.bf16.mxu0 0
    %4643 = vmatpush1.bf16.msra.mxu0 0
    %4644 = vmatprep.subr.bf16.mxu0 0
    %4645 = vmatpush1.bf16.msra.mxu0 0
    %4646 = vmatprep.subr.bf16.mxu0 0
    %4647 = vmatpush1.bf16.msra.mxu0 0
    %4648 = vmatprep.subr.bf16.mxu0 0
    %4649 = vmatpush1.bf16.msra.mxu0 0
    %4650 = vmatprep.subr.bf16.mxu0 0
    %4651 = vmatpush1.bf16.msra.mxu0 0
    %4652 = vmatprep.mubr.bf16.mxu0 0
    %4653 = vmatmul.mubr.bf16.gmra.mrb[0].mxu0 %v4570
    %v4654 = vpop.f32.mrb[0].mxu0
    %v4655 = vadd.f32 0.0, %v4654
    %v4656 = vpop.f32.mrb[0].mxu0
    %v4657 = vpop.f32.mrb[0].mxu0
    %v4658 = vpop.f32.mrb[0].mxu0
    %4659 = vdwg.mxu0
    %v4660 = vmax.f32 %v4655, 0.0
    %v4661 = vpack.c.bf16 %v4660, %v4660
    %v4662 = vld [vmem:[%s25] sm:$0x1]
    %v4664 = vsel %vm2557, %v4661, 0
    %v4667 = vsel %vm2561, %v4662, 0
    %4669 = vmatprep.subr.bf16.mxu0 0
    %4670 = vmatpush1.bf16.msra.mxu0 %v4667
    %4671 = vmatprep.subr.bf16.mxu0 0
    %4672 = vmatpush1.bf16.msra.mxu0 0
    %4673 = vmatprep.subr.bf16.mxu0 0
    %4674 = vmatpush1.bf16.msra.mxu0 0
    %4675 = vmatprep.subr.bf16.mxu0 0
    %4676 = vmatpush1.bf16.msra.mxu0 0
    %4677 = vmatprep.subr.bf16.mxu0 0
    %4678 = vmatpush1.bf16.msra.mxu0 0
    %4679 = vmatprep.subr.bf16.mxu0 0
    %4680 = vmatpush1.bf16.msra.mxu0 0
    %4681 = vmatprep.subr.bf16.mxu0 0
    %4682 = vmatpush1.bf16.msra.mxu0 0
    %4683 = vmatprep.subr.bf16.mxu0 0
    %4684 = vmatpush1.bf16.msra.mxu0 0
    %4685 = vmatprep.subr.bf16.mxu0 0
    %4686 = vmatpush1.bf16.msra.mxu0 0
    %4687 = vmatprep.subr.bf16.mxu0 0
    %4688 = vmatpush1.bf16.msra.mxu0 0
    %4689 = vmatprep.subr.bf16.mxu0 0
    %4690 = vmatpush1.bf16.msra.mxu0 0
    %4691 = vmatprep.subr.bf16.mxu0 0
    %4692 = vmatpush1.bf16.msra.mxu0 0
    %4693 = vmatprep.subr.bf16.mxu0 0
    %4694 = vmatpush1.bf16.msra.mxu0 0
    %4695 = vmatprep.subr.bf16.mxu0 0
    %4696 = vmatpush1.bf16.msra.mxu0 0
    %4697 = vmatprep.subr.bf16.mxu0 0
    %4698 = vmatpush1.bf16.msra.mxu0 0
    %4699 = vmatprep.subr.bf16.mxu0 0
    %4700 = vmatpush1.bf16.msra.mxu0 0
    %4701 = vmatprep.mubr.bf16.mxu0 0
    %4702 = vmatmul.mubr.bf16.gmra.mrb[0].mxu0 %v4664
    %v4703 = vpop.f32.mrb[0].mxu0
    %v4704 = vadd.f32 0.0, %v4703
    %v4705 = vpop.f32.mrb[0].mxu0
    %v4706 = vpop.f32.mrb[0].mxu0
    %v4707 = vpop.f32.mrb[0].mxu0
    %4708 = vdwg.mxu0
    %v4709 = vxor.u32 %v4704, 2147483648
    %v4710 = vmul.f32 %v4709, 1.442695
    %v4711 = vpow.pop %v4710
    %v4712 = vadd.f32 %v4711, 1.0
    %v4713 = vrcp.pop %v4712
    %v4714 = vmul.f32 1.0, %v4713
    %v4717 = vunpack.c.l.s4 1966171168
    %v4718 = vunpack.c.0.s8 %v4717
    %v4719 = vlaneseq
    %v4720 = vshrl.u32 %v4719, 7
    %v4721 = vsub.s32 %v4718, %v4720
    %v4722 = vrot.slane %v4714, %v4721
    %v4723 = vcombine.high %v4722, %v4722
    %v4725 = vunpack.c.l.s4 1966171168
    %v4726 = vunpack.c.0.s8 %v4725
    %v4727 = vlaneseq
    %v4728 = vshrl.u32 %v4727, 7
    %v4729 = vsub.s32 %v4726, %v4728
    %v4730 = vrot.slane %v4722, %v4729
    %v4732 = vunpack.c.l.s4 1966171168
    %v4733 = vunpack.c.0.s8 %v4732
    %v4734 = vlaneseq
    %v4735 = vshrl.u32 %v4734, 7
    %v4736 = vsub.s32 %v4733, %v4735
    %v4737 = vrot.slane %v4723, %v4736
    %v4738 = vlaneseq
    %v4739 = vshrl.u32 %v4738, 7
    %v4740 = vsub.s32 0, %v4739
    %v4741 = vrot.slane %v4730, %v4740
    %v4742 = vlaneseq
    %v4743 = vshrl.u32 %v4742, 7
    %v4744 = vsub.s32 0, %v4743
    %v4745 = vrot.slane %v4737, %v4744
    %v4748 = vmul.f32 %v4503, %v4741
    %v4749 = vmul.f32 %v4504, %v4741
    %v4750 = vmul.f32 %v4505, %v4741
    %v4751 = vmul.f32 %v4506, %v4741
    %v4752 = vmul.f32 %v4507, %v4741
    %v4753 = vmul.f32 %v4508, %v4741
    %v4754 = vmul.f32 %v4509, %v4741
    %v4755 = vmul.f32 %v4510, %v4741
    %v4756 = vmul.f32 %v4511, %v4745
    %v4757 = vmul.f32 %v4512, %v4745
    %v4758 = vmul.f32 %v4513, %v4745
    %v4759 = vmul.f32 %v4514, %v4745
    %v4760 = vmul.f32 %v4515, %v4745
    %v4761 = vmul.f32 %v4516, %v4745
    %v4762 = vmul.f32 %v4517, %v4745
    %v4763 = vmul.f32 %v4518, %v4745
    %v4764 = vld [vmem:[#allocation6] sm:$0xff]
    %v4765 = vld [vmem:[#allocation6 + $0x8] sm:$0xff]
    %v4766 = vld [vmem:[#allocation6 + $0x10] sm:$0xff]
    %v4767 = vld [vmem:[#allocation6 + $0x18] sm:$0xff]
    %v4768 = vld [vmem:[#allocation6 + $0x20] sm:$0xff]
    %v4769 = vld [vmem:[#allocation6 + $0x28] sm:$0xff]
    %v4770 = vld [vmem:[#allocation6 + $0x30] sm:$0xff]
    %v4771 = vld [vmem:[#allocation6 + $0x38] sm:$0xff]
    %v4772 = vld [vmem:[#allocation6 + $0x40] sm:$0xff]
    %v4773 = vld [vmem:[#allocation6 + $0x48] sm:$0xff]
    %v4774 = vld [vmem:[#allocation6 + $0x50] sm:$0xff]
    %v4775 = vld [vmem:[#allocation6 + $0x58] sm:$0xff]
    %v4776 = vld [vmem:[#allocation6 + $0x60] sm:$0xff]
    %v4777 = vld [vmem:[#allocation6 + $0x68] sm:$0xff]
    %v4778 = vld [vmem:[#allocation6 + $0x70] sm:$0xff]
    %v4779 = vld [vmem:[#allocation6 + $0x78] sm:$0xff]
    %v4780 = vadd.f32 %v4748, %v4764
    %v4781 = vadd.f32 %v4749, %v4765
    %v4782 = vadd.f32 %v4750, %v4766
    %v4783 = vadd.f32 %v4751, %v4767
    %v4784 = vadd.f32 %v4752, %v4768
    %v4785 = vadd.f32 %v4753, %v4769
    %v4786 = vadd.f32 %v4754, %v4770
    %v4787 = vadd.f32 %v4755, %v4771
    %v4788 = vadd.f32 %v4756, %v4772
    %v4789 = vadd.f32 %v4757, %v4773
    %v4790 = vadd.f32 %v4758, %v4774
    %v4791 = vadd.f32 %v4759, %v4775
    %v4792 = vadd.f32 %v4760, %v4776
    %v4793 = vadd.f32 %v4761, %v4777
    %v4794 = vadd.f32 %v4762, %v4778
    %v4795 = vadd.f32 %v4763, %v4779
    %v4796 = vmax.f32 %v4780, 0.0
    %v4797 = vmax.f32 %v4781, 0.0
    %v4798 = vmax.f32 %v4782, 0.0
    %v4799 = vmax.f32 %v4783, 0.0
    %v4800 = vmax.f32 %v4784, 0.0
    %v4801 = vmax.f32 %v4785, 0.0
    %v4802 = vmax.f32 %v4786, 0.0
    %v4803 = vmax.f32 %v4787, 0.0
    %v4804 = vmax.f32 %v4788, 0.0
    %v4805 = vmax.f32 %v4789, 0.0
    %v4806 = vmax.f32 %v4790, 0.0
    %v4807 = vmax.f32 %v4791, 0.0
    %v4808 = vmax.f32 %v4792, 0.0
    %v4809 = vmax.f32 %v4793, 0.0
    %v4810 = vmax.f32 %v4794, 0.0
    %v4811 = vmax.f32 %v4795, 0.0
    %4812 = vst [vmem:[#allocation10] sm:$0xff] %v4796
    %4813 = vst [vmem:[#allocation10 + $0x8] sm:$0xff] %v4797
    %4814 = vst [vmem:[#allocation10 + $0x10] sm:$0xff] %v4798
    %4815 = vst [vmem:[#allocation10 + $0x18] sm:$0xff] %v4799
    %4816 = vst [vmem:[#allocation10 + $0x20] sm:$0xff] %v4800
    %4817 = vst [vmem:[#allocation10 + $0x28] sm:$0xff] %v4801
    %4818 = vst [vmem:[#allocation10 + $0x30] sm:$0xff] %v4802
    %4819 = vst [vmem:[#allocation10 + $0x38] sm:$0xff] %v4803
    %4820 = vst [vmem:[#allocation10 + $0x40] sm:$0xff] %v4804
    %4821 = vst [vmem:[#allocation10 + $0x48] sm:$0xff] %v4805
    %4822 = vst [vmem:[#allocation10 + $0x50] sm:$0xff] %v4806
    %4823 = vst [vmem:[#allocation10 + $0x58] sm:$0xff] %v4807
    %4824 = vst [vmem:[#allocation10 + $0x60] sm:$0xff] %v4808
    %4825 = vst [vmem:[#allocation10 + $0x68] sm:$0xff] %v4809
    %4826 = vst [vmem:[#allocation10 + $0x70] sm:$0xff] %v4810
    %4827 = vst [vmem:[#allocation10 + $0x78] sm:$0xff] %v4811
    // Predicated region
    $region110: #{tpu_custom_call.1} parent=1 // pred_check
      _
    $region111: #{tpu_custom_call.1} parent=1 // pred_check_branch
      %4829 = sbr.rel (0) target = $region113
    $region112: #{tpu_custom_call.1} parent=1 // pred_region
      %s4831 = ssub.s32 2048, 2048
      %4832 = vsyncadd [#allocation9], %s4831
      %s4833 = sshll.u32 [#allocation10], 4
      %s4834 = int_to_ptr.vmem [resolvable:$true] %s4833
      %4839 = dma.vmem_to_hbm [thread:$0]  %s4834, 2048, %s26, [#allocation9], 128, 128, 8
    $region113: #{tpu_custom_call.1} parent=1 // pred_fallthru
      _
    // Predicated region
    $region114: #{tpu_custom_call.1} parent=1 // pred_check
      _
    $region115: #{tpu_custom_call.1} parent=1 // pred_check_branch
      %4841 = sbr.rel (0) target = $region117
    $region116: #{tpu_custom_call.1} parent=1 // pred_region
      %4842 = dma.done [#allocation9], 2048
    $region117: #{tpu_custom_call.1} parent=1 // pred_fallthru
      _
    %4843 = vsyncpa [#allocation8], 1
    %4844 = vsyncpa [#allocation9], 1

</llo_original>
